<compile_context>
chip_gen: v7x
topology: tpu7x:2x2x1
jax: 0.10.0
libtpu: 0.0.40
codegen_flags: <defaults>
</compile_context>

<pallas_src>
import functools

import jax
import jax.numpy as jnp
import numpy as np
from jax import lax
from jax.experimental import pallas as pl
from jax.experimental.pallas import tpu as pltpu


def _round_up(v, m):
    return ((v + m - 1) // m) * m


def _num_parallel_cores():
    """TensorCores one jax device spans (megacore v4/v5p, dual-TC v7x)."""
    try:
        kind = jax.devices()[0].device_kind.lower()
    except Exception:
        return 1
    for tag in ("v4", "v5p", "v7"):
        if tag in kind:
            return 2
    return 1  # v2/v3/v5e/v6e: one TensorCore per jax device -> never split batch


def _vmem_budget_bytes():
    """Usable per-core VMEM with headroom for Mosaic-internal scratch."""
    try:
        cap = int(pltpu.get_tpu_info().vmem_capacity_bytes)
    except Exception:
        cap = 64 << 20  # conservative (v7x-sized) fallback
    return max(int(cap * 0.85), 32 << 20)


def _pick_batch_block(b_pad, n_cores):
    """Split the padded batch across TensorCores only on multi-TC devices."""
    if n_cores >= 2 and b_pad >= 16 and b_pad % 16 == 0:
        return b_pad // 2
    return b_pad


def _pick_time_block(seq_len, tb, in_pad, h_pad, vmem_budget, max_t=64):
    """VMEM-aware timesteps-per-grid-step (larger T amortizes grid overhead)."""
    g = 4 * h_pad
    fixed = (2 * (in_pad + h_pad) * g * 2   # bf16 weights, double-buffered
             + 2 * g * 4                    # bias block
             + 4 * tb * h_pad * 4           # hn / cn carry blocks
             + (6 << 20))                   # margin: temporaries, Mosaic scratch
    per_t = tb * (2 * in_pad * 2            # x blocks (bf16, double-buffered)
                  + 2 * h_pad * 2           # out blocks (bf16, double-buffered)
                  + g * 4)                  # xg scratch (f32, single)
    avail = vmem_budget - fixed
    if avail <= per_t:
        return 1
    t = int(min(avail // per_t, max_t, seq_len))
    t = max(t, 1)
    # Prefer a nearby T that divides seq_len exactly (no padded timesteps).
    for cand in range(t, max(t // 2, 1) - 1, -1):
        if seq_len % cand == 0:
            return cand
    return t


# ----------------------------------------------------------------------------
# Pallas kernel: one LSTM layer, input projection fused.
#   x_ref  : [T, tb, in_pad]  bf16 layer input block
#   wih_ref: [in_pad, 4*Hp]   bf16 input weight (resident, constant index_map)
#   whh_ref: [Hp, 4*Hp]       bf16 recurrent weight (resident)
#   b_ref  : [1, 4*Hp]        f32 combined bias (resident)
#   out_ref: [T, tb, Hp]      bf16 per-step hidden outputs
#   hn/cn  : [tb, Hp]         f32 final h/c; constant index_map over time so
#                             they double as the carry across grid steps.
#   xg_ref : [T, tb, 4*Hp]    f32 VMEM scratch for the fused input projection
# ----------------------------------------------------------------------------
def _lstm_layer_kernel(x_ref, wih_ref, whh_ref, b_ref, out_ref, hn_ref, cn_ref,
                       xg_ref, *, hidden_pad, seq_len, needs_mask, unroll):
    h_sz = hidden_pad
    t_blk, tb, in_pad = x_ref.shape

    # h0 / c0 default to zeros (torch.nn.LSTM when hx is not supplied).
    @pl.when(pl.program_id(1) == 0)
    def _():
        hn_ref[...] = jnp.zeros_like(hn_ref)
        cn_ref[...] = jnp.zeros_like(cn_ref)

    # Fused, time-parallel input projection: one tall-M MXU GEMM
    # ([T*tb, in] x [in, 4Hp], bf16 operands, f32 accumulation), bias folded in.
    # Result parks in VMEM scratch; gates never round-trip through HBM.
    x_flat = x_ref[...].reshape(t_blk * tb, in_pad)
    xg = jnp.dot(x_flat, wih_ref[...], preferred_element_type=jnp.float32)
    xg_ref[...] = (xg + b_ref[...]).reshape(t_blk, tb, 4 * h_sz)

    t_base = pl.program_id(1) * t_blk

    def step(r, carry):
        h, c = carry  # f32 [tb, Hp]
        # Only the recurrent matmul stays in the sequential loop; the weight is
        # streamed from VMEM each step (bounded vreg live range).
        gates = xg_ref[r] + jnp.dot(h.astype(jnp.bfloat16), whh_ref[...],
                                    preferred_element_type=jnp.float32)
        # Gate slices are 128-lane aligned because Hp is a multiple of 128.
        i_g = jax.nn.sigmoid(gates[:, 0 * h_sz:1 * h_sz])
        f_g = jax.nn.sigmoid(gates[:, 1 * h_sz:2 * h_sz])
        g_g = jnp.tanh(gates[:, 2 * h_sz:3 * h_sz])
        o_g = jax.nn.sigmoid(gates[:, 3 * h_sz:4 * h_sz])
        c_new = f_g * c + i_g * g_g
        h_new = o_g * jnp.tanh(c_new)
        out_ref[r] = h_new.astype(out_ref.dtype)  # bf16, lane-dense store
        if needs_mask:
            valid = (t_base + r) < seq_len        # tail guard for padded S
            h_new = jnp.where(valid, h_new, h)
            c_new = jnp.where(valid, c_new, c)
        return h_new, c_new

    h_f, c_f = lax.fori_loop(0, t_blk, step, (hn_ref[...], cn_ref[...]),
                             unroll=unroll)
    hn_ref[...] = h_f
    cn_ref[...] = c_f


def _lstm_layer(x_bf16, w_ih_t, w_hh_t, bias, *, hidden_pad, seq_len, t_blk, tb,
                vmem_budget):
    """x_bf16: [S_pad, B_pad, in_pad] bf16 -> (out bf16, h_n f32, c_n f32)."""
    s_pad, b_pad, in_pad = x_bf16.shape
    h_pad = hidden_pad
    g = 4 * h_pad
    nb = b_pad // tb
    nt = s_pad // t_blk
    needs_mask = (nt * t_blk != seq_len)

    # Full unroll only for small Hp; partial unroll bounds vreg pressure.
    if h_pad <= 256:
        unroll = True
    elif h_pad <= 1024:
        unroll = 8
    else:
        unroll = 4

    kernel = functools.partial(_lstm_layer_kernel, hidden_pad=h_pad,
                               seq_len=seq_len, needs_mask=needs_mask,
                               unroll=unroll)

    vmem_est = (2 * (in_pad + h_pad) * g * 2    # bf16 weights (double-buffered)
                + 2 * t_blk * tb * in_pad * 2   # x blocks (bf16)
                + 2 * t_blk * tb * h_pad * 2    # out blocks (bf16)
                + 4 * tb * h_pad * 4            # hn / cn blocks
                + t_blk * tb * g * 4            # xg scratch (f32)
                + 2 * g * 4                     # bias
                + (4 << 20))                    # margin
    vmem_limit = int(min(max(vmem_est, 16 << 20), vmem_budget))

    out, h_n, c_n = pl.pallas_call(
        kernel,
        out_shape=(
            jax.ShapeDtypeStruct((s_pad, b_pad, h_pad), jnp.bfloat16),
            jax.ShapeDtypeStruct((b_pad, h_pad), jnp.float32),
            jax.ShapeDtypeStruct((b_pad, h_pad), jnp.float32),
        ),
        grid_spec=pltpu.PrefetchScalarGridSpec(
            num_scalar_prefetch=0,
            grid=(nb, nt),
            in_specs=[
                pl.BlockSpec((t_blk, tb, in_pad), lambda b, t: (t, b, 0)),  # x
                pl.BlockSpec((in_pad, g), lambda b, t: (0, 0)),  # W_ih^T resident
                pl.BlockSpec((h_pad, g), lambda b, t: (0, 0)),   # W_hh^T resident
                pl.BlockSpec((1, g), lambda b, t: (0, 0)),       # bias resident
            ],
            out_specs=[
                pl.BlockSpec((t_blk, tb, h_pad), lambda b, t: (t, b, 0)),  # out
                pl.BlockSpec((tb, h_pad), lambda b, t: (b, 0)),  # h_n (carry)
                pl.BlockSpec((tb, h_pad), lambda b, t: (b, 0)),  # c_n (carry)
            ],
            scratch_shapes=[pltpu.VMEM((t_blk, tb, g), jnp.float32)],
        ),
        compiler_params=pltpu.CompilerParams(
            dimension_semantics=("parallel", "arbitrary"),  # batch ||, time seq
            vmem_limit_bytes=vmem_limit,
        ),
    )(x_bf16, w_ih_t, w_hh_t, bias)
    return out, h_n, c_n


# ----------------------------------------------------------------------------
# LSTMModel equivalent: stacked unidirectional LSTM (bias=True, dropout=0,
# proj_size=0, bidirectional=False, batch_first=False).
# ----------------------------------------------------------------------------
def init_lstm_params(key, input_size, hidden_size, num_layers, dtype=jnp.float32):
    """PyTorch-style uniform(-1/sqrt(H), 1/sqrt(H)) init, deterministic."""
    k = 1.0 / np.sqrt(hidden_size)
    params = []
    for layer in range(num_layers):
        in_sz = input_size if layer == 0 else hidden_size
        key, k1, k2, k3, k4 = jax.random.split(key, 5)
        w_ih = jax.random.uniform(k1, (4 * hidden_size, in_sz), dtype, -k, k)
        w_hh = jax.random.uniform(k2, (4 * hidden_size, hidden_size), dtype, -k, k)
        b_ih = jax.random.uniform(k3, (4 * hidden_size,), dtype, -k, k)
        b_hh = jax.random.uniform(k4, (4 * hidden_size,), dtype, -k, k)
        params.append((w_ih, w_hh, b_ih, b_hh))
    return params


def lstm_forward(x, params, hidden_size):
    """x: [S, B, input_size] -> (output [S, B, H], (h_n [L,B,H], c_n [L,B,H]))."""
    s_len, batch, in0 = x.shape
    h_sz = hidden_size
    h_pad = _round_up(h_sz, 128)     # lane-dense gates / outputs
    b_pad = _round_up(batch, 8)      # sublane-aligned batch
    in0_pad = _round_up(in0, 128)
    g = 4 * h_pad

    n_cores = _num_parallel_cores()
    vmem_budget = _vmem_budget_bytes()
    tb = _pick_batch_block(b_pad, n_cores)
    t_blk = _pick_time_block(s_len, tb, max(in0_pad, h_pad), h_pad, vmem_budget)
    s_pad = _round_up(s_len, t_blk)

    layer_in = jnp.pad(
        x.astype(jnp.float32),
        ((0, s_pad - s_len), (0, b_pad - batch), (0, in0_pad - in0)),
    ).astype(jnp.bfloat16)

    h_ns, c_ns = [], []
    for li, (w_ih, w_hh, b_ih, b_hh) in enumerate(params):
        in_sz = w_ih.shape[1]
        in_pad = in0_pad if li == 0 else h_pad
        # Pad each of the 4 gate blocks of H to h_pad so gate k's columns
        # occupy [k*h_pad, k*h_pad + H); padded h/c channels stay exactly 0.
        w_ih_p = jnp.pad(w_ih.reshape(4, h_sz, in_sz),
                         ((0, 0), (0, h_pad - h_sz), (0, in_pad - in_sz)))
        w_hh_p = jnp.pad(w_hh.reshape(4, h_sz, h_sz),
                         ((0, 0), (0, h_pad - h_sz), (0, h_pad - h_sz)))
        bias_p = jnp.pad((b_ih + b_hh).reshape(4, h_sz),
                         ((0, 0), (0, h_pad - h_sz)))

        w_ih_t = w_ih_p.transpose(2, 0, 1).reshape(in_pad, g).astype(jnp.bfloat16)
        w_hh_t = w_hh_p.transpose(2, 0, 1).reshape(h_pad, g).astype(jnp.bfloat16)
        bias = bias_p.reshape(1, g).astype(jnp.float32)

        layer_in, h_n, c_n = _lstm_layer(
            layer_in, w_ih_t, w_hh_t, bias, hidden_pad=h_pad, seq_len=s_len,
            t_blk=t_blk, tb=tb, vmem_budget=vmem_budget)
        h_ns.append(h_n[:batch, :h_sz])
        c_ns.append(c_n[:batch, :h_sz])

    out = layer_in[:s_len, :batch, :h_sz].astype(jnp.float32)
    return out, (jnp.stack(h_ns, axis=0), jnp.stack(c_ns, axis=0))


# ----------------------------------------------------------------------------
# Pure-JAX reference (for correctness check).  matmul_dtype lets us mirror the
# kernel's bf16 matmul operands (f32 accumulation) for a tight comparison.
# ----------------------------------------------------------------------------
def lstm_forward_ref(x, params, hidden_size, matmul_dtype=jnp.float32):
    h_sz = hidden_size

    def mm(a, b):
        return jnp.dot(a.astype(matmul_dtype), b.astype(matmul_dtype),
                       preferred_element_type=jnp.float32)

    layer_in = x.astype(jnp.float32)
    h_ns, c_ns = [], []
    for (w_ih, w_hh, b_ih, b_hh) in params:
        batch = x.shape[1]
        h0 = jnp.zeros((batch, h_sz), jnp.float32)
        c0 = jnp.zeros((batch, h_sz), jnp.float32)

        def step(carry, x_t, w_ih=w_ih, w_hh=w_hh, b_ih=b_ih, b_hh=b_hh):
            h, c = carry
            gt = mm(x_t, w_ih.T) + b_ih + mm(h, w_hh.T) + b_hh
            i = jax.nn.sigmoid(gt[:, 0 * h_sz:1 * h_sz])
            f = jax.nn.sigmoid(gt[:, 1 * h_sz:2 * h_sz])
            gg = jnp.tanh(gt[:, 2 * h_sz:3 * h_sz])
            o = jax.nn.sigmoid(gt[:, 3 * h_sz:4 * h_sz])
            c = f * c + i * gg
            h = o * jnp.tanh(c)
            return (h, c), h

        (h_n, c_n), out = lax.scan(step, (h0, c0), layer_in)
        layer_in = out
        h_ns.append(h_n)
        c_ns.append(c_n)
    return layer_in, (jnp.stack(h_ns, 0), jnp.stack(c_ns, 0))


if __name__ == "__main__":
    # Small, LSTM-consistent shapes.
    seq_len, batch, input_size, hidden_size, num_layers = 8, 2, 16, 32, 2

    key = jax.random.PRNGKey(0)
    key, xkey, pkey = jax.random.split(key, 3)
    x = jax.random.normal(xkey, (seq_len, batch, input_size), jnp.float32)
    params = init_lstm_params(pkey, input_size, hidden_size, num_layers)

    fwd = jax.jit(lstm_forward, static_argnums=2)
    out, (h_n, c_n) = fwd(x, params, hidden_size)
    out = jax.block_until_ready(out)
    h_n = jax.block_until_ready(h_n)
    c_n = jax.block_until_ready(c_n)

    # Tight check vs. a reference that mirrors the kernel's bf16 matmul operands
    # (kernel outputs are additionally bf16-rounded on store).
    ref_out, (ref_h, ref_c) = lstm_forward_ref(x, params, hidden_size,
                                               matmul_dtype=jnp.bfloat16)
    np.testing.assert_allclose(np.asarray(out), np.asarray(ref_out),
                               rtol=3e-3, atol=3e-3)
    np.testing.assert_allclose(np.asarray(h_n), np.asarray(ref_h),
                               rtol=3e-3, atol=3e-3)
    np.testing.assert_allclose(np.asarray(c_n), np.asarray(ref_c),
                               rtol=3e-3, atol=3e-3)

    # Looser sanity check vs. the pure-f32 reference (bf16 operand rounding).
    f32_out, (f32_h, f32_c) = lstm_forward_ref(x, params, hidden_size)
    np.testing.assert_allclose(np.asarray(out), np.asarray(f32_out),
                               rtol=5e-2, atol=5e-2)
    np.testing.assert_allclose(np.asarray(h_n), np.asarray(f32_h),
                               rtol=5e-2, atol=5e-2)
    np.testing.assert_allclose(np.asarray(c_n), np.asarray(f32_c),
                               rtol=5e-2, atol=5e-2)

    print("KERNEL_OK")
</pallas_src>

<mosaic_0001>
module attributes {stable_mosaic.version = 11 : i64} {
  func.func @_lstm_layer_kernel(%arg0: i32, %arg1: i32, %arg2: memref<8x8x128xbf16, #tpu.memory_space<vmem>>, %arg3: memref<128x512xbf16, #tpu.memory_space<vmem>>, %arg4: memref<128x512xbf16, #tpu.memory_space<vmem>>, %arg5: memref<1x512xf32, #tpu.memory_space<vmem>>, %arg6: memref<8x8x128xbf16, #tpu.memory_space<vmem>>, %arg7: memref<8x128xf32, #tpu.memory_space<vmem>>, %arg8: memref<8x128xf32, #tpu.memory_space<vmem>>, %arg9: memref<8x8x512xf32, #tpu.memory_space<vmem>>) attributes {dimension_semantics = [#tpu.dimension_semantics<parallel>, #tpu.dimension_semantics<arbitrary>], iteration_bounds = array<i64: 1, 1>, scalar_prefetch = 0 : i64, scratch_operands = 1 : i64, tpu.core_type = #tpu.core_type<tc>, window_params = [{transform_indices = @transform_0, window_bounds = array<i64: 8, 8, 128>}, {pipeline_mode = #tpu.pipeline_mode<synchronous>, transform_indices = @transform_1, window_bounds = array<i64: 128, 512>}, {pipeline_mode = #tpu.pipeline_mode<synchronous>, transform_indices = @transform_2, window_bounds = array<i64: 128, 512>}, {pipeline_mode = #tpu.pipeline_mode<synchronous>, transform_indices = @transform_3, window_bounds = array<i64: 1, 512>}, {transform_indices = @transform_4, window_bounds = array<i64: 8, 8, 128>}, {transform_indices = @transform_5, window_bounds = array<i64: 8, 128>}, {transform_indices = @transform_6, window_bounds = array<i64: 8, 128>}]} {
    %c0_i32 = arith.constant 0 : i32
    %0 = arith.cmpi eq, %arg1, %c0_i32 : i32
    %1 = arith.extui %0 : i1 to i32
    %c0_i32_0 = arith.constant 0 : i32
    %2 = arith.cmpi ne, %1, %c0_i32_0 : i32
    scf.if %2 {
      %cst_99 = arith.constant 0.000000e+00 : f32
      %312 = vector.broadcast %cst_99 : f32 to vector<8x128xf32>
      %c0_100 = arith.constant 0 : index
      %c0_101 = arith.constant 0 : index
      %313 = vector.load %arg7[%c0_100, %c0_101] : memref<8x128xf32, #tpu.memory_space<vmem>>, vector<8x128xf32>
      tpu.vector_store %arg7[%c0_100, %c0_101], %312 {strides = array<i32>} : memref<8x128xf32, #tpu.memory_space<vmem>>, vector<8x128xf32>,
      %cst_102 = arith.constant 0.000000e+00 : f32
      %314 = vector.broadcast %cst_102 : f32 to vector<8x128xf32>
      %c0_103 = arith.constant 0 : index
      %c0_104 = arith.constant 0 : index
      %315 = vector.load %arg8[%c0_103, %c0_104] : memref<8x128xf32, #tpu.memory_space<vmem>>, vector<8x128xf32>
      tpu.vector_store %arg8[%c0_103, %c0_104], %314 {strides = array<i32>} : memref<8x128xf32, #tpu.memory_space<vmem>>, vector<8x128xf32>,
    } else {
    }
    %c0 = arith.constant 0 : index
    %c0_1 = arith.constant 0 : index
    %c0_2 = arith.constant 0 : index
    %3 = vector.load %arg2[%c0, %c0_1, %c0_2] : memref<8x8x128xbf16, #tpu.memory_space<vmem>>, vector<8x8x128xbf16>
    %4 = vector.shape_cast %3 : vector<8x8x128xbf16> to vector<64x128xbf16>
    %c0_3 = arith.constant 0 : index
    %c0_4 = arith.constant 0 : index
    %5 = vector.load %arg3[%c0_3, %c0_4] : memref<128x512xbf16, #tpu.memory_space<vmem>>, vector<128x512xbf16>
    %cst = arith.constant dense<0.000000e+00> : vector<64x512xf32>
    %6 = tpu.matmul %4, %5, %cst {dimension_numbers = #tpu.dot_dimension_numbers<[1], [0], [0], [1], [0, 0, 1, 1], [], []>} : vector<64x128xbf16>, vector<128x512xbf16>, vector<64x512xf32> -> vector<64x512xf32>
    %c0_5 = arith.constant 0 : index
    %c0_6 = arith.constant 0 : index
    %7 = vector.load %arg5[%c0_5, %c0_6] : memref<1x512xf32, #tpu.memory_space<vmem>>, vector<1x512xf32>
    %8 = vector.broadcast %7 : vector<1x512xf32> to vector<64x512xf32>
    %9 = arith.addf %6, %8 : vector<64x512xf32>
    %10 = vector.shape_cast %9 : vector<64x512xf32> to vector<8x8x512xf32>
    %c0_7 = arith.constant 0 : index
    %c0_8 = arith.constant 0 : index
    %c0_9 = arith.constant 0 : index
    %11 = vector.load %arg9[%c0_7, %c0_8, %c0_9] : memref<8x8x512xf32, #tpu.memory_space<vmem>>, vector<8x8x512xf32>
    tpu.vector_store %arg9[%c0_7, %c0_8, %c0_9], %10 {strides = array<i32>} : memref<8x8x512xf32, #tpu.memory_space<vmem>>, vector<8x8x512xf32>,
    %c0_10 = arith.constant 0 : index
    %c0_11 = arith.constant 0 : index
    %12 = vector.load %arg7[%c0_10, %c0_11] : memref<8x128xf32, #tpu.memory_space<vmem>>, vector<8x128xf32>
    %c0_12 = arith.constant 0 : index
    %c0_13 = arith.constant 0 : index
    %13 = vector.load %arg8[%c0_12, %c0_13] : memref<8x128xf32, #tpu.memory_space<vmem>>, vector<8x128xf32>
    %c0_i32_14 = arith.constant 0 : i32
    %14 = arith.index_cast %c0_i32_14 : i32 to index
    %c0_15 = arith.constant 0 : index
    %c0_16 = arith.constant 0 : index
    %15 = vector.load %arg9[%14, %c0_15, %c0_16] : memref<8x8x512xf32, #tpu.memory_space<vmem>>, vector<1x8x512xf32>
    %16 = vector.shape_cast %15 : vector<1x8x512xf32> to vector<8x512xf32>
    %17 = arith.truncf %12 : vector<8x128xf32> to vector<8x128xbf16>
    %c0_17 = arith.constant 0 : index
    %c0_18 = arith.constant 0 : index
    %18 = vector.load %arg4[%c0_17, %c0_18] : memref<128x512xbf16, #tpu.memory_space<vmem>>, vector<128x512xbf16>
    %cst_19 = arith.constant dense<0.000000e+00> : vector<8x512xf32>
    %19 = tpu.matmul %17, %18, %cst_19 {dimension_numbers = #tpu.dot_dimension_numbers<[1], [0], [0], [1], [0, 0, 1, 1], [], []>} : vector<8x128xbf16>, vector<128x512xbf16>, vector<8x512xf32> -> vector<8x512xf32>
    %20 = arith.addf %16, %19 : vector<8x512xf32>
    %21 = vector.extract_strided_slice %20 {offsets = [0, 0], sizes = [8, 128], strides = [1, 1]} : vector<8x512xf32> to vector<8x128xf32>
    %22 = arith.negf %21 : vector<8x128xf32>
    %23 = math.exp %22 : vector<8x128xf32>
    %cst_20 = arith.constant 1.000000e+00 : f32
    %24 = vector.broadcast %cst_20 : f32 to vector<8x128xf32>
    %25 = arith.addf %24, %23 : vector<8x128xf32>
    %26 = arith.divf %24, %25 : vector<8x128xf32>
    %27 = vector.extract_strided_slice %20 {offsets = [0, 128], sizes = [8, 128], strides = [1, 1]} : vector<8x512xf32> to vector<8x128xf32>
    %28 = arith.negf %27 : vector<8x128xf32>
    %29 = math.exp %28 : vector<8x128xf32>
    %cst_21 = arith.constant 1.000000e+00 : f32
    %30 = vector.broadcast %cst_21 : f32 to vector<8x128xf32>
    %31 = arith.addf %30, %29 : vector<8x128xf32>
    %32 = arith.divf %30, %31 : vector<8x128xf32>
    %33 = vector.extract_strided_slice %20 {offsets = [0, 256], sizes = [8, 128], strides = [1, 1]} : vector<8x512xf32> to vector<8x128xf32>
    %34 = math.tanh %33 : vector<8x128xf32>
    %35 = vector.extract_strided_slice %20 {offsets = [0, 384], sizes = [8, 128], strides = [1, 1]} : vector<8x512xf32> to vector<8x128xf32>
    %36 = arith.negf %35 : vector<8x128xf32>
    %37 = math.exp %36 : vector<8x128xf32>
    %cst_22 = arith.constant 1.000000e+00 : f32
    %38 = vector.broadcast %cst_22 : f32 to vector<8x128xf32>
    %39 = arith.addf %38, %37 : vector<8x128xf32>
    %40 = arith.divf %38, %39 : vector<8x128xf32>
    %41 = arith.mulf %32, %13 : vector<8x128xf32>
    %42 = arith.mulf %26, %34 : vector<8x128xf32>
    %43 = arith.addf %41, %42 : vector<8x128xf32>
    %44 = math.tanh %43 : vector<8x128xf32>
    %45 = arith.mulf %40, %44 : vector<8x128xf32>
    %46 = arith.truncf %45 : vector<8x128xf32> to vector<8x128xbf16>
    %47 = arith.index_cast %c0_i32_14 : i32 to index
    %c0_23 = arith.constant 0 : index
    %c0_24 = arith.constant 0 : index
    %48 = vector.load %arg6[%47, %c0_23, %c0_24] : memref<8x8x128xbf16, #tpu.memory_space<vmem>>, vector<1x8x128xbf16>
    %49 = vector.shape_cast %48 : vector<1x8x128xbf16> to vector<8x128xbf16>
    %50 = vector.shape_cast %46 : vector<8x128xbf16> to vector<1x8x128xbf16>
    tpu.vector_store %arg6[%47, %c0_23, %c0_24], %50 {strides = array<i32>} : memref<8x8x128xbf16, #tpu.memory_space<vmem>>, vector<1x8x128xbf16>,
    %c1_i32 = arith.constant 1 : i32
    %51 = arith.index_cast %c1_i32 : i32 to index
    %c0_25 = arith.constant 0 : index
    %c0_26 = arith.constant 0 : index
    %52 = vector.load %arg9[%51, %c0_25, %c0_26] : memref<8x8x512xf32, #tpu.memory_space<vmem>>, vector<1x8x512xf32>
    %53 = vector.shape_cast %52 : vector<1x8x512xf32> to vector<8x512xf32>
    %54 = arith.truncf %45 : vector<8x128xf32> to vector<8x128xbf16>
    %c0_27 = arith.constant 0 : index
    %c0_28 = arith.constant 0 : index
    %55 = vector.load %arg4[%c0_27, %c0_28] : memref<128x512xbf16, #tpu.memory_space<vmem>>, vector<128x512xbf16>
    %cst_29 = arith.constant dense<0.000000e+00> : vector<8x512xf32>
    %56 = tpu.matmul %54, %55, %cst_29 {dimension_numbers = #tpu.dot_dimension_numbers<[1], [0], [0], [1], [0, 0, 1, 1], [], []>} : vector<8x128xbf16>, vector<128x512xbf16>, vector<8x512xf32> -> vector<8x512xf32>
    %57 = arith.addf %53, %56 : vector<8x512xf32>
    %58 = vector.extract_strided_slice %57 {offsets = [0, 0], sizes = [8, 128], strides = [1, 1]} : vector<8x512xf32> to vector<8x128xf32>
    %59 = arith.negf %58 : vector<8x128xf32>
    %60 = math.exp %59 : vector<8x128xf32>
    %cst_30 = arith.constant 1.000000e+00 : f32
    %61 = vector.broadcast %cst_30 : f32 to vector<8x128xf32>
    %62 = arith.addf %61, %60 : vector<8x128xf32>
    %63 = arith.divf %61, %62 : vector<8x128xf32>
    %64 = vector.extract_strided_slice %57 {offsets = [0, 128], sizes = [8, 128], strides = [1, 1]} : vector<8x512xf32> to vector<8x128xf32>
    %65 = arith.negf %64 : vector<8x128xf32>
    %66 = math.exp %65 : vector<8x128xf32>
    %cst_31 = arith.constant 1.000000e+00 : f32
    %67 = vector.broadcast %cst_31 : f32 to vector<8x128xf32>
    %68 = arith.addf %67, %66 : vector<8x128xf32>
    %69 = arith.divf %67, %68 : vector<8x128xf32>
    %70 = vector.extract_strided_slice %57 {offsets = [0, 256], sizes = [8, 128], strides = [1, 1]} : vector<8x512xf32> to vector<8x128xf32>
    %71 = math.tanh %70 : vector<8x128xf32>
    %72 = vector.extract_strided_slice %57 {offsets = [0, 384], sizes = [8, 128], strides = [1, 1]} : vector<8x512xf32> to vector<8x128xf32>
    %73 = arith.negf %72 : vector<8x128xf32>
    %74 = math.exp %73 : vector<8x128xf32>
    %cst_32 = arith.constant 1.000000e+00 : f32
    %75 = vector.broadcast %cst_32 : f32 to vector<8x128xf32>
    %76 = arith.addf %75, %74 : vector<8x128xf32>
    %77 = arith.divf %75, %76 : vector<8x128xf32>
    %78 = arith.mulf %69, %43 : vector<8x128xf32>
    %79 = arith.mulf %63, %71 : vector<8x128xf32>
    %80 = arith.addf %78, %79 : vector<8x128xf32>
    %81 = math.tanh %80 : vector<8x128xf32>
    %82 = arith.mulf %77, %81 : vector<8x128xf32>
    %83 = arith.truncf %82 : vector<8x128xf32> to vector<8x128xbf16>
    %84 = arith.index_cast %c1_i32 : i32 to index
    %c0_33 = arith.constant 0 : index
    %c0_34 = arith.constant 0 : index
    %85 = vector.load %arg6[%84, %c0_33, %c0_34] : memref<8x8x128xbf16, #tpu.memory_space<vmem>>, vector<1x8x128xbf16>
    %86 = vector.shape_cast %85 : vector<1x8x128xbf16> to vector<8x128xbf16>
    %87 = vector.shape_cast %83 : vector<8x128xbf16> to vector<1x8x128xbf16>
    tpu.vector_store %arg6[%84, %c0_33, %c0_34], %87 {strides = array<i32>} : memref<8x8x128xbf16, #tpu.memory_space<vmem>>, vector<1x8x128xbf16>,
    %c2_i32 = arith.constant 2 : i32
    %88 = arith.index_cast %c2_i32 : i32 to index
    %c0_35 = arith.constant 0 : index
    %c0_36 = arith.constant 0 : index
    %89 = vector.load %arg9[%88, %c0_35, %c0_36] : memref<8x8x512xf32, #tpu.memory_space<vmem>>, vector<1x8x512xf32>
    %90 = vector.shape_cast %89 : vector<1x8x512xf32> to vector<8x512xf32>
    %91 = arith.truncf %82 : vector<8x128xf32> to vector<8x128xbf16>
    %c0_37 = arith.constant 0 : index
    %c0_38 = arith.constant 0 : index
    %92 = vector.load %arg4[%c0_37, %c0_38] : memref<128x512xbf16, #tpu.memory_space<vmem>>, vector<128x512xbf16>
    %cst_39 = arith.constant dense<0.000000e+00> : vector<8x512xf32>
    %93 = tpu.matmul %91, %92, %cst_39 {dimension_numbers = #tpu.dot_dimension_numbers<[1], [0], [0], [1], [0, 0, 1, 1], [], []>} : vector<8x128xbf16>, vector<128x512xbf16>, vector<8x512xf32> -> vector<8x512xf32>
    %94 = arith.addf %90, %93 : vector<8x512xf32>
    %95 = vector.extract_strided_slice %94 {offsets = [0, 0], sizes = [8, 128], strides = [1, 1]} : vector<8x512xf32> to vector<8x128xf32>
    %96 = arith.negf %95 : vector<8x128xf32>
    %97 = math.exp %96 : vector<8x128xf32>
    %cst_40 = arith.constant 1.000000e+00 : f32
    %98 = vector.broadcast %cst_40 : f32 to vector<8x128xf32>
    %99 = arith.addf %98, %97 : vector<8x128xf32>
    %100 = arith.divf %98, %99 : vector<8x128xf32>
    %101 = vector.extract_strided_slice %94 {offsets = [0, 128], sizes = [8, 128], strides = [1, 1]} : vector<8x512xf32> to vector<8x128xf32>
    %102 = arith.negf %101 : vector<8x128xf32>
    %103 = math.exp %102 : vector<8x128xf32>
    %cst_41 = arith.constant 1.000000e+00 : f32
    %104 = vector.broadcast %cst_41 : f32 to vector<8x128xf32>
    %105 = arith.addf %104, %103 : vector<8x128xf32>
    %106 = arith.divf %104, %105 : vector<8x128xf32>
    %107 = vector.extract_strided_slice %94 {offsets = [0, 256], sizes = [8, 128], strides = [1, 1]} : vector<8x512xf32> to vector<8x128xf32>
    %108 = math.tanh %107 : vector<8x128xf32>
    %109 = vector.extract_strided_slice %94 {offsets = [0, 384], sizes = [8, 128], strides = [1, 1]} : vector<8x512xf32> to vector<8x128xf32>
    %110 = arith.negf %109 : vector<8x128xf32>
    %111 = math.exp %110 : vector<8x128xf32>
    %cst_42 = arith.constant 1.000000e+00 : f32
    %112 = vector.broadcast %cst_42 : f32 to vector<8x128xf32>
    %113 = arith.addf %112, %111 : vector<8x128xf32>
    %114 = arith.divf %112, %113 : vector<8x128xf32>
    %115 = arith.mulf %106, %80 : vector<8x128xf32>
    %116 = arith.mulf %100, %108 : vector<8x128xf32>
    %117 = arith.addf %115, %116 : vector<8x128xf32>
    %118 = math.tanh %117 : vector<8x128xf32>
    %119 = arith.mulf %114, %118 : vector<8x128xf32>
    %120 = arith.truncf %119 : vector<8x128xf32> to vector<8x128xbf16>
    %121 = arith.index_cast %c2_i32 : i32 to index
    %c0_43 = arith.constant 0 : index
    %c0_44 = arith.constant 0 : index
    %122 = vector.load %arg6[%121, %c0_43, %c0_44] : memref<8x8x128xbf16, #tpu.memory_space<vmem>>, vector<1x8x128xbf16>
    %123 = vector.shape_cast %122 : vector<1x8x128xbf16> to vector<8x128xbf16>
    %124 = vector.shape_cast %120 : vector<8x128xbf16> to vector<1x8x128xbf16>
    tpu.vector_store %arg6[%121, %c0_43, %c0_44], %124 {strides = array<i32>} : memref<8x8x128xbf16, #tpu.memory_space<vmem>>, vector<1x8x128xbf16>,
    %c3_i32 = arith.constant 3 : i32
    %125 = arith.index_cast %c3_i32 : i32 to index
    %c0_45 = arith.constant 0 : index
    %c0_46 = arith.constant 0 : index
    %126 = vector.load %arg9[%125, %c0_45, %c0_46] : memref<8x8x512xf32, #tpu.memory_space<vmem>>, vector<1x8x512xf32>
    %127 = vector.shape_cast %126 : vector<1x8x512xf32> to vector<8x512xf32>
    %128 = arith.truncf %119 : vector<8x128xf32> to vector<8x128xbf16>
    %c0_47 = arith.constant 0 : index
    %c0_48 = arith.constant 0 : index
    %129 = vector.load %arg4[%c0_47, %c0_48] : memref<128x512xbf16, #tpu.memory_space<vmem>>, vector<128x512xbf16>
    %cst_49 = arith.constant dense<0.000000e+00> : vector<8x512xf32>
    %130 = tpu.matmul %128, %129, %cst_49 {dimension_numbers = #tpu.dot_dimension_numbers<[1], [0], [0], [1], [0, 0, 1, 1], [], []>} : vector<8x128xbf16>, vector<128x512xbf16>, vector<8x512xf32> -> vector<8x512xf32>
    %131 = arith.addf %127, %130 : vector<8x512xf32>
    %132 = vector.extract_strided_slice %131 {offsets = [0, 0], sizes = [8, 128], strides = [1, 1]} : vector<8x512xf32> to vector<8x128xf32>
    %133 = arith.negf %132 : vector<8x128xf32>
    %134 = math.exp %133 : vector<8x128xf32>
    %cst_50 = arith.constant 1.000000e+00 : f32
    %135 = vector.broadcast %cst_50 : f32 to vector<8x128xf32>
    %136 = arith.addf %135, %134 : vector<8x128xf32>
    %137 = arith.divf %135, %136 : vector<8x128xf32>
    %138 = vector.extract_strided_slice %131 {offsets = [0, 128], sizes = [8, 128], strides = [1, 1]} : vector<8x512xf32> to vector<8x128xf32>
    %139 = arith.negf %138 : vector<8x128xf32>
    %140 = math.exp %139 : vector<8x128xf32>
    %cst_51 = arith.constant 1.000000e+00 : f32
    %141 = vector.broadcast %cst_51 : f32 to vector<8x128xf32>
    %142 = arith.addf %141, %140 : vector<8x128xf32>
    %143 = arith.divf %141, %142 : vector<8x128xf32>
    %144 = vector.extract_strided_slice %131 {offsets = [0, 256], sizes = [8, 128], strides = [1, 1]} : vector<8x512xf32> to vector<8x128xf32>
    %145 = math.tanh %144 : vector<8x128xf32>
    %146 = vector.extract_strided_slice %131 {offsets = [0, 384], sizes = [8, 128], strides = [1, 1]} : vector<8x512xf32> to vector<8x128xf32>
    %147 = arith.negf %146 : vector<8x128xf32>
    %148 = math.exp %147 : vector<8x128xf32>
    %cst_52 = arith.constant 1.000000e+00 : f32
    %149 = vector.broadcast %cst_52 : f32 to vector<8x128xf32>
    %150 = arith.addf %149, %148 : vector<8x128xf32>
    %151 = arith.divf %149, %150 : vector<8x128xf32>
    %152 = arith.mulf %143, %117 : vector<8x128xf32>
    %153 = arith.mulf %137, %145 : vector<8x128xf32>
    %154 = arith.addf %152, %153 : vector<8x128xf32>
    %155 = math.tanh %154 : vector<8x128xf32>
    %156 = arith.mulf %151, %155 : vector<8x128xf32>
    %157 = arith.truncf %156 : vector<8x128xf32> to vector<8x128xbf16>
    %158 = arith.index_cast %c3_i32 : i32 to index
    %c0_53 = arith.constant 0 : index
    %c0_54 = arith.constant 0 : index
    %159 = vector.load %arg6[%158, %c0_53, %c0_54] : memref<8x8x128xbf16, #tpu.memory_space<vmem>>, vector<1x8x128xbf16>
    %160 = vector.shape_cast %159 : vector<1x8x128xbf16> to vector<8x128xbf16>
    %161 = vector.shape_cast %157 : vector<8x128xbf16> to vector<1x8x128xbf16>
    tpu.vector_store %arg6[%158, %c0_53, %c0_54], %161 {strides = array<i32>} : memref<8x8x128xbf16, #tpu.memory_space<vmem>>, vector<1x8x128xbf16>,
    %c4_i32 = arith.constant 4 : i32
    %162 = arith.index_cast %c4_i32 : i32 to index
    %c0_55 = arith.constant 0 : index
    %c0_56 = arith.constant 0 : index
    %163 = vector.load %arg9[%162, %c0_55, %c0_56] : memref<8x8x512xf32, #tpu.memory_space<vmem>>, vector<1x8x512xf32>
    %164 = vector.shape_cast %163 : vector<1x8x512xf32> to vector<8x512xf32>
    %165 = arith.truncf %156 : vector<8x128xf32> to vector<8x128xbf16>
    %c0_57 = arith.constant 0 : index
    %c0_58 = arith.constant 0 : index
    %166 = vector.load %arg4[%c0_57, %c0_58] : memref<128x512xbf16, #tpu.memory_space<vmem>>, vector<128x512xbf16>
    %cst_59 = arith.constant dense<0.000000e+00> : vector<8x512xf32>
    %167 = tpu.matmul %165, %166, %cst_59 {dimension_numbers = #tpu.dot_dimension_numbers<[1], [0], [0], [1], [0, 0, 1, 1], [], []>} : vector<8x128xbf16>, vector<128x512xbf16>, vector<8x512xf32> -> vector<8x512xf32>
    %168 = arith.addf %164, %167 : vector<8x512xf32>
    %169 = vector.extract_strided_slice %168 {offsets = [0, 0], sizes = [8, 128], strides = [1, 1]} : vector<8x512xf32> to vector<8x128xf32>
    %170 = arith.negf %169 : vector<8x128xf32>
    %171 = math.exp %170 : vector<8x128xf32>
    %cst_60 = arith.constant 1.000000e+00 : f32
    %172 = vector.broadcast %cst_60 : f32 to vector<8x128xf32>
    %173 = arith.addf %172, %171 : vector<8x128xf32>
    %174 = arith.divf %172, %173 : vector<8x128xf32>
    %175 = vector.extract_strided_slice %168 {offsets = [0, 128], sizes = [8, 128], strides = [1, 1]} : vector<8x512xf32> to vector<8x128xf32>
    %176 = arith.negf %175 : vector<8x128xf32>
    %177 = math.exp %176 : vector<8x128xf32>
    %cst_61 = arith.constant 1.000000e+00 : f32
    %178 = vector.broadcast %cst_61 : f32 to vector<8x128xf32>
    %179 = arith.addf %178, %177 : vector<8x128xf32>
    %180 = arith.divf %178, %179 : vector<8x128xf32>
    %181 = vector.extract_strided_slice %168 {offsets = [0, 256], sizes = [8, 128], strides = [1, 1]} : vector<8x512xf32> to vector<8x128xf32>
    %182 = math.tanh %181 : vector<8x128xf32>
    %183 = vector.extract_strided_slice %168 {offsets = [0, 384], sizes = [8, 128], strides = [1, 1]} : vector<8x512xf32> to vector<8x128xf32>
    %184 = arith.negf %183 : vector<8x128xf32>
    %185 = math.exp %184 : vector<8x128xf32>
    %cst_62 = arith.constant 1.000000e+00 : f32
    %186 = vector.broadcast %cst_62 : f32 to vector<8x128xf32>
    %187 = arith.addf %186, %185 : vector<8x128xf32>
    %188 = arith.divf %186, %187 : vector<8x128xf32>
    %189 = arith.mulf %180, %154 : vector<8x128xf32>
    %190 = arith.mulf %174, %182 : vector<8x128xf32>
    %191 = arith.addf %189, %190 : vector<8x128xf32>
    %192 = math.tanh %191 : vector<8x128xf32>
    %193 = arith.mulf %188, %192 : vector<8x128xf32>
    %194 = arith.truncf %193 : vector<8x128xf32> to vector<8x128xbf16>
    %195 = arith.index_cast %c4_i32 : i32 to index
    %c0_63 = arith.constant 0 : index
    %c0_64 = arith.constant 0 : index
    %196 = vector.load %arg6[%195, %c0_63, %c0_64] : memref<8x8x128xbf16, #tpu.memory_space<vmem>>, vector<1x8x128xbf16>
    %197 = vector.shape_cast %196 : vector<1x8x128xbf16> to vector<8x128xbf16>
    %198 = vector.shape_cast %194 : vector<8x128xbf16> to vector<1x8x128xbf16>
    tpu.vector_store %arg6[%195, %c0_63, %c0_64], %198 {strides = array<i32>} : memref<8x8x128xbf16, #tpu.memory_space<vmem>>, vector<1x8x128xbf16>,
    %c5_i32 = arith.constant 5 : i32
    %199 = arith.index_cast %c5_i32 : i32 to index
    %c0_65 = arith.constant 0 : index
    %c0_66 = arith.constant 0 : index
    %200 = vector.load %arg9[%199, %c0_65, %c0_66] : memref<8x8x512xf32, #tpu.memory_space<vmem>>, vector<1x8x512xf32>
    %201 = vector.shape_cast %200 : vector<1x8x512xf32> to vector<8x512xf32>
    %202 = arith.truncf %193 : vector<8x128xf32> to vector<8x128xbf16>
    %c0_67 = arith.constant 0 : index
    %c0_68 = arith.constant 0 : index
    %203 = vector.load %arg4[%c0_67, %c0_68] : memref<128x512xbf16, #tpu.memory_space<vmem>>, vector<128x512xbf16>
    %cst_69 = arith.constant dense<0.000000e+00> : vector<8x512xf32>
    %204 = tpu.matmul %202, %203, %cst_69 {dimension_numbers = #tpu.dot_dimension_numbers<[1], [0], [0], [1], [0, 0, 1, 1], [], []>} : vector<8x128xbf16>, vector<128x512xbf16>, vector<8x512xf32> -> vector<8x512xf32>
    %205 = arith.addf %201, %204 : vector<8x512xf32>
    %206 = vector.extract_strided_slice %205 {offsets = [0, 0], sizes = [8, 128], strides = [1, 1]} : vector<8x512xf32> to vector<8x128xf32>
    %207 = arith.negf %206 : vector<8x128xf32>
    %208 = math.exp %207 : vector<8x128xf32>
    %cst_70 = arith.constant 1.000000e+00 : f32
    %209 = vector.broadcast %cst_70 : f32 to vector<8x128xf32>
    %210 = arith.addf %209, %208 : vector<8x128xf32>
    %211 = arith.divf %209, %210 : vector<8x128xf32>
    %212 = vector.extract_strided_slice %205 {offsets = [0, 128], sizes = [8, 128], strides = [1, 1]} : vector<8x512xf32> to vector<8x128xf32>
    %213 = arith.negf %212 : vector<8x128xf32>
    %214 = math.exp %213 : vector<8x128xf32>
    %cst_71 = arith.constant 1.000000e+00 : f32
    %215 = vector.broadcast %cst_71 : f32 to vector<8x128xf32>
    %216 = arith.addf %215, %214 : vector<8x128xf32>
    %217 = arith.divf %215, %216 : vector<8x128xf32>
    %218 = vector.extract_strided_slice %205 {offsets = [0, 256], sizes = [8, 128], strides = [1, 1]} : vector<8x512xf32> to vector<8x128xf32>
    %219 = math.tanh %218 : vector<8x128xf32>
    %220 = vector.extract_strided_slice %205 {offsets = [0, 384], sizes = [8, 128], strides = [1, 1]} : vector<8x512xf32> to vector<8x128xf32>
    %221 = arith.negf %220 : vector<8x128xf32>
    %222 = math.exp %221 : vector<8x128xf32>
    %cst_72 = arith.constant 1.000000e+00 : f32
    %223 = vector.broadcast %cst_72 : f32 to vector<8x128xf32>
    %224 = arith.addf %223, %222 : vector<8x128xf32>
    %225 = arith.divf %223, %224 : vector<8x128xf32>
    %226 = arith.mulf %217, %191 : vector<8x128xf32>
    %227 = arith.mulf %211, %219 : vector<8x128xf32>
    %228 = arith.addf %226, %227 : vector<8x128xf32>
    %229 = math.tanh %228 : vector<8x128xf32>
    %230 = arith.mulf %225, %229 : vector<8x128xf32>
    %231 = arith.truncf %230 : vector<8x128xf32> to vector<8x128xbf16>
    %232 = arith.index_cast %c5_i32 : i32 to index
    %c0_73 = arith.constant 0 : index
    %c0_74 = arith.constant 0 : index
    %233 = vector.load %arg6[%232, %c0_73, %c0_74] : memref<8x8x128xbf16, #tpu.memory_space<vmem>>, vector<1x8x128xbf16>
    %234 = vector.shape_cast %233 : vector<1x8x128xbf16> to vector<8x128xbf16>
    %235 = vector.shape_cast %231 : vector<8x128xbf16> to vector<1x8x128xbf16>
    tpu.vector_store %arg6[%232, %c0_73, %c0_74], %235 {strides = array<i32>} : memref<8x8x128xbf16, #tpu.memory_space<vmem>>, vector<1x8x128xbf16>,
    %c6_i32 = arith.constant 6 : i32
    %236 = arith.index_cast %c6_i32 : i32 to index
    %c0_75 = arith.constant 0 : index
    %c0_76 = arith.constant 0 : index
    %237 = vector.load %arg9[%236, %c0_75, %c0_76] : memref<8x8x512xf32, #tpu.memory_space<vmem>>, vector<1x8x512xf32>
    %238 = vector.shape_cast %237 : vector<1x8x512xf32> to vector<8x512xf32>
    %239 = arith.truncf %230 : vector<8x128xf32> to vector<8x128xbf16>
    %c0_77 = arith.constant 0 : index
    %c0_78 = arith.constant 0 : index
    %240 = vector.load %arg4[%c0_77, %c0_78] : memref<128x512xbf16, #tpu.memory_space<vmem>>, vector<128x512xbf16>
    %cst_79 = arith.constant dense<0.000000e+00> : vector<8x512xf32>
    %241 = tpu.matmul %239, %240, %cst_79 {dimension_numbers = #tpu.dot_dimension_numbers<[1], [0], [0], [1], [0, 0, 1, 1], [], []>} : vector<8x128xbf16>, vector<128x512xbf16>, vector<8x512xf32> -> vector<8x512xf32>
    %242 = arith.addf %238, %241 : vector<8x512xf32>
    %243 = vector.extract_strided_slice %242 {offsets = [0, 0], sizes = [8, 128], strides = [1, 1]} : vector<8x512xf32> to vector<8x128xf32>
    %244 = arith.negf %243 : vector<8x128xf32>
    %245 = math.exp %244 : vector<8x128xf32>
    %cst_80 = arith.constant 1.000000e+00 : f32
    %246 = vector.broadcast %cst_80 : f32 to vector<8x128xf32>
    %247 = arith.addf %246, %245 : vector<8x128xf32>
    %248 = arith.divf %246, %247 : vector<8x128xf32>
    %249 = vector.extract_strided_slice %242 {offsets = [0, 128], sizes = [8, 128], strides = [1, 1]} : vector<8x512xf32> to vector<8x128xf32>
    %250 = arith.negf %249 : vector<8x128xf32>
    %251 = math.exp %250 : vector<8x128xf32>
    %cst_81 = arith.constant 1.000000e+00 : f32
    %252 = vector.broadcast %cst_81 : f32 to vector<8x128xf32>
    %253 = arith.addf %252, %251 : vector<8x128xf32>
    %254 = arith.divf %252, %253 : vector<8x128xf32>
    %255 = vector.extract_strided_slice %242 {offsets = [0, 256], sizes = [8, 128], strides = [1, 1]} : vector<8x512xf32> to vector<8x128xf32>
    %256 = math.tanh %255 : vector<8x128xf32>
    %257 = vector.extract_strided_slice %242 {offsets = [0, 384], sizes = [8, 128], strides = [1, 1]} : vector<8x512xf32> to vector<8x128xf32>
    %258 = arith.negf %257 : vector<8x128xf32>
    %259 = math.exp %258 : vector<8x128xf32>
    %cst_82 = arith.constant 1.000000e+00 : f32
    %260 = vector.broadcast %cst_82 : f32 to vector<8x128xf32>
    %261 = arith.addf %260, %259 : vector<8x128xf32>
    %262 = arith.divf %260, %261 : vector<8x128xf32>
    %263 = arith.mulf %254, %228 : vector<8x128xf32>
    %264 = arith.mulf %248, %256 : vector<8x128xf32>
    %265 = arith.addf %263, %264 : vector<8x128xf32>
    %266 = math.tanh %265 : vector<8x128xf32>
    %267 = arith.mulf %262, %266 : vector<8x128xf32>
    %268 = arith.truncf %267 : vector<8x128xf32> to vector<8x128xbf16>
    %269 = arith.index_cast %c6_i32 : i32 to index
    %c0_83 = arith.constant 0 : index
    %c0_84 = arith.constant 0 : index
    %270 = vector.load %arg6[%269, %c0_83, %c0_84] : memref<8x8x128xbf16, #tpu.memory_space<vmem>>, vector<1x8x128xbf16>
    %271 = vector.shape_cast %270 : vector<1x8x128xbf16> to vector<8x128xbf16>
    %272 = vector.shape_cast %268 : vector<8x128xbf16> to vector<1x8x128xbf16>
    tpu.vector_store %arg6[%269, %c0_83, %c0_84], %272 {strides = array<i32>} : memref<8x8x128xbf16, #tpu.memory_space<vmem>>, vector<1x8x128xbf16>,
    %c7_i32 = arith.constant 7 : i32
    %273 = arith.index_cast %c7_i32 : i32 to index
    %c0_85 = arith.constant 0 : index
    %c0_86 = arith.constant 0 : index
    %274 = vector.load %arg9[%273, %c0_85, %c0_86] : memref<8x8x512xf32, #tpu.memory_space<vmem>>, vector<1x8x512xf32>
    %275 = vector.shape_cast %274 : vector<1x8x512xf32> to vector<8x512xf32>
    %276 = arith.truncf %267 : vector<8x128xf32> to vector<8x128xbf16>
    %c0_87 = arith.constant 0 : index
    %c0_88 = arith.constant 0 : index
    %277 = vector.load %arg4[%c0_87, %c0_88] : memref<128x512xbf16, #tpu.memory_space<vmem>>, vector<128x512xbf16>
    %cst_89 = arith.constant dense<0.000000e+00> : vector<8x512xf32>
    %278 = tpu.matmul %276, %277, %cst_89 {dimension_numbers = #tpu.dot_dimension_numbers<[1], [0], [0], [1], [0, 0, 1, 1], [], []>} : vector<8x128xbf16>, vector<128x512xbf16>, vector<8x512xf32> -> vector<8x512xf32>
    %279 = arith.addf %275, %278 : vector<8x512xf32>
    %280 = vector.extract_strided_slice %279 {offsets = [0, 0], sizes = [8, 128], strides = [1, 1]} : vector<8x512xf32> to vector<8x128xf32>
    %281 = arith.negf %280 : vector<8x128xf32>
    %282 = math.exp %281 : vector<8x128xf32>
    %cst_90 = arith.constant 1.000000e+00 : f32
    %283 = vector.broadcast %cst_90 : f32 to vector<8x128xf32>
    %284 = arith.addf %283, %282 : vector<8x128xf32>
    %285 = arith.divf %283, %284 : vector<8x128xf32>
    %286 = vector.extract_strided_slice %279 {offsets = [0, 128], sizes = [8, 128], strides = [1, 1]} : vector<8x512xf32> to vector<8x128xf32>
    %287 = arith.negf %286 : vector<8x128xf32>
    %288 = math.exp %287 : vector<8x128xf32>
    %cst_91 = arith.constant 1.000000e+00 : f32
    %289 = vector.broadcast %cst_91 : f32 to vector<8x128xf32>
    %290 = arith.addf %289, %288 : vector<8x128xf32>
    %291 = arith.divf %289, %290 : vector<8x128xf32>
    %292 = vector.extract_strided_slice %279 {offsets = [0, 256], sizes = [8, 128], strides = [1, 1]} : vector<8x512xf32> to vector<8x128xf32>
    %293 = math.tanh %292 : vector<8x128xf32>
    %294 = vector.extract_strided_slice %279 {offsets = [0, 384], sizes = [8, 128], strides = [1, 1]} : vector<8x512xf32> to vector<8x128xf32>
    %295 = arith.negf %294 : vector<8x128xf32>
    %296 = math.exp %295 : vector<8x128xf32>
    %cst_92 = arith.constant 1.000000e+00 : f32
    %297 = vector.broadcast %cst_92 : f32 to vector<8x128xf32>
    %298 = arith.addf %297, %296 : vector<8x128xf32>
    %299 = arith.divf %297, %298 : vector<8x128xf32>
    %300 = arith.mulf %291, %265 : vector<8x128xf32>
    %301 = arith.mulf %285, %293 : vector<8x128xf32>
    %302 = arith.addf %300, %301 : vector<8x128xf32>
    %303 = math.tanh %302 : vector<8x128xf32>
    %304 = arith.mulf %299, %303 : vector<8x128xf32>
    %305 = arith.truncf %304 : vector<8x128xf32> to vector<8x128xbf16>
    %306 = arith.index_cast %c7_i32 : i32 to index
    %c0_93 = arith.constant 0 : index
    %c0_94 = arith.constant 0 : index
    %307 = vector.load %arg6[%306, %c0_93, %c0_94] : memref<8x8x128xbf16, #tpu.memory_space<vmem>>, vector<1x8x128xbf16>
    %308 = vector.shape_cast %307 : vector<1x8x128xbf16> to vector<8x128xbf16>
    %309 = vector.shape_cast %305 : vector<8x128xbf16> to vector<1x8x128xbf16>
    tpu.vector_store %arg6[%306, %c0_93, %c0_94], %309 {strides = array<i32>} : memref<8x8x128xbf16, #tpu.memory_space<vmem>>, vector<1x8x128xbf16>,
    %c8_i32 = arith.constant 8 : i32
    %c0_95 = arith.constant 0 : index
    %c0_96 = arith.constant 0 : index
    %310 = vector.load %arg7[%c0_95, %c0_96] : memref<8x128xf32, #tpu.memory_space<vmem>>, vector<8x128xf32>
    tpu.vector_store %arg7[%c0_95, %c0_96], %304 {strides = array<i32>} : memref<8x128xf32, #tpu.memory_space<vmem>>, vector<8x128xf32>,
    %c0_97 = arith.constant 0 : index
    %c0_98 = arith.constant 0 : index
    %311 = vector.load %arg8[%c0_97, %c0_98] : memref<8x128xf32, #tpu.memory_space<vmem>>, vector<8x128xf32>
    tpu.vector_store %arg8[%c0_97, %c0_98], %302 {strides = array<i32>} : memref<8x128xf32, #tpu.memory_space<vmem>>, vector<8x128xf32>,
    return
  }
  func.func @transform_0(%arg0: i32, %arg1: i32) -> (i32, i32, i32) {
    %c0_i32 = arith.constant 0 : i32
    %c0_i32_0 = arith.constant 0 : i32
    return %arg1, %arg0, %c0_i32 : i32, i32, i32
  }
  func.func @transform_1(%arg0: i32, %arg1: i32) -> (i32, i32) {
    %c0_i32 = arith.constant 0 : i32
    %c0_i32_0 = arith.constant 0 : i32
    %c0_i32_1 = arith.constant 0 : i32
    return %c0_i32, %c0_i32_0 : i32, i32
  }
  func.func @transform_2(%arg0: i32, %arg1: i32) -> (i32, i32) {
    %c0_i32 = arith.constant 0 : i32
    %c0_i32_0 = arith.constant 0 : i32
    %c0_i32_1 = arith.constant 0 : i32
    return %c0_i32, %c0_i32_0 : i32, i32
  }
  func.func @transform_3(%arg0: i32, %arg1: i32) -> (i32, i32) {
    %c0_i32 = arith.constant 0 : i32
    %c0_i32_0 = arith.constant 0 : i32
    %c0_i32_1 = arith.constant 0 : i32
    return %c0_i32, %c0_i32_0 : i32, i32
  }
  func.func @transform_4(%arg0: i32, %arg1: i32) -> (i32, i32, i32) {
    %c0_i32 = arith.constant 0 : i32
    %c0_i32_0 = arith.constant 0 : i32
    return %arg1, %arg0, %c0_i32 : i32, i32, i32
  }
  func.func @transform_5(%arg0: i32, %arg1: i32) -> (i32, i32) {
    %c0_i32 = arith.constant 0 : i32
    %c0_i32_0 = arith.constant 0 : i32
    return %arg0, %c0_i32 : i32, i32
  }
  func.func @transform_6(%arg0: i32, %arg1: i32) -> (i32, i32) {
    %c0_i32 = arith.constant 0 : i32
    %c0_i32_0 = arith.constant 0 : i32
    return %arg0, %c0_i32 : i32, i32
  }
}

</mosaic_0001>

<llo_original>
// kernel: lstm_forward.2
$region0: #{lstm_forward.2}
  #allocation0 [shape = 'u32[]', space=smem, size = 0x4, offset = 0x4, fixed_abs, tag = 'smem constant byte address 0x4 - core index']
  #allocation1 [shape = 'u32[144,128]{1,0:T(1,128)}', space=vmem, size = 0x12000, scoped, tag = 'internal scratch']
  #allocation2 [shape = 'f32[8,8,512]{2,1,0:T(8,128)}', space=vmem, size = 0x20000, scoped, tag = 'scratch operand']
  %s0 = inlined_call_operand.vmem [shape: bf16[8,8,128], index: 0, kind: input, shape index: {}]
  %s1 = inlined_call_operand.vmem [shape: bf16[128,512], index: 1, kind: input, shape index: {}]
  %s2 = inlined_call_operand.vmem [shape: bf16[128,512], index: 2, kind: input, shape index: {}]
  %s3 = inlined_call_operand.vmem [shape: f32[1,512], index: 3, kind: input, shape index: {}]
  %s4 = inlined_call_operand.vmem [shape: bf16[8,8,128], index: 4, kind: output, shape index: {0}]
  %s5 = inlined_call_operand.vmem [shape: f32[8,128], index: 5, kind: output, shape index: {1}]
  %s6 = inlined_call_operand.vmem [shape: f32[8,128], index: 6, kind: output, shape index: {2}]
  %7 = xla_tuple %s4, %s5, %s6
  %s8 = sld [smem:[#allocation0]]
  $region46: #{lstm_forward.2} parent=0
    _
  %s10 = ssub.s32 1, %s8
  %s11 = scalar_select 0, %s10, %s8
  // Predicated region
  $region2: #{lstm_forward.2} parent=0 // pred_check
    _
  $region3: #{lstm_forward.2} parent=0 // pred_check_branch
    %13 = sbr.rel (0) target = $region5
  $region4: #{lstm_forward.2} parent=0 // pred_region
    _
  $region5: #{lstm_forward.2} parent=0 // pred_fallthru
    _
  // Predicated region
  $region6: #{lstm_forward.2} parent=0 // pred_check
    _
  $region7: #{lstm_forward.2} parent=0 // pred_check_branch
    %15 = sbr.rel (0) target = $region9
  $region8: #{lstm_forward.2} parent=0 // pred_region
    _
  $region9: #{lstm_forward.2} parent=0 // pred_fallthru
    _
  // Predicated region
  $region10: #{lstm_forward.2} parent=0 // pred_check
    _
  $region11: #{lstm_forward.2} parent=0 // pred_check_branch
    %17 = sbr.rel (0) target = $region13
  $region12: #{lstm_forward.2} parent=0 // pred_region
    _
  $region13: #{lstm_forward.2} parent=0 // pred_fallthru
    _
  // Predicated region
  $region14: #{lstm_forward.2} parent=0 // pred_check
    _
  $region15: #{lstm_forward.2} parent=0 // pred_check_branch
    %19 = sbr.rel (0) target = $region17
  $region16: #{lstm_forward.2} parent=0 // pred_region
    _
  $region17: #{lstm_forward.2} parent=0 // pred_fallthru
    _
  %p21 = scmp.eq.s32.totalorder 0, 0
  // Predicated region
  $region18: #{lstm_forward.2} parent=0 // pred_check
    %p22 = pneg %p21
  $region19: #{lstm_forward.2} parent=0 // pred_check_branch
    %24 = sbr.rel (%p22) target = $region21
  $region20: #{lstm_forward.2} parent=0 // pred_region
    %25 = vst [vmem:[%s5] sm:$0xff] 0.0
    %26 = vst [vmem:[%s6] sm:$0xff] 0.0
  $region21: #{lstm_forward.2} parent=0 // pred_fallthru
    _
  %v27 = vld [vmem:[%s0] sm:$0xf]
  %v28 = vld [vmem:[%s0 + $0x4] sm:$0xf]
  %v29 = vld [vmem:[%s0 + $0x8] sm:$0xf]
  %v30 = vld [vmem:[%s0 + $0xc] sm:$0xf]
  %v31 = vld [vmem:[%s0 + $0x10] sm:$0xf]
  %v32 = vld [vmem:[%s0 + $0x14] sm:$0xf]
  %v33 = vld [vmem:[%s0 + $0x18] sm:$0xf]
  %v34 = vld [vmem:[%s0 + $0x1c] sm:$0xf]
  %v35 = vld [vmem:[%s1] sm:$0xff]
  %v36 = vld [vmem:[%s1 + $0x8] sm:$0xff]
  %v37 = vld [vmem:[%s1 + $0x10] sm:$0xff]
  %v38 = vld [vmem:[%s1 + $0x18] sm:$0xff]
  %v39 = vld [vmem:[%s1 + $0x20] sm:$0xff]
  %v40 = vld [vmem:[%s1 + $0x28] sm:$0xff]
  %v41 = vld [vmem:[%s1 + $0x30] sm:$0xff]
  %v42 = vld [vmem:[%s1 + $0x38] sm:$0xff]
  %v43 = vld [vmem:[%s1 + $0x40] sm:$0xff]
  %v44 = vld [vmem:[%s1 + $0x48] sm:$0xff]
  %v45 = vld [vmem:[%s1 + $0x50] sm:$0xff]
  %v46 = vld [vmem:[%s1 + $0x58] sm:$0xff]
  %v47 = vld [vmem:[%s1 + $0x60] sm:$0xff]
  %v48 = vld [vmem:[%s1 + $0x68] sm:$0xff]
  %v49 = vld [vmem:[%s1 + $0x70] sm:$0xff]
  %v50 = vld [vmem:[%s1 + $0x78] sm:$0xff]
  %v51 = vld [vmem:[%s1 + $0x80] sm:$0xff]
  %v52 = vld [vmem:[%s1 + $0x88] sm:$0xff]
  %v53 = vld [vmem:[%s1 + $0x90] sm:$0xff]
  %v54 = vld [vmem:[%s1 + $0x98] sm:$0xff]
  %v55 = vld [vmem:[%s1 + $0xa0] sm:$0xff]
  %v56 = vld [vmem:[%s1 + $0xa8] sm:$0xff]
  %v57 = vld [vmem:[%s1 + $0xb0] sm:$0xff]
  %v58 = vld [vmem:[%s1 + $0xb8] sm:$0xff]
  %v59 = vld [vmem:[%s1 + $0xc0] sm:$0xff]
  %v60 = vld [vmem:[%s1 + $0xc8] sm:$0xff]
  %v61 = vld [vmem:[%s1 + $0xd0] sm:$0xff]
  %v62 = vld [vmem:[%s1 + $0xd8] sm:$0xff]
  %v63 = vld [vmem:[%s1 + $0xe0] sm:$0xff]
  %v64 = vld [vmem:[%s1 + $0xe8] sm:$0xff]
  %v65 = vld [vmem:[%s1 + $0xf0] sm:$0xff]
  %v66 = vld [vmem:[%s1 + $0xf8] sm:$0xff]
  %v67 = vld [vmem:[%s3] sm:$0xf]
  %v69 = vlaneseq
  %v70 = vshrl.u32 %v69, 7
  %v71 = vsub.s32 0, %v70
  %v72 = vrot.slane %v67, %v71
  %v73 = vlaneseq
  %v74 = vshrl.u32 %v73, 7
  %v75 = vsub.s32 1, %v74
  %v76 = vrot.slane %v67, %v75
  %v77 = vlaneseq
  %v78 = vshrl.u32 %v77, 7
  %v79 = vsub.s32 2, %v78
  %v80 = vrot.slane %v67, %v79
  %v81 = vlaneseq
  %v82 = vshrl.u32 %v81, 7
  %v83 = vsub.s32 3, %v82
  %v84 = vrot.slane %v67, %v83
  %v97 = vunpack.c.l.b16 %v27
  %v98 = vunpack.c.l.b16 %v28
  %v99 = vunpack.c.l.b16 %v29
  %v100 = vunpack.c.l.b16 %v30
  %v101 = vunpack.c.l.b16 %v31
  %v102 = vunpack.c.l.b16 %v32
  %v103 = vunpack.c.l.b16 %v33
  %v104 = vunpack.c.l.b16 %v34
  %v105 = vpack.c.b16 %v98, %v97
  %v106 = vpack.c.b16 %v100, %v99
  %v107 = vpack.c.b16 %v102, %v101
  %v108 = vpack.c.b16 %v104, %v103
  %v145 = vunpack.c.l.b16 %v35
  %v146 = vunpack.c.h.b16 %v35
  %v147 = vunpack.c.l.b16 %v36
  %v148 = vunpack.c.h.b16 %v36
  %v149 = vunpack.c.l.b16 %v37
  %v150 = vunpack.c.h.b16 %v37
  %v151 = vunpack.c.l.b16 %v38
  %v152 = vunpack.c.h.b16 %v38
  %v153 = vunpack.c.l.b16 %v39
  %v154 = vunpack.c.h.b16 %v39
  %v155 = vunpack.c.l.b16 %v40
  %v156 = vunpack.c.h.b16 %v40
  %v157 = vunpack.c.l.b16 %v41
  %v158 = vunpack.c.h.b16 %v41
  %v159 = vunpack.c.l.b16 %v42
  %v160 = vunpack.c.h.b16 %v42
  %v161 = vunpack.c.l.b16 %v43
  %v162 = vunpack.c.h.b16 %v43
  %v163 = vunpack.c.l.b16 %v44
  %v164 = vunpack.c.h.b16 %v44
  %v165 = vunpack.c.l.b16 %v45
  %v166 = vunpack.c.h.b16 %v45
  %v167 = vunpack.c.l.b16 %v46
  %v168 = vunpack.c.h.b16 %v46
  %v169 = vunpack.c.l.b16 %v47
  %v170 = vunpack.c.h.b16 %v47
  %v171 = vunpack.c.l.b16 %v48
  %v172 = vunpack.c.h.b16 %v48
  %v173 = vunpack.c.l.b16 %v49
  %v174 = vunpack.c.h.b16 %v49
  %v175 = vunpack.c.l.b16 %v50
  %v176 = vunpack.c.h.b16 %v50
  %v177 = vunpack.c.l.b16 %v51
  %v178 = vunpack.c.h.b16 %v51
  %v179 = vunpack.c.l.b16 %v52
  %v180 = vunpack.c.h.b16 %v52
  %v181 = vunpack.c.l.b16 %v53
  %v182 = vunpack.c.h.b16 %v53
  %v183 = vunpack.c.l.b16 %v54
  %v184 = vunpack.c.h.b16 %v54
  %v185 = vunpack.c.l.b16 %v55
  %v186 = vunpack.c.h.b16 %v55
  %v187 = vunpack.c.l.b16 %v56
  %v188 = vunpack.c.h.b16 %v56
  %v189 = vunpack.c.l.b16 %v57
  %v190 = vunpack.c.h.b16 %v57
  %v191 = vunpack.c.l.b16 %v58
  %v192 = vunpack.c.h.b16 %v58
  %v193 = vunpack.c.l.b16 %v59
  %v194 = vunpack.c.h.b16 %v59
  %v195 = vunpack.c.l.b16 %v60
  %v196 = vunpack.c.h.b16 %v60
  %v197 = vunpack.c.l.b16 %v61
  %v198 = vunpack.c.h.b16 %v61
  %v199 = vunpack.c.l.b16 %v62
  %v200 = vunpack.c.h.b16 %v62
  %v201 = vunpack.c.l.b16 %v63
  %v202 = vunpack.c.h.b16 %v63
  %v203 = vunpack.c.l.b16 %v64
  %v204 = vunpack.c.h.b16 %v64
  %v205 = vunpack.c.l.b16 %v65
  %v206 = vunpack.c.h.b16 %v65
  %v207 = vunpack.c.l.b16 %v66
  %v208 = vunpack.c.h.b16 %v66
  %v209 = vpack.c.b16 %v149, %v145
  %v210 = vpack.c.b16 %v150, %v146
  %v211 = vpack.c.b16 %v151, %v147
  %v212 = vpack.c.b16 %v152, %v148
  %v213 = vpack.c.b16 %v157, %v153
  %v214 = vpack.c.b16 %v158, %v154
  %v215 = vpack.c.b16 %v159, %v155
  %v216 = vpack.c.b16 %v160, %v156
  %v217 = vpack.c.b16 %v165, %v161
  %v218 = vpack.c.b16 %v166, %v162
  %v219 = vpack.c.b16 %v167, %v163
  %v220 = vpack.c.b16 %v168, %v164
  %v221 = vpack.c.b16 %v173, %v169
  %v222 = vpack.c.b16 %v174, %v170
  %v223 = vpack.c.b16 %v175, %v171
  %v224 = vpack.c.b16 %v176, %v172
  %v225 = vpack.c.b16 %v181, %v177
  %v226 = vpack.c.b16 %v182, %v178
  %v227 = vpack.c.b16 %v183, %v179
  %v228 = vpack.c.b16 %v184, %v180
  %v229 = vpack.c.b16 %v189, %v185
  %v230 = vpack.c.b16 %v190, %v186
  %v231 = vpack.c.b16 %v191, %v187
  %v232 = vpack.c.b16 %v192, %v188
  %v233 = vpack.c.b16 %v197, %v193
  %v234 = vpack.c.b16 %v198, %v194
  %v235 = vpack.c.b16 %v199, %v195
  %v236 = vpack.c.b16 %v200, %v196
  %v237 = vpack.c.b16 %v205, %v201
  %v238 = vpack.c.b16 %v206, %v202
  %v239 = vpack.c.b16 %v207, %v203
  %v240 = vpack.c.b16 %v208, %v204
  %273 = vmatprep.subr.bf16.mxu0 %v210
  %274 = vmatpush1.bf16.msra.mxu0 %v209
  %275 = vmatprep.subr.bf16.mxu0 %v214
  %276 = vmatpush1.bf16.msra.mxu0 %v213
  %277 = vmatprep.subr.bf16.mxu0 %v218
  %278 = vmatpush1.bf16.msra.mxu0 %v217
  %279 = vmatprep.subr.bf16.mxu0 %v222
  %280 = vmatpush1.bf16.msra.mxu0 %v221
  %281 = vmatprep.subr.bf16.mxu0 %v226
  %282 = vmatpush1.bf16.msra.mxu0 %v225
  %283 = vmatprep.subr.bf16.mxu0 %v230
  %284 = vmatpush1.bf16.msra.mxu0 %v229
  %285 = vmatprep.subr.bf16.mxu0 %v234
  %286 = vmatpush1.bf16.msra.mxu0 %v233
  %287 = vmatprep.subr.bf16.mxu0 %v238
  %288 = vmatpush1.bf16.msra.mxu0 %v237
  %289 = vmatprep.subr.bf16.mxu0 0
  %290 = vmatpush1.bf16.msra.mxu0 0
  %291 = vmatprep.subr.bf16.mxu0 0
  %292 = vmatpush1.bf16.msra.mxu0 0
  %293 = vmatprep.subr.bf16.mxu0 0
  %294 = vmatpush1.bf16.msra.mxu0 0
  %295 = vmatprep.subr.bf16.mxu0 0
  %296 = vmatpush1.bf16.msra.mxu0 0
  %297 = vmatprep.subr.bf16.mxu0 0
  %298 = vmatpush1.bf16.msra.mxu0 0
  %299 = vmatprep.subr.bf16.mxu0 0
  %300 = vmatpush1.bf16.msra.mxu0 0
  %301 = vmatprep.subr.bf16.mxu0 0
  %302 = vmatpush1.bf16.msra.mxu0 0
  %303 = vmatprep.subr.bf16.mxu0 0
  %304 = vmatpush1.bf16.msra.mxu0 0
  %305 = vmatprep.mubr.bf16.mxu0 0
  %306 = vmatmul.mubr.bf16.gmra.mrb[0].mxu0 %v105
  %v307 = vpop.f32.mrb[0].mxu0
  %v308 = vadd.f32 %v72, %v307
  %v309 = vpop.f32.mrb[0].mxu0
  %v310 = vadd.f32 %v76, %v309
  %v311 = vpop.f32.mrb[0].mxu0
  %v312 = vadd.f32 %v72, %v311
  %v313 = vpop.f32.mrb[0].mxu0
  %v314 = vadd.f32 %v76, %v313
  %315 = vmatprep.mubr.bf16.mxu0 0
  %316 = vmatmul.mubr.bf16.gmra.mrb[0].mxu0 %v106
  %v317 = vpop.f32.mrb[0].mxu0
  %v318 = vadd.f32 %v72, %v317
  %v319 = vpop.f32.mrb[0].mxu0
  %v320 = vadd.f32 %v76, %v319
  %v321 = vpop.f32.mrb[0].mxu0
  %v322 = vadd.f32 %v72, %v321
  %v323 = vpop.f32.mrb[0].mxu0
  %v324 = vadd.f32 %v76, %v323
  %325 = vmatprep.mubr.bf16.mxu0 0
  %326 = vmatmul.mubr.bf16.gmra.mrb[0].mxu0 %v107
  %v327 = vpop.f32.mrb[0].mxu0
  %v328 = vadd.f32 %v72, %v327
  %v329 = vpop.f32.mrb[0].mxu0
  %v330 = vadd.f32 %v76, %v329
  %v331 = vpop.f32.mrb[0].mxu0
  %v332 = vadd.f32 %v72, %v331
  %v333 = vpop.f32.mrb[0].mxu0
  %v334 = vadd.f32 %v76, %v333
  %335 = vmatprep.mubr.bf16.mxu0 0
  %336 = vmatmul.mubr.bf16.gmra.mrb[0].mxu0 %v108
  %v337 = vpop.f32.mrb[0].mxu0
  %v338 = vadd.f32 %v72, %v337
  %v339 = vpop.f32.mrb[0].mxu0
  %v340 = vadd.f32 %v76, %v339
  %v341 = vpop.f32.mrb[0].mxu0
  %v342 = vadd.f32 %v72, %v341
  %v343 = vpop.f32.mrb[0].mxu0
  %v344 = vadd.f32 %v76, %v343
  %345 = vdwg.mxu0
  %346 = vmatprep.subr.bf16.mxu0 %v212
  %347 = vmatpush1.bf16.msra.mxu0 %v211
  %348 = vmatprep.subr.bf16.mxu0 %v216
  %349 = vmatpush1.bf16.msra.mxu0 %v215
  %350 = vmatprep.subr.bf16.mxu0 %v220
  %351 = vmatpush1.bf16.msra.mxu0 %v219
  %352 = vmatprep.subr.bf16.mxu0 %v224
  %353 = vmatpush1.bf16.msra.mxu0 %v223
  %354 = vmatprep.subr.bf16.mxu0 %v228
  %355 = vmatpush1.bf16.msra.mxu0 %v227
  %356 = vmatprep.subr.bf16.mxu0 %v232
  %357 = vmatpush1.bf16.msra.mxu0 %v231
  %358 = vmatprep.subr.bf16.mxu0 %v236
  %359 = vmatpush1.bf16.msra.mxu0 %v235
  %360 = vmatprep.subr.bf16.mxu0 %v240
  %361 = vmatpush1.bf16.msra.mxu0 %v239
  %362 = vmatprep.subr.bf16.mxu0 0
  %363 = vmatpush1.bf16.msra.mxu0 0
  %364 = vmatprep.subr.bf16.mxu0 0
  %365 = vmatpush1.bf16.msra.mxu0 0
  %366 = vmatprep.subr.bf16.mxu0 0
  %367 = vmatpush1.bf16.msra.mxu0 0
  %368 = vmatprep.subr.bf16.mxu0 0
  %369 = vmatpush1.bf16.msra.mxu0 0
  %370 = vmatprep.subr.bf16.mxu0 0
  %371 = vmatpush1.bf16.msra.mxu0 0
  %372 = vmatprep.subr.bf16.mxu0 0
  %373 = vmatpush1.bf16.msra.mxu0 0
  %374 = vmatprep.subr.bf16.mxu0 0
  %375 = vmatpush1.bf16.msra.mxu0 0
  %376 = vmatprep.subr.bf16.mxu0 0
  %377 = vmatpush1.bf16.msra.mxu0 0
  %378 = vmatprep.mubr.bf16.mxu0 0
  %379 = vmatmul.mubr.bf16.gmra.mrb[0].mxu0 %v105
  %v380 = vpop.f32.mrb[0].mxu0
  %v381 = vadd.f32 %v80, %v380
  %v382 = vpop.f32.mrb[0].mxu0
  %v383 = vadd.f32 %v84, %v382
  %v384 = vpop.f32.mrb[0].mxu0
  %v385 = vadd.f32 %v80, %v384
  %v386 = vpop.f32.mrb[0].mxu0
  %v387 = vadd.f32 %v84, %v386
  %388 = vmatprep.mubr.bf16.mxu0 0
  %389 = vmatmul.mubr.bf16.gmra.mrb[0].mxu0 %v106
  %v390 = vpop.f32.mrb[0].mxu0
  %v391 = vadd.f32 %v80, %v390
  %v392 = vpop.f32.mrb[0].mxu0
  %v393 = vadd.f32 %v84, %v392
  %v394 = vpop.f32.mrb[0].mxu0
  %v395 = vadd.f32 %v80, %v394
  %v396 = vpop.f32.mrb[0].mxu0
  %v397 = vadd.f32 %v84, %v396
  %398 = vmatprep.mubr.bf16.mxu0 0
  %399 = vmatmul.mubr.bf16.gmra.mrb[0].mxu0 %v107
  %v400 = vpop.f32.mrb[0].mxu0
  %v401 = vadd.f32 %v80, %v400
  %v402 = vpop.f32.mrb[0].mxu0
  %v403 = vadd.f32 %v84, %v402
  %v404 = vpop.f32.mrb[0].mxu0
  %v405 = vadd.f32 %v80, %v404
  %v406 = vpop.f32.mrb[0].mxu0
  %v407 = vadd.f32 %v84, %v406
  %408 = vmatprep.mubr.bf16.mxu0 0
  %409 = vmatmul.mubr.bf16.gmra.mrb[0].mxu0 %v108
  %v410 = vpop.f32.mrb[0].mxu0
  %v411 = vadd.f32 %v80, %v410
  %v412 = vpop.f32.mrb[0].mxu0
  %v413 = vadd.f32 %v84, %v412
  %v414 = vpop.f32.mrb[0].mxu0
  %v415 = vadd.f32 %v80, %v414
  %v416 = vpop.f32.mrb[0].mxu0
  %v417 = vadd.f32 %v84, %v416
  %418 = vdwg.mxu0
  %419 = vst [vmem:[#allocation2] sm:$0xff] %v308
  %420 = vst [vmem:[#allocation2 + $0x8] sm:$0xff] %v310
  %421 = vst [vmem:[#allocation2 + $0x10] sm:$0xff] %v381
  %422 = vst [vmem:[#allocation2 + $0x18] sm:$0xff] %v383
  %423 = vst [vmem:[#allocation2 + $0x20] sm:$0xff] %v312
  %424 = vst [vmem:[#allocation2 + $0x28] sm:$0xff] %v314
  %425 = vst [vmem:[#allocation2 + $0x30] sm:$0xff] %v385
  %426 = vst [vmem:[#allocation2 + $0x38] sm:$0xff] %v387
  %427 = vst [vmem:[#allocation2 + $0x40] sm:$0xff] %v318
  %428 = vst [vmem:[#allocation2 + $0x48] sm:$0xff] %v320
  %429 = vst [vmem:[#allocation2 + $0x50] sm:$0xff] %v391
  %430 = vst [vmem:[#allocation2 + $0x58] sm:$0xff] %v393
  %431 = vst [vmem:[#allocation2 + $0x60] sm:$0xff] %v322
  %432 = vst [vmem:[#allocation2 + $0x68] sm:$0xff] %v324
  %433 = vst [vmem:[#allocation2 + $0x70] sm:$0xff] %v395
  %434 = vst [vmem:[#allocation2 + $0x78] sm:$0xff] %v397
  %435 = vst [vmem:[#allocation2 + $0x80] sm:$0xff] %v328
  %436 = vst [vmem:[#allocation2 + $0x88] sm:$0xff] %v330
  %437 = vst [vmem:[#allocation2 + $0x90] sm:$0xff] %v401
  %438 = vst [vmem:[#allocation2 + $0x98] sm:$0xff] %v403
  %439 = vst [vmem:[#allocation2 + $0xa0] sm:$0xff] %v332
  %440 = vst [vmem:[#allocation2 + $0xa8] sm:$0xff] %v334
  %441 = vst [vmem:[#allocation2 + $0xb0] sm:$0xff] %v405
  %442 = vst [vmem:[#allocation2 + $0xb8] sm:$0xff] %v407
  %443 = vst [vmem:[#allocation2 + $0xc0] sm:$0xff] %v338
  %444 = vst [vmem:[#allocation2 + $0xc8] sm:$0xff] %v340
  %445 = vst [vmem:[#allocation2 + $0xd0] sm:$0xff] %v411
  %446 = vst [vmem:[#allocation2 + $0xd8] sm:$0xff] %v413
  %447 = vst [vmem:[#allocation2 + $0xe0] sm:$0xff] %v342
  %448 = vst [vmem:[#allocation2 + $0xe8] sm:$0xff] %v344
  %449 = vst [vmem:[#allocation2 + $0xf0] sm:$0xff] %v415
  %450 = vst [vmem:[#allocation2 + $0xf8] sm:$0xff] %v417
  %v451 = vld [vmem:[%s5] sm:$0xff]
  %v452 = vld [vmem:[%s6] sm:$0xff]
  %v453 = vld [vmem:[#allocation2] sm:$0xff]
  %v454 = vld [vmem:[#allocation2 + $0x8] sm:$0xff]
  %v455 = vld [vmem:[#allocation2 + $0x10] sm:$0xff]
  %v456 = vld [vmem:[#allocation2 + $0x18] sm:$0xff]
  %v457 = vpack.c.bf16 %v451, %v451
  %v458 = vld [vmem:[%s2] sm:$0xff]
  %v459 = vld [vmem:[%s2 + $0x8] sm:$0xff]
  %v460 = vld [vmem:[%s2 + $0x10] sm:$0xff]
  %v461 = vld [vmem:[%s2 + $0x18] sm:$0xff]
  %v462 = vld [vmem:[%s2 + $0x20] sm:$0xff]
  %v463 = vld [vmem:[%s2 + $0x28] sm:$0xff]
  %v464 = vld [vmem:[%s2 + $0x30] sm:$0xff]
  %v465 = vld [vmem:[%s2 + $0x38] sm:$0xff]
  %v466 = vld [vmem:[%s2 + $0x40] sm:$0xff]
  %v467 = vld [vmem:[%s2 + $0x48] sm:$0xff]
  %v468 = vld [vmem:[%s2 + $0x50] sm:$0xff]
  %v469 = vld [vmem:[%s2 + $0x58] sm:$0xff]
  %v470 = vld [vmem:[%s2 + $0x60] sm:$0xff]
  %v471 = vld [vmem:[%s2 + $0x68] sm:$0xff]
  %v472 = vld [vmem:[%s2 + $0x70] sm:$0xff]
  %v473 = vld [vmem:[%s2 + $0x78] sm:$0xff]
  %v474 = vld [vmem:[%s2 + $0x80] sm:$0xff]
  %v475 = vld [vmem:[%s2 + $0x88] sm:$0xff]
  %v476 = vld [vmem:[%s2 + $0x90] sm:$0xff]
  %v477 = vld [vmem:[%s2 + $0x98] sm:$0xff]
  %v478 = vld [vmem:[%s2 + $0xa0] sm:$0xff]
  %v479 = vld [vmem:[%s2 + $0xa8] sm:$0xff]
  %v480 = vld [vmem:[%s2 + $0xb0] sm:$0xff]
  %v481 = vld [vmem:[%s2 + $0xb8] sm:$0xff]
  %v482 = vld [vmem:[%s2 + $0xc0] sm:$0xff]
  %v483 = vld [vmem:[%s2 + $0xc8] sm:$0xff]
  %v484 = vld [vmem:[%s2 + $0xd0] sm:$0xff]
  %v485 = vld [vmem:[%s2 + $0xd8] sm:$0xff]
  %v486 = vld [vmem:[%s2 + $0xe0] sm:$0xff]
  %v487 = vld [vmem:[%s2 + $0xe8] sm:$0xff]
  %v488 = vld [vmem:[%s2 + $0xf0] sm:$0xff]
  %v489 = vld [vmem:[%s2 + $0xf8] sm:$0xff]
  %v522 = vunpack.c.l.b16 %v458
  %v523 = vunpack.c.h.b16 %v458
  %v524 = vunpack.c.l.b16 %v459
  %v525 = vunpack.c.h.b16 %v459
  %v526 = vunpack.c.l.b16 %v460
  %v527 = vunpack.c.h.b16 %v460
  %v528 = vunpack.c.l.b16 %v461
  %v529 = vunpack.c.h.b16 %v461
  %v530 = vunpack.c.l.b16 %v462
  %v531 = vunpack.c.h.b16 %v462
  %v532 = vunpack.c.l.b16 %v463
  %v533 = vunpack.c.h.b16 %v463
  %v534 = vunpack.c.l.b16 %v464
  %v535 = vunpack.c.h.b16 %v464
  %v536 = vunpack.c.l.b16 %v465
  %v537 = vunpack.c.h.b16 %v465
  %v538 = vunpack.c.l.b16 %v466
  %v539 = vunpack.c.h.b16 %v466
  %v540 = vunpack.c.l.b16 %v467
  %v541 = vunpack.c.h.b16 %v467
  %v542 = vunpack.c.l.b16 %v468
  %v543 = vunpack.c.h.b16 %v468
  %v544 = vunpack.c.l.b16 %v469
  %v545 = vunpack.c.h.b16 %v469
  %v546 = vunpack.c.l.b16 %v470
  %v547 = vunpack.c.h.b16 %v470
  %v548 = vunpack.c.l.b16 %v471
  %v549 = vunpack.c.h.b16 %v471
  %v550 = vunpack.c.l.b16 %v472
  %v551 = vunpack.c.h.b16 %v472
  %v552 = vunpack.c.l.b16 %v473
  %v553 = vunpack.c.h.b16 %v473
  %v554 = vunpack.c.l.b16 %v474
  %v555 = vunpack.c.h.b16 %v474
  %v556 = vunpack.c.l.b16 %v475
  %v557 = vunpack.c.h.b16 %v475
  %v558 = vunpack.c.l.b16 %v476
  %v559 = vunpack.c.h.b16 %v476
  %v560 = vunpack.c.l.b16 %v477
  %v561 = vunpack.c.h.b16 %v477
  %v562 = vunpack.c.l.b16 %v478
  %v563 = vunpack.c.h.b16 %v478
  %v564 = vunpack.c.l.b16 %v479
  %v565 = vunpack.c.h.b16 %v479
  %v566 = vunpack.c.l.b16 %v480
  %v567 = vunpack.c.h.b16 %v480
  %v568 = vunpack.c.l.b16 %v481
  %v569 = vunpack.c.h.b16 %v481
  %v570 = vunpack.c.l.b16 %v482
  %v571 = vunpack.c.h.b16 %v482
  %v572 = vunpack.c.l.b16 %v483
  %v573 = vunpack.c.h.b16 %v483
  %v574 = vunpack.c.l.b16 %v484
  %v575 = vunpack.c.h.b16 %v484
  %v576 = vunpack.c.l.b16 %v485
  %v577 = vunpack.c.h.b16 %v485
  %v578 = vunpack.c.l.b16 %v486
  %v579 = vunpack.c.h.b16 %v486
  %v580 = vunpack.c.l.b16 %v487
  %v581 = vunpack.c.h.b16 %v487
  %v582 = vunpack.c.l.b16 %v488
  %v583 = vunpack.c.h.b16 %v488
  %v584 = vunpack.c.l.b16 %v489
  %v585 = vunpack.c.h.b16 %v489
  %v586 = vpack.c.b16 %v526, %v522
  %v587 = vpack.c.b16 %v527, %v523
  %v588 = vpack.c.b16 %v528, %v524
  %v589 = vpack.c.b16 %v529, %v525
  %v590 = vpack.c.b16 %v534, %v530
  %v591 = vpack.c.b16 %v535, %v531
  %v592 = vpack.c.b16 %v536, %v532
  %v593 = vpack.c.b16 %v537, %v533
  %v594 = vpack.c.b16 %v542, %v538
  %v595 = vpack.c.b16 %v543, %v539
  %v596 = vpack.c.b16 %v544, %v540
  %v597 = vpack.c.b16 %v545, %v541
  %v598 = vpack.c.b16 %v550, %v546
  %v599 = vpack.c.b16 %v551, %v547
  %v600 = vpack.c.b16 %v552, %v548
  %v601 = vpack.c.b16 %v553, %v549
  %v602 = vpack.c.b16 %v558, %v554
  %v603 = vpack.c.b16 %v559, %v555
  %v604 = vpack.c.b16 %v560, %v556
  %v605 = vpack.c.b16 %v561, %v557
  %v606 = vpack.c.b16 %v566, %v562
  %v607 = vpack.c.b16 %v567, %v563
  %v608 = vpack.c.b16 %v568, %v564
  %v609 = vpack.c.b16 %v569, %v565
  %v610 = vpack.c.b16 %v574, %v570
  %v611 = vpack.c.b16 %v575, %v571
  %v612 = vpack.c.b16 %v576, %v572
  %v613 = vpack.c.b16 %v577, %v573
  %v614 = vpack.c.b16 %v582, %v578
  %v615 = vpack.c.b16 %v583, %v579
  %v616 = vpack.c.b16 %v584, %v580
  %v617 = vpack.c.b16 %v585, %v581
  %650 = vmatprep.subr.bf16.mxu0 %v587
  %651 = vmatpush1.bf16.msra.mxu0 %v586
  %652 = vmatprep.subr.bf16.mxu0 %v591
  %653 = vmatpush1.bf16.msra.mxu0 %v590
  %654 = vmatprep.subr.bf16.mxu0 %v595
  %655 = vmatpush1.bf16.msra.mxu0 %v594
  %656 = vmatprep.subr.bf16.mxu0 %v599
  %657 = vmatpush1.bf16.msra.mxu0 %v598
  %658 = vmatprep.subr.bf16.mxu0 %v603
  %659 = vmatpush1.bf16.msra.mxu0 %v602
  %660 = vmatprep.subr.bf16.mxu0 %v607
  %661 = vmatpush1.bf16.msra.mxu0 %v606
  %662 = vmatprep.subr.bf16.mxu0 %v611
  %663 = vmatpush1.bf16.msra.mxu0 %v610
  %664 = vmatprep.subr.bf16.mxu0 %v615
  %665 = vmatpush1.bf16.msra.mxu0 %v614
  %666 = vmatprep.subr.bf16.mxu0 0
  %667 = vmatpush1.bf16.msra.mxu0 0
  %668 = vmatprep.subr.bf16.mxu0 0
  %669 = vmatpush1.bf16.msra.mxu0 0
  %670 = vmatprep.subr.bf16.mxu0 0
  %671 = vmatpush1.bf16.msra.mxu0 0
  %672 = vmatprep.subr.bf16.mxu0 0
  %673 = vmatpush1.bf16.msra.mxu0 0
  %674 = vmatprep.subr.bf16.mxu0 0
  %675 = vmatpush1.bf16.msra.mxu0 0
  %676 = vmatprep.subr.bf16.mxu0 0
  %677 = vmatpush1.bf16.msra.mxu0 0
  %678 = vmatprep.subr.bf16.mxu0 0
  %679 = vmatpush1.bf16.msra.mxu0 0
  %680 = vmatprep.subr.bf16.mxu0 0
  %681 = vmatpush1.bf16.msra.mxu0 0
  %682 = vmatprep.mubr.bf16.mxu0 0
  %683 = vmatmul.mubr.bf16.gmra.mrb[0].mxu0 %v457
  %v684 = vpop.f32.mrb[0].mxu0
  %v685 = vadd.f32 0.0, %v684
  %v686 = vpop.f32.mrb[0].mxu0
  %v687 = vadd.f32 0.0, %v686
  %v688 = vpop.f32.mrb[0].mxu0
  %v689 = vpop.f32.mrb[0].mxu0
  %690 = vdwg.mxu0
  %691 = vmatprep.subr.bf16.mxu0 %v589
  %692 = vmatpush1.bf16.msra.mxu0 %v588
  %693 = vmatprep.subr.bf16.mxu0 %v593
  %694 = vmatpush1.bf16.msra.mxu0 %v592
  %695 = vmatprep.subr.bf16.mxu0 %v597
  %696 = vmatpush1.bf16.msra.mxu0 %v596
  %697 = vmatprep.subr.bf16.mxu0 %v601
  %698 = vmatpush1.bf16.msra.mxu0 %v600
  %699 = vmatprep.subr.bf16.mxu0 %v605
  %700 = vmatpush1.bf16.msra.mxu0 %v604
  %701 = vmatprep.subr.bf16.mxu0 %v609
  %702 = vmatpush1.bf16.msra.mxu0 %v608
  %703 = vmatprep.subr.bf16.mxu0 %v613
  %704 = vmatpush1.bf16.msra.mxu0 %v612
  %705 = vmatprep.subr.bf16.mxu0 %v617
  %706 = vmatpush1.bf16.msra.mxu0 %v616
  %707 = vmatprep.subr.bf16.mxu0 0
  %708 = vmatpush1.bf16.msra.mxu0 0
  %709 = vmatprep.subr.bf16.mxu0 0
  %710 = vmatpush1.bf16.msra.mxu0 0
  %711 = vmatprep.subr.bf16.mxu0 0
  %712 = vmatpush1.bf16.msra.mxu0 0
  %713 = vmatprep.subr.bf16.mxu0 0
  %714 = vmatpush1.bf16.msra.mxu0 0
  %715 = vmatprep.subr.bf16.mxu0 0
  %716 = vmatpush1.bf16.msra.mxu0 0
  %717 = vmatprep.subr.bf16.mxu0 0
  %718 = vmatpush1.bf16.msra.mxu0 0
  %719 = vmatprep.subr.bf16.mxu0 0
  %720 = vmatpush1.bf16.msra.mxu0 0
  %721 = vmatprep.subr.bf16.mxu0 0
  %722 = vmatpush1.bf16.msra.mxu0 0
  %723 = vmatprep.mubr.bf16.mxu0 0
  %724 = vmatmul.mubr.bf16.gmra.mrb[0].mxu0 %v457
  %v725 = vpop.f32.mrb[0].mxu0
  %v726 = vadd.f32 0.0, %v725
  %v727 = vpop.f32.mrb[0].mxu0
  %v728 = vadd.f32 0.0, %v727
  %v729 = vpop.f32.mrb[0].mxu0
  %v730 = vpop.f32.mrb[0].mxu0
  %731 = vdwg.mxu0
  %v732 = vadd.f32 %v453, %v685
  %v733 = vadd.f32 %v454, %v687
  %v734 = vadd.f32 %v455, %v726
  %v735 = vadd.f32 %v456, %v728
  %v736 = vxor.u32 %v732, 2147483648
  %v737 = vmul.f32 %v736, 1.442695
  %v738 = vpow.pop %v737
  %v739 = vadd.f32 %v738, 1.0
  %v740 = vrcp.pop %v739
  %v741 = vmul.f32 1.0, %v740
  %v742 = vxor.u32 %v733, 2147483648
  %v743 = vmul.f32 %v742, 1.442695
  %v744 = vpow.pop %v743
  %v745 = vadd.f32 %v744, 1.0
  %v746 = vrcp.pop %v745
  %v747 = vmul.f32 1.0, %v746
  %v748 = vtanh.pop %v734
  %v749 = vxor.u32 %v735, 2147483648
  %v750 = vmul.f32 %v749, 1.442695
  %v751 = vpow.pop %v750
  %v752 = vadd.f32 %v751, 1.0
  %v753 = vrcp.pop %v752
  %v754 = vmul.f32 1.0, %v753
  %v755 = vmul.f32 %v747, %v452
  %v756 = vmul.f32 %v741, %v748
  %v757 = vadd.f32 %v755, %v756
  %v758 = vtanh.pop %v757
  %v759 = vmul.f32 %v754, %v758
  %v760 = vpack.c.bf16 %v759, %v759
  %761 = vst [vmem:[%s4] sm:$0xf] %v760
  %s762 = scalar_lea.vmem [#allocation2], 32
  %v763 = vld [vmem:[%s762] sm:$0xff]
  %v764 = vld [vmem:[%s762 + $0x8] sm:$0xff]
  %v765 = vld [vmem:[%s762 + $0x10] sm:$0xff]
  %v766 = vld [vmem:[%s762 + $0x18] sm:$0xff]
  %v767 = vld [vmem:[%s2] sm:$0xff]
  %v768 = vld [vmem:[%s2 + $0x8] sm:$0xff]
  %v769 = vld [vmem:[%s2 + $0x10] sm:$0xff]
  %v770 = vld [vmem:[%s2 + $0x18] sm:$0xff]
  %v771 = vld [vmem:[%s2 + $0x20] sm:$0xff]
  %v772 = vld [vmem:[%s2 + $0x28] sm:$0xff]
  %v773 = vld [vmem:[%s2 + $0x30] sm:$0xff]
  %v774 = vld [vmem:[%s2 + $0x38] sm:$0xff]
  %v775 = vld [vmem:[%s2 + $0x40] sm:$0xff]
  %v776 = vld [vmem:[%s2 + $0x48] sm:$0xff]
  %v777 = vld [vmem:[%s2 + $0x50] sm:$0xff]
  %v778 = vld [vmem:[%s2 + $0x58] sm:$0xff]
  %v779 = vld [vmem:[%s2 + $0x60] sm:$0xff]
  %v780 = vld [vmem:[%s2 + $0x68] sm:$0xff]
  %v781 = vld [vmem:[%s2 + $0x70] sm:$0xff]
  %v782 = vld [vmem:[%s2 + $0x78] sm:$0xff]
  %v783 = vld [vmem:[%s2 + $0x80] sm:$0xff]
  %v784 = vld [vmem:[%s2 + $0x88] sm:$0xff]
  %v785 = vld [vmem:[%s2 + $0x90] sm:$0xff]
  %v786 = vld [vmem:[%s2 + $0x98] sm:$0xff]
  %v787 = vld [vmem:[%s2 + $0xa0] sm:$0xff]
  %v788 = vld [vmem:[%s2 + $0xa8] sm:$0xff]
  %v789 = vld [vmem:[%s2 + $0xb0] sm:$0xff]
  %v790 = vld [vmem:[%s2 + $0xb8] sm:$0xff]
  %v791 = vld [vmem:[%s2 + $0xc0] sm:$0xff]
  %v792 = vld [vmem:[%s2 + $0xc8] sm:$0xff]
  %v793 = vld [vmem:[%s2 + $0xd0] sm:$0xff]
  %v794 = vld [vmem:[%s2 + $0xd8] sm:$0xff]
  %v795 = vld [vmem:[%s2 + $0xe0] sm:$0xff]
  %v796 = vld [vmem:[%s2 + $0xe8] sm:$0xff]
  %v797 = vld [vmem:[%s2 + $0xf0] sm:$0xff]
  %v798 = vld [vmem:[%s2 + $0xf8] sm:$0xff]
  %v831 = vunpack.c.l.b16 %v767
  %v832 = vunpack.c.h.b16 %v767
  %v833 = vunpack.c.l.b16 %v768
  %v834 = vunpack.c.h.b16 %v768
  %v835 = vunpack.c.l.b16 %v769
  %v836 = vunpack.c.h.b16 %v769
  %v837 = vunpack.c.l.b16 %v770
  %v838 = vunpack.c.h.b16 %v770
  %v839 = vunpack.c.l.b16 %v771
  %v840 = vunpack.c.h.b16 %v771
  %v841 = vunpack.c.l.b16 %v772
  %v842 = vunpack.c.h.b16 %v772
  %v843 = vunpack.c.l.b16 %v773
  %v844 = vunpack.c.h.b16 %v773
  %v845 = vunpack.c.l.b16 %v774
  %v846 = vunpack.c.h.b16 %v774
  %v847 = vunpack.c.l.b16 %v775
  %v848 = vunpack.c.h.b16 %v775
  %v849 = vunpack.c.l.b16 %v776
  %v850 = vunpack.c.h.b16 %v776
  %v851 = vunpack.c.l.b16 %v777
  %v852 = vunpack.c.h.b16 %v777
  %v853 = vunpack.c.l.b16 %v778
  %v854 = vunpack.c.h.b16 %v778
  %v855 = vunpack.c.l.b16 %v779
  %v856 = vunpack.c.h.b16 %v779
  %v857 = vunpack.c.l.b16 %v780
  %v858 = vunpack.c.h.b16 %v780
  %v859 = vunpack.c.l.b16 %v781
  %v860 = vunpack.c.h.b16 %v781
  %v861 = vunpack.c.l.b16 %v782
  %v862 = vunpack.c.h.b16 %v782
  %v863 = vunpack.c.l.b16 %v783
  %v864 = vunpack.c.h.b16 %v783
  %v865 = vunpack.c.l.b16 %v784
  %v866 = vunpack.c.h.b16 %v784
  %v867 = vunpack.c.l.b16 %v785
  %v868 = vunpack.c.h.b16 %v785
  %v869 = vunpack.c.l.b16 %v786
  %v870 = vunpack.c.h.b16 %v786
  %v871 = vunpack.c.l.b16 %v787
  %v872 = vunpack.c.h.b16 %v787
  %v873 = vunpack.c.l.b16 %v788
  %v874 = vunpack.c.h.b16 %v788
  %v875 = vunpack.c.l.b16 %v789
  %v876 = vunpack.c.h.b16 %v789
  %v877 = vunpack.c.l.b16 %v790
  %v878 = vunpack.c.h.b16 %v790
  %v879 = vunpack.c.l.b16 %v791
  %v880 = vunpack.c.h.b16 %v791
  %v881 = vunpack.c.l.b16 %v792
  %v882 = vunpack.c.h.b16 %v792
  %v883 = vunpack.c.l.b16 %v793
  %v884 = vunpack.c.h.b16 %v793
  %v885 = vunpack.c.l.b16 %v794
  %v886 = vunpack.c.h.b16 %v794
  %v887 = vunpack.c.l.b16 %v795
  %v888 = vunpack.c.h.b16 %v795
  %v889 = vunpack.c.l.b16 %v796
  %v890 = vunpack.c.h.b16 %v796
  %v891 = vunpack.c.l.b16 %v797
  %v892 = vunpack.c.h.b16 %v797
  %v893 = vunpack.c.l.b16 %v798
  %v894 = vunpack.c.h.b16 %v798
  %v895 = vpack.c.b16 %v835, %v831
  %v896 = vpack.c.b16 %v836, %v832
  %v897 = vpack.c.b16 %v837, %v833
  %v898 = vpack.c.b16 %v838, %v834
  %v899 = vpack.c.b16 %v843, %v839
  %v900 = vpack.c.b16 %v844, %v840
  %v901 = vpack.c.b16 %v845, %v841
  %v902 = vpack.c.b16 %v846, %v842
  %v903 = vpack.c.b16 %v851, %v847
  %v904 = vpack.c.b16 %v852, %v848
  %v905 = vpack.c.b16 %v853, %v849
  %v906 = vpack.c.b16 %v854, %v850
  %v907 = vpack.c.b16 %v859, %v855
  %v908 = vpack.c.b16 %v860, %v856
  %v909 = vpack.c.b16 %v861, %v857
  %v910 = vpack.c.b16 %v862, %v858
  %v911 = vpack.c.b16 %v867, %v863
  %v912 = vpack.c.b16 %v868, %v864
  %v913 = vpack.c.b16 %v869, %v865
  %v914 = vpack.c.b16 %v870, %v866
  %v915 = vpack.c.b16 %v875, %v871
  %v916 = vpack.c.b16 %v876, %v872
  %v917 = vpack.c.b16 %v877, %v873
  %v918 = vpack.c.b16 %v878, %v874
  %v919 = vpack.c.b16 %v883, %v879
  %v920 = vpack.c.b16 %v884, %v880
  %v921 = vpack.c.b16 %v885, %v881
  %v922 = vpack.c.b16 %v886, %v882
  %v923 = vpack.c.b16 %v891, %v887
  %v924 = vpack.c.b16 %v892, %v888
  %v925 = vpack.c.b16 %v893, %v889
  %v926 = vpack.c.b16 %v894, %v890
  %959 = vmatprep.subr.bf16.mxu0 %v896
  %960 = vmatpush1.bf16.msra.mxu0 %v895
  %961 = vmatprep.subr.bf16.mxu0 %v900
  %962 = vmatpush1.bf16.msra.mxu0 %v899
  %963 = vmatprep.subr.bf16.mxu0 %v904
  %964 = vmatpush1.bf16.msra.mxu0 %v903
  %965 = vmatprep.subr.bf16.mxu0 %v908
  %966 = vmatpush1.bf16.msra.mxu0 %v907
  %967 = vmatprep.subr.bf16.mxu0 %v912
  %968 = vmatpush1.bf16.msra.mxu0 %v911
  %969 = vmatprep.subr.bf16.mxu0 %v916
  %970 = vmatpush1.bf16.msra.mxu0 %v915
  %971 = vmatprep.subr.bf16.mxu0 %v920
  %972 = vmatpush1.bf16.msra.mxu0 %v919
  %973 = vmatprep.subr.bf16.mxu0 %v924
  %974 = vmatpush1.bf16.msra.mxu0 %v923
  %975 = vmatprep.subr.bf16.mxu0 0
  %976 = vmatpush1.bf16.msra.mxu0 0
  %977 = vmatprep.subr.bf16.mxu0 0
  %978 = vmatpush1.bf16.msra.mxu0 0
  %979 = vmatprep.subr.bf16.mxu0 0
  %980 = vmatpush1.bf16.msra.mxu0 0
  %981 = vmatprep.subr.bf16.mxu0 0
  %982 = vmatpush1.bf16.msra.mxu0 0
  %983 = vmatprep.subr.bf16.mxu0 0
  %984 = vmatpush1.bf16.msra.mxu0 0
  %985 = vmatprep.subr.bf16.mxu0 0
  %986 = vmatpush1.bf16.msra.mxu0 0
  %987 = vmatprep.subr.bf16.mxu0 0
  %988 = vmatpush1.bf16.msra.mxu0 0
  %989 = vmatprep.subr.bf16.mxu0 0
  %990 = vmatpush1.bf16.msra.mxu0 0
  %991 = vmatprep.mubr.bf16.mxu0 0
  %992 = vmatmul.mubr.bf16.gmra.mrb[0].mxu0 %v760
  %v993 = vpop.f32.mrb[0].mxu0
  %v994 = vadd.f32 0.0, %v993
  %v995 = vpop.f32.mrb[0].mxu0
  %v996 = vadd.f32 0.0, %v995
  %v997 = vpop.f32.mrb[0].mxu0
  %v998 = vpop.f32.mrb[0].mxu0
  %999 = vdwg.mxu0
  %1000 = vmatprep.subr.bf16.mxu0 %v898
  %1001 = vmatpush1.bf16.msra.mxu0 %v897
  %1002 = vmatprep.subr.bf16.mxu0 %v902
  %1003 = vmatpush1.bf16.msra.mxu0 %v901
  %1004 = vmatprep.subr.bf16.mxu0 %v906
  %1005 = vmatpush1.bf16.msra.mxu0 %v905
  %1006 = vmatprep.subr.bf16.mxu0 %v910
  %1007 = vmatpush1.bf16.msra.mxu0 %v909
  %1008 = vmatprep.subr.bf16.mxu0 %v914
  %1009 = vmatpush1.bf16.msra.mxu0 %v913
  %1010 = vmatprep.subr.bf16.mxu0 %v918
  %1011 = vmatpush1.bf16.msra.mxu0 %v917
  %1012 = vmatprep.subr.bf16.mxu0 %v922
  %1013 = vmatpush1.bf16.msra.mxu0 %v921
  %1014 = vmatprep.subr.bf16.mxu0 %v926
  %1015 = vmatpush1.bf16.msra.mxu0 %v925
  %1016 = vmatprep.subr.bf16.mxu0 0
  %1017 = vmatpush1.bf16.msra.mxu0 0
  %1018 = vmatprep.subr.bf16.mxu0 0
  %1019 = vmatpush1.bf16.msra.mxu0 0
  %1020 = vmatprep.subr.bf16.mxu0 0
  %1021 = vmatpush1.bf16.msra.mxu0 0
  %1022 = vmatprep.subr.bf16.mxu0 0
  %1023 = vmatpush1.bf16.msra.mxu0 0
  %1024 = vmatprep.subr.bf16.mxu0 0
  %1025 = vmatpush1.bf16.msra.mxu0 0
  %1026 = vmatprep.subr.bf16.mxu0 0
  %1027 = vmatpush1.bf16.msra.mxu0 0
  %1028 = vmatprep.subr.bf16.mxu0 0
  %1029 = vmatpush1.bf16.msra.mxu0 0
  %1030 = vmatprep.subr.bf16.mxu0 0
  %1031 = vmatpush1.bf16.msra.mxu0 0
  %1032 = vmatprep.mubr.bf16.mxu0 0
  %1033 = vmatmul.mubr.bf16.gmra.mrb[0].mxu0 %v760
  %v1034 = vpop.f32.mrb[0].mxu0
  %v1035 = vadd.f32 0.0, %v1034
  %v1036 = vpop.f32.mrb[0].mxu0
  %v1037 = vadd.f32 0.0, %v1036
  %v1038 = vpop.f32.mrb[0].mxu0
  %v1039 = vpop.f32.mrb[0].mxu0
  %1040 = vdwg.mxu0
  %v1041 = vadd.f32 %v763, %v994
  %v1042 = vadd.f32 %v764, %v996
  %v1043 = vadd.f32 %v765, %v1035
  %v1044 = vadd.f32 %v766, %v1037
  %v1045 = vxor.u32 %v1041, 2147483648
  %v1046 = vmul.f32 %v1045, 1.442695
  %v1047 = vpow.pop %v1046
  %v1048 = vadd.f32 %v1047, 1.0
  %v1049 = vrcp.pop %v1048
  %v1050 = vmul.f32 1.0, %v1049
  %v1051 = vxor.u32 %v1042, 2147483648
  %v1052 = vmul.f32 %v1051, 1.442695
  %v1053 = vpow.pop %v1052
  %v1054 = vadd.f32 %v1053, 1.0
  %v1055 = vrcp.pop %v1054
  %v1056 = vmul.f32 1.0, %v1055
  %v1057 = vtanh.pop %v1043
  %v1058 = vxor.u32 %v1044, 2147483648
  %v1059 = vmul.f32 %v1058, 1.442695
  %v1060 = vpow.pop %v1059
  %v1061 = vadd.f32 %v1060, 1.0
  %v1062 = vrcp.pop %v1061
  %v1063 = vmul.f32 1.0, %v1062
  %v1064 = vmul.f32 %v1056, %v757
  %v1065 = vmul.f32 %v1050, %v1057
  %v1066 = vadd.f32 %v1064, %v1065
  %v1067 = vtanh.pop %v1066
  %v1068 = vmul.f32 %v1063, %v1067
  %v1069 = vpack.c.bf16 %v1068, %v1068
  %s1070 = scalar_lea.vmem %s4, 4
  %1071 = vst [vmem:[%s1070] sm:$0xf] %v1069
  %s1072 = scalar_lea.vmem [#allocation2], 64
  %v1073 = vld [vmem:[%s1072] sm:$0xff]
  %v1074 = vld [vmem:[%s1072 + $0x8] sm:$0xff]
  %v1075 = vld [vmem:[%s1072 + $0x10] sm:$0xff]
  %v1076 = vld [vmem:[%s1072 + $0x18] sm:$0xff]
  %v1077 = vld [vmem:[%s2] sm:$0xff]
  %v1078 = vld [vmem:[%s2 + $0x8] sm:$0xff]
  %v1079 = vld [vmem:[%s2 + $0x10] sm:$0xff]
  %v1080 = vld [vmem:[%s2 + $0x18] sm:$0xff]
  %v1081 = vld [vmem:[%s2 + $0x20] sm:$0xff]
  %v1082 = vld [vmem:[%s2 + $0x28] sm:$0xff]
  %v1083 = vld [vmem:[%s2 + $0x30] sm:$0xff]
  %v1084 = vld [vmem:[%s2 + $0x38] sm:$0xff]
  %v1085 = vld [vmem:[%s2 + $0x40] sm:$0xff]
  %v1086 = vld [vmem:[%s2 + $0x48] sm:$0xff]
  %v1087 = vld [vmem:[%s2 + $0x50] sm:$0xff]
  %v1088 = vld [vmem:[%s2 + $0x58] sm:$0xff]
  %v1089 = vld [vmem:[%s2 + $0x60] sm:$0xff]
  %v1090 = vld [vmem:[%s2 + $0x68] sm:$0xff]
  %v1091 = vld [vmem:[%s2 + $0x70] sm:$0xff]
  %v1092 = vld [vmem:[%s2 + $0x78] sm:$0xff]
  %v1093 = vld [vmem:[%s2 + $0x80] sm:$0xff]
  %v1094 = vld [vmem:[%s2 + $0x88] sm:$0xff]
  %v1095 = vld [vmem:[%s2 + $0x90] sm:$0xff]
  %v1096 = vld [vmem:[%s2 + $0x98] sm:$0xff]
  %v1097 = vld [vmem:[%s2 + $0xa0] sm:$0xff]
  %v1098 = vld [vmem:[%s2 + $0xa8] sm:$0xff]
  %v1099 = vld [vmem:[%s2 + $0xb0] sm:$0xff]
  %v1100 = vld [vmem:[%s2 + $0xb8] sm:$0xff]
  %v1101 = vld [vmem:[%s2 + $0xc0] sm:$0xff]
  %v1102 = vld [vmem:[%s2 + $0xc8] sm:$0xff]
  %v1103 = vld [vmem:[%s2 + $0xd0] sm:$0xff]
  %v1104 = vld [vmem:[%s2 + $0xd8] sm:$0xff]
  %v1105 = vld [vmem:[%s2 + $0xe0] sm:$0xff]
  %v1106 = vld [vmem:[%s2 + $0xe8] sm:$0xff]
  %v1107 = vld [vmem:[%s2 + $0xf0] sm:$0xff]
  %v1108 = vld [vmem:[%s2 + $0xf8] sm:$0xff]
  %v1141 = vunpack.c.l.b16 %v1077
  %v1142 = vunpack.c.h.b16 %v1077
  %v1143 = vunpack.c.l.b16 %v1078
  %v1144 = vunpack.c.h.b16 %v1078
  %v1145 = vunpack.c.l.b16 %v1079
  %v1146 = vunpack.c.h.b16 %v1079
  %v1147 = vunpack.c.l.b16 %v1080
  %v1148 = vunpack.c.h.b16 %v1080
  %v1149 = vunpack.c.l.b16 %v1081
  %v1150 = vunpack.c.h.b16 %v1081
  %v1151 = vunpack.c.l.b16 %v1082
  %v1152 = vunpack.c.h.b16 %v1082
  %v1153 = vunpack.c.l.b16 %v1083
  %v1154 = vunpack.c.h.b16 %v1083
  %v1155 = vunpack.c.l.b16 %v1084
  %v1156 = vunpack.c.h.b16 %v1084
  %v1157 = vunpack.c.l.b16 %v1085
  %v1158 = vunpack.c.h.b16 %v1085
  %v1159 = vunpack.c.l.b16 %v1086
  %v1160 = vunpack.c.h.b16 %v1086
  %v1161 = vunpack.c.l.b16 %v1087
  %v1162 = vunpack.c.h.b16 %v1087
  %v1163 = vunpack.c.l.b16 %v1088
  %v1164 = vunpack.c.h.b16 %v1088
  %v1165 = vunpack.c.l.b16 %v1089
  %v1166 = vunpack.c.h.b16 %v1089
  %v1167 = vunpack.c.l.b16 %v1090
  %v1168 = vunpack.c.h.b16 %v1090
  %v1169 = vunpack.c.l.b16 %v1091
  %v1170 = vunpack.c.h.b16 %v1091
  %v1171 = vunpack.c.l.b16 %v1092
  %v1172 = vunpack.c.h.b16 %v1092
  %v1173 = vunpack.c.l.b16 %v1093
  %v1174 = vunpack.c.h.b16 %v1093
  %v1175 = vunpack.c.l.b16 %v1094
  %v1176 = vunpack.c.h.b16 %v1094
  %v1177 = vunpack.c.l.b16 %v1095
  %v1178 = vunpack.c.h.b16 %v1095
  %v1179 = vunpack.c.l.b16 %v1096
  %v1180 = vunpack.c.h.b16 %v1096
  %v1181 = vunpack.c.l.b16 %v1097
  %v1182 = vunpack.c.h.b16 %v1097
  %v1183 = vunpack.c.l.b16 %v1098
  %v1184 = vunpack.c.h.b16 %v1098
  %v1185 = vunpack.c.l.b16 %v1099
  %v1186 = vunpack.c.h.b16 %v1099
  %v1187 = vunpack.c.l.b16 %v1100
  %v1188 = vunpack.c.h.b16 %v1100
  %v1189 = vunpack.c.l.b16 %v1101
  %v1190 = vunpack.c.h.b16 %v1101
  %v1191 = vunpack.c.l.b16 %v1102
  %v1192 = vunpack.c.h.b16 %v1102
  %v1193 = vunpack.c.l.b16 %v1103
  %v1194 = vunpack.c.h.b16 %v1103
  %v1195 = vunpack.c.l.b16 %v1104
  %v1196 = vunpack.c.h.b16 %v1104
  %v1197 = vunpack.c.l.b16 %v1105
  %v1198 = vunpack.c.h.b16 %v1105
  %v1199 = vunpack.c.l.b16 %v1106
  %v1200 = vunpack.c.h.b16 %v1106
  %v1201 = vunpack.c.l.b16 %v1107
  %v1202 = vunpack.c.h.b16 %v1107
  %v1203 = vunpack.c.l.b16 %v1108
  %v1204 = vunpack.c.h.b16 %v1108
  %v1205 = vpack.c.b16 %v1145, %v1141
  %v1206 = vpack.c.b16 %v1146, %v1142
  %v1207 = vpack.c.b16 %v1147, %v1143
  %v1208 = vpack.c.b16 %v1148, %v1144
  %v1209 = vpack.c.b16 %v1153, %v1149
  %v1210 = vpack.c.b16 %v1154, %v1150
  %v1211 = vpack.c.b16 %v1155, %v1151
  %v1212 = vpack.c.b16 %v1156, %v1152
  %v1213 = vpack.c.b16 %v1161, %v1157
  %v1214 = vpack.c.b16 %v1162, %v1158
  %v1215 = vpack.c.b16 %v1163, %v1159
  %v1216 = vpack.c.b16 %v1164, %v1160
  %v1217 = vpack.c.b16 %v1169, %v1165
  %v1218 = vpack.c.b16 %v1170, %v1166
  %v1219 = vpack.c.b16 %v1171, %v1167
  %v1220 = vpack.c.b16 %v1172, %v1168
  %v1221 = vpack.c.b16 %v1177, %v1173
  %v1222 = vpack.c.b16 %v1178, %v1174
  %v1223 = vpack.c.b16 %v1179, %v1175
  %v1224 = vpack.c.b16 %v1180, %v1176
  %v1225 = vpack.c.b16 %v1185, %v1181
  %v1226 = vpack.c.b16 %v1186, %v1182
  %v1227 = vpack.c.b16 %v1187, %v1183
  %v1228 = vpack.c.b16 %v1188, %v1184
  %v1229 = vpack.c.b16 %v1193, %v1189
  %v1230 = vpack.c.b16 %v1194, %v1190
  %v1231 = vpack.c.b16 %v1195, %v1191
  %v1232 = vpack.c.b16 %v1196, %v1192
  %v1233 = vpack.c.b16 %v1201, %v1197
  %v1234 = vpack.c.b16 %v1202, %v1198
  %v1235 = vpack.c.b16 %v1203, %v1199
  %v1236 = vpack.c.b16 %v1204, %v1200
  %1269 = vmatprep.subr.bf16.mxu0 %v1206
  %1270 = vmatpush1.bf16.msra.mxu0 %v1205
  %1271 = vmatprep.subr.bf16.mxu0 %v1210
  %1272 = vmatpush1.bf16.msra.mxu0 %v1209
  %1273 = vmatprep.subr.bf16.mxu0 %v1214
  %1274 = vmatpush1.bf16.msra.mxu0 %v1213
  %1275 = vmatprep.subr.bf16.mxu0 %v1218
  %1276 = vmatpush1.bf16.msra.mxu0 %v1217
  %1277 = vmatprep.subr.bf16.mxu0 %v1222
  %1278 = vmatpush1.bf16.msra.mxu0 %v1221
  %1279 = vmatprep.subr.bf16.mxu0 %v1226
  %1280 = vmatpush1.bf16.msra.mxu0 %v1225
  %1281 = vmatprep.subr.bf16.mxu0 %v1230
  %1282 = vmatpush1.bf16.msra.mxu0 %v1229
  %1283 = vmatprep.subr.bf16.mxu0 %v1234
  %1284 = vmatpush1.bf16.msra.mxu0 %v1233
  %1285 = vmatprep.subr.bf16.mxu0 0
  %1286 = vmatpush1.bf16.msra.mxu0 0
  %1287 = vmatprep.subr.bf16.mxu0 0
  %1288 = vmatpush1.bf16.msra.mxu0 0
  %1289 = vmatprep.subr.bf16.mxu0 0
  %1290 = vmatpush1.bf16.msra.mxu0 0
  %1291 = vmatprep.subr.bf16.mxu0 0
  %1292 = vmatpush1.bf16.msra.mxu0 0
  %1293 = vmatprep.subr.bf16.mxu0 0
  %1294 = vmatpush1.bf16.msra.mxu0 0
  %1295 = vmatprep.subr.bf16.mxu0 0
  %1296 = vmatpush1.bf16.msra.mxu0 0
  %1297 = vmatprep.subr.bf16.mxu0 0
  %1298 = vmatpush1.bf16.msra.mxu0 0
  %1299 = vmatprep.subr.bf16.mxu0 0
  %1300 = vmatpush1.bf16.msra.mxu0 0
  %1301 = vmatprep.mubr.bf16.mxu0 0
  %1302 = vmatmul.mubr.bf16.gmra.mrb[0].mxu0 %v1069
  %v1303 = vpop.f32.mrb[0].mxu0
  %v1304 = vadd.f32 0.0, %v1303
  %v1305 = vpop.f32.mrb[0].mxu0
  %v1306 = vadd.f32 0.0, %v1305
  %v1307 = vpop.f32.mrb[0].mxu0
  %v1308 = vpop.f32.mrb[0].mxu0
  %1309 = vdwg.mxu0
  %1310 = vmatprep.subr.bf16.mxu0 %v1208
  %1311 = vmatpush1.bf16.msra.mxu0 %v1207
  %1312 = vmatprep.subr.bf16.mxu0 %v1212
  %1313 = vmatpush1.bf16.msra.mxu0 %v1211
  %1314 = vmatprep.subr.bf16.mxu0 %v1216
  %1315 = vmatpush1.bf16.msra.mxu0 %v1215
  %1316 = vmatprep.subr.bf16.mxu0 %v1220
  %1317 = vmatpush1.bf16.msra.mxu0 %v1219
  %1318 = vmatprep.subr.bf16.mxu0 %v1224
  %1319 = vmatpush1.bf16.msra.mxu0 %v1223
  %1320 = vmatprep.subr.bf16.mxu0 %v1228
  %1321 = vmatpush1.bf16.msra.mxu0 %v1227
  %1322 = vmatprep.subr.bf16.mxu0 %v1232
  %1323 = vmatpush1.bf16.msra.mxu0 %v1231
  %1324 = vmatprep.subr.bf16.mxu0 %v1236
  %1325 = vmatpush1.bf16.msra.mxu0 %v1235
  %1326 = vmatprep.subr.bf16.mxu0 0
  %1327 = vmatpush1.bf16.msra.mxu0 0
  %1328 = vmatprep.subr.bf16.mxu0 0
  %1329 = vmatpush1.bf16.msra.mxu0 0
  %1330 = vmatprep.subr.bf16.mxu0 0
  %1331 = vmatpush1.bf16.msra.mxu0 0
  %1332 = vmatprep.subr.bf16.mxu0 0
  %1333 = vmatpush1.bf16.msra.mxu0 0
  %1334 = vmatprep.subr.bf16.mxu0 0
  %1335 = vmatpush1.bf16.msra.mxu0 0
  %1336 = vmatprep.subr.bf16.mxu0 0
  %1337 = vmatpush1.bf16.msra.mxu0 0
  %1338 = vmatprep.subr.bf16.mxu0 0
  %1339 = vmatpush1.bf16.msra.mxu0 0
  %1340 = vmatprep.subr.bf16.mxu0 0
  %1341 = vmatpush1.bf16.msra.mxu0 0
  %1342 = vmatprep.mubr.bf16.mxu0 0
  %1343 = vmatmul.mubr.bf16.gmra.mrb[0].mxu0 %v1069
  %v1344 = vpop.f32.mrb[0].mxu0
  %v1345 = vadd.f32 0.0, %v1344
  %v1346 = vpop.f32.mrb[0].mxu0
  %v1347 = vadd.f32 0.0, %v1346
  %v1348 = vpop.f32.mrb[0].mxu0
  %v1349 = vpop.f32.mrb[0].mxu0
  %1350 = vdwg.mxu0
  %v1351 = vadd.f32 %v1073, %v1304
  %v1352 = vadd.f32 %v1074, %v1306
  %v1353 = vadd.f32 %v1075, %v1345
  %v1354 = vadd.f32 %v1076, %v1347
  %v1355 = vxor.u32 %v1351, 2147483648
  %v1356 = vmul.f32 %v1355, 1.442695
  %v1357 = vpow.pop %v1356
  %v1358 = vadd.f32 %v1357, 1.0
  %v1359 = vrcp.pop %v1358
  %v1360 = vmul.f32 1.0, %v1359
  %v1361 = vxor.u32 %v1352, 2147483648
  %v1362 = vmul.f32 %v1361, 1.442695
  %v1363 = vpow.pop %v1362
  %v1364 = vadd.f32 %v1363, 1.0
  %v1365 = vrcp.pop %v1364
  %v1366 = vmul.f32 1.0, %v1365
  %v1367 = vtanh.pop %v1353
  %v1368 = vxor.u32 %v1354, 2147483648
  %v1369 = vmul.f32 %v1368, 1.442695
  %v1370 = vpow.pop %v1369
  %v1371 = vadd.f32 %v1370, 1.0
  %v1372 = vrcp.pop %v1371
  %v1373 = vmul.f32 1.0, %v1372
  %v1374 = vmul.f32 %v1366, %v1066
  %v1375 = vmul.f32 %v1360, %v1367
  %v1376 = vadd.f32 %v1374, %v1375
  %v1377 = vtanh.pop %v1376
  %v1378 = vmul.f32 %v1373, %v1377
  %v1379 = vpack.c.bf16 %v1378, %v1378
  %s1380 = scalar_lea.vmem %s4, 8
  %1381 = vst [vmem:[%s1380] sm:$0xf] %v1379
  %s1382 = scalar_lea.vmem [#allocation2], 96
  %v1383 = vld [vmem:[%s1382] sm:$0xff]
  %v1384 = vld [vmem:[%s1382 + $0x8] sm:$0xff]
  %v1385 = vld [vmem:[%s1382 + $0x10] sm:$0xff]
  %v1386 = vld [vmem:[%s1382 + $0x18] sm:$0xff]
  %v1387 = vld [vmem:[%s2] sm:$0xff]
  %v1388 = vld [vmem:[%s2 + $0x8] sm:$0xff]
  %v1389 = vld [vmem:[%s2 + $0x10] sm:$0xff]
  %v1390 = vld [vmem:[%s2 + $0x18] sm:$0xff]
  %v1391 = vld [vmem:[%s2 + $0x20] sm:$0xff]
  %v1392 = vld [vmem:[%s2 + $0x28] sm:$0xff]
  %v1393 = vld [vmem:[%s2 + $0x30] sm:$0xff]
  %v1394 = vld [vmem:[%s2 + $0x38] sm:$0xff]
  %v1395 = vld [vmem:[%s2 + $0x40] sm:$0xff]
  %v1396 = vld [vmem:[%s2 + $0x48] sm:$0xff]
  %v1397 = vld [vmem:[%s2 + $0x50] sm:$0xff]
  %v1398 = vld [vmem:[%s2 + $0x58] sm:$0xff]
  %v1399 = vld [vmem:[%s2 + $0x60] sm:$0xff]
  %v1400 = vld [vmem:[%s2 + $0x68] sm:$0xff]
  %v1401 = vld [vmem:[%s2 + $0x70] sm:$0xff]
  %v1402 = vld [vmem:[%s2 + $0x78] sm:$0xff]
  %v1403 = vld [vmem:[%s2 + $0x80] sm:$0xff]
  %v1404 = vld [vmem:[%s2 + $0x88] sm:$0xff]
  %v1405 = vld [vmem:[%s2 + $0x90] sm:$0xff]
  %v1406 = vld [vmem:[%s2 + $0x98] sm:$0xff]
  %v1407 = vld [vmem:[%s2 + $0xa0] sm:$0xff]
  %v1408 = vld [vmem:[%s2 + $0xa8] sm:$0xff]
  %v1409 = vld [vmem:[%s2 + $0xb0] sm:$0xff]
  %v1410 = vld [vmem:[%s2 + $0xb8] sm:$0xff]
  %v1411 = vld [vmem:[%s2 + $0xc0] sm:$0xff]
  %v1412 = vld [vmem:[%s2 + $0xc8] sm:$0xff]
  %v1413 = vld [vmem:[%s2 + $0xd0] sm:$0xff]
  %v1414 = vld [vmem:[%s2 + $0xd8] sm:$0xff]
  %v1415 = vld [vmem:[%s2 + $0xe0] sm:$0xff]
  %v1416 = vld [vmem:[%s2 + $0xe8] sm:$0xff]
  %v1417 = vld [vmem:[%s2 + $0xf0] sm:$0xff]
  %v1418 = vld [vmem:[%s2 + $0xf8] sm:$0xff]
  %v1451 = vunpack.c.l.b16 %v1387
  %v1452 = vunpack.c.h.b16 %v1387
  %v1453 = vunpack.c.l.b16 %v1388
  %v1454 = vunpack.c.h.b16 %v1388
  %v1455 = vunpack.c.l.b16 %v1389
  %v1456 = vunpack.c.h.b16 %v1389
  %v1457 = vunpack.c.l.b16 %v1390
  %v1458 = vunpack.c.h.b16 %v1390
  %v1459 = vunpack.c.l.b16 %v1391
  %v1460 = vunpack.c.h.b16 %v1391
  %v1461 = vunpack.c.l.b16 %v1392
  %v1462 = vunpack.c.h.b16 %v1392
  %v1463 = vunpack.c.l.b16 %v1393
  %v1464 = vunpack.c.h.b16 %v1393
  %v1465 = vunpack.c.l.b16 %v1394
  %v1466 = vunpack.c.h.b16 %v1394
  %v1467 = vunpack.c.l.b16 %v1395
  %v1468 = vunpack.c.h.b16 %v1395
  %v1469 = vunpack.c.l.b16 %v1396
  %v1470 = vunpack.c.h.b16 %v1396
  %v1471 = vunpack.c.l.b16 %v1397
  %v1472 = vunpack.c.h.b16 %v1397
  %v1473 = vunpack.c.l.b16 %v1398
  %v1474 = vunpack.c.h.b16 %v1398
  %v1475 = vunpack.c.l.b16 %v1399
  %v1476 = vunpack.c.h.b16 %v1399
  %v1477 = vunpack.c.l.b16 %v1400
  %v1478 = vunpack.c.h.b16 %v1400
  %v1479 = vunpack.c.l.b16 %v1401
  %v1480 = vunpack.c.h.b16 %v1401
  %v1481 = vunpack.c.l.b16 %v1402
  %v1482 = vunpack.c.h.b16 %v1402
  %v1483 = vunpack.c.l.b16 %v1403
  %v1484 = vunpack.c.h.b16 %v1403
  %v1485 = vunpack.c.l.b16 %v1404
  %v1486 = vunpack.c.h.b16 %v1404
  %v1487 = vunpack.c.l.b16 %v1405
  %v1488 = vunpack.c.h.b16 %v1405
  %v1489 = vunpack.c.l.b16 %v1406
  %v1490 = vunpack.c.h.b16 %v1406
  %v1491 = vunpack.c.l.b16 %v1407
  %v1492 = vunpack.c.h.b16 %v1407
  %v1493 = vunpack.c.l.b16 %v1408
  %v1494 = vunpack.c.h.b16 %v1408
  %v1495 = vunpack.c.l.b16 %v1409
  %v1496 = vunpack.c.h.b16 %v1409
  %v1497 = vunpack.c.l.b16 %v1410
  %v1498 = vunpack.c.h.b16 %v1410
  %v1499 = vunpack.c.l.b16 %v1411
  %v1500 = vunpack.c.h.b16 %v1411
  %v1501 = vunpack.c.l.b16 %v1412
  %v1502 = vunpack.c.h.b16 %v1412
  %v1503 = vunpack.c.l.b16 %v1413
  %v1504 = vunpack.c.h.b16 %v1413
  %v1505 = vunpack.c.l.b16 %v1414
  %v1506 = vunpack.c.h.b16 %v1414
  %v1507 = vunpack.c.l.b16 %v1415
  %v1508 = vunpack.c.h.b16 %v1415
  %v1509 = vunpack.c.l.b16 %v1416
  %v1510 = vunpack.c.h.b16 %v1416
  %v1511 = vunpack.c.l.b16 %v1417
  %v1512 = vunpack.c.h.b16 %v1417
  %v1513 = vunpack.c.l.b16 %v1418
  %v1514 = vunpack.c.h.b16 %v1418
  %v1515 = vpack.c.b16 %v1455, %v1451
  %v1516 = vpack.c.b16 %v1456, %v1452
  %v1517 = vpack.c.b16 %v1457, %v1453
  %v1518 = vpack.c.b16 %v1458, %v1454
  %v1519 = vpack.c.b16 %v1463, %v1459
  %v1520 = vpack.c.b16 %v1464, %v1460
  %v1521 = vpack.c.b16 %v1465, %v1461
  %v1522 = vpack.c.b16 %v1466, %v1462
  %v1523 = vpack.c.b16 %v1471, %v1467
  %v1524 = vpack.c.b16 %v1472, %v1468
  %v1525 = vpack.c.b16 %v1473, %v1469
  %v1526 = vpack.c.b16 %v1474, %v1470
  %v1527 = vpack.c.b16 %v1479, %v1475
  %v1528 = vpack.c.b16 %v1480, %v1476
  %v1529 = vpack.c.b16 %v1481, %v1477
  %v1530 = vpack.c.b16 %v1482, %v1478
  %v1531 = vpack.c.b16 %v1487, %v1483
  %v1532 = vpack.c.b16 %v1488, %v1484
  %v1533 = vpack.c.b16 %v1489, %v1485
  %v1534 = vpack.c.b16 %v1490, %v1486
  %v1535 = vpack.c.b16 %v1495, %v1491
  %v1536 = vpack.c.b16 %v1496, %v1492
  %v1537 = vpack.c.b16 %v1497, %v1493
  %v1538 = vpack.c.b16 %v1498, %v1494
  %v1539 = vpack.c.b16 %v1503, %v1499
  %v1540 = vpack.c.b16 %v1504, %v1500
  %v1541 = vpack.c.b16 %v1505, %v1501
  %v1542 = vpack.c.b16 %v1506, %v1502
  %v1543 = vpack.c.b16 %v1511, %v1507
  %v1544 = vpack.c.b16 %v1512, %v1508
  %v1545 = vpack.c.b16 %v1513, %v1509
  %v1546 = vpack.c.b16 %v1514, %v1510
  %1579 = vmatprep.subr.bf16.mxu0 %v1516
  %1580 = vmatpush1.bf16.msra.mxu0 %v1515
  %1581 = vmatprep.subr.bf16.mxu0 %v1520
  %1582 = vmatpush1.bf16.msra.mxu0 %v1519
  %1583 = vmatprep.subr.bf16.mxu0 %v1524
  %1584 = vmatpush1.bf16.msra.mxu0 %v1523
  %1585 = vmatprep.subr.bf16.mxu0 %v1528
  %1586 = vmatpush1.bf16.msra.mxu0 %v1527
  %1587 = vmatprep.subr.bf16.mxu0 %v1532
  %1588 = vmatpush1.bf16.msra.mxu0 %v1531
  %1589 = vmatprep.subr.bf16.mxu0 %v1536
  %1590 = vmatpush1.bf16.msra.mxu0 %v1535
  %1591 = vmatprep.subr.bf16.mxu0 %v1540
  %1592 = vmatpush1.bf16.msra.mxu0 %v1539
  %1593 = vmatprep.subr.bf16.mxu0 %v1544
  %1594 = vmatpush1.bf16.msra.mxu0 %v1543
  %1595 = vmatprep.subr.bf16.mxu0 0
  %1596 = vmatpush1.bf16.msra.mxu0 0
  %1597 = vmatprep.subr.bf16.mxu0 0
  %1598 = vmatpush1.bf16.msra.mxu0 0
  %1599 = vmatprep.subr.bf16.mxu0 0
  %1600 = vmatpush1.bf16.msra.mxu0 0
  %1601 = vmatprep.subr.bf16.mxu0 0
  %1602 = vmatpush1.bf16.msra.mxu0 0
  %1603 = vmatprep.subr.bf16.mxu0 0
  %1604 = vmatpush1.bf16.msra.mxu0 0
  %1605 = vmatprep.subr.bf16.mxu0 0
  %1606 = vmatpush1.bf16.msra.mxu0 0
  %1607 = vmatprep.subr.bf16.mxu0 0
  %1608 = vmatpush1.bf16.msra.mxu0 0
  %1609 = vmatprep.subr.bf16.mxu0 0
  %1610 = vmatpush1.bf16.msra.mxu0 0
  %1611 = vmatprep.mubr.bf16.mxu0 0
  %1612 = vmatmul.mubr.bf16.gmra.mrb[0].mxu0 %v1379
  %v1613 = vpop.f32.mrb[0].mxu0
  %v1614 = vadd.f32 0.0, %v1613
  %v1615 = vpop.f32.mrb[0].mxu0
  %v1616 = vadd.f32 0.0, %v1615
  %v1617 = vpop.f32.mrb[0].mxu0
  %v1618 = vpop.f32.mrb[0].mxu0
  %1619 = vdwg.mxu0
  %1620 = vmatprep.subr.bf16.mxu0 %v1518
  %1621 = vmatpush1.bf16.msra.mxu0 %v1517
  %1622 = vmatprep.subr.bf16.mxu0 %v1522
  %1623 = vmatpush1.bf16.msra.mxu0 %v1521
  %1624 = vmatprep.subr.bf16.mxu0 %v1526
  %1625 = vmatpush1.bf16.msra.mxu0 %v1525
  %1626 = vmatprep.subr.bf16.mxu0 %v1530
  %1627 = vmatpush1.bf16.msra.mxu0 %v1529
  %1628 = vmatprep.subr.bf16.mxu0 %v1534
  %1629 = vmatpush1.bf16.msra.mxu0 %v1533
  %1630 = vmatprep.subr.bf16.mxu0 %v1538
  %1631 = vmatpush1.bf16.msra.mxu0 %v1537
  %1632 = vmatprep.subr.bf16.mxu0 %v1542
  %1633 = vmatpush1.bf16.msra.mxu0 %v1541
  %1634 = vmatprep.subr.bf16.mxu0 %v1546
  %1635 = vmatpush1.bf16.msra.mxu0 %v1545
  %1636 = vmatprep.subr.bf16.mxu0 0
  %1637 = vmatpush1.bf16.msra.mxu0 0
  %1638 = vmatprep.subr.bf16.mxu0 0
  %1639 = vmatpush1.bf16.msra.mxu0 0
  %1640 = vmatprep.subr.bf16.mxu0 0
  %1641 = vmatpush1.bf16.msra.mxu0 0
  %1642 = vmatprep.subr.bf16.mxu0 0
  %1643 = vmatpush1.bf16.msra.mxu0 0
  %1644 = vmatprep.subr.bf16.mxu0 0
  %1645 = vmatpush1.bf16.msra.mxu0 0
  %1646 = vmatprep.subr.bf16.mxu0 0
  %1647 = vmatpush1.bf16.msra.mxu0 0
  %1648 = vmatprep.subr.bf16.mxu0 0
  %1649 = vmatpush1.bf16.msra.mxu0 0
  %1650 = vmatprep.subr.bf16.mxu0 0
  %1651 = vmatpush1.bf16.msra.mxu0 0
  %1652 = vmatprep.mubr.bf16.mxu0 0
  %1653 = vmatmul.mubr.bf16.gmra.mrb[0].mxu0 %v1379
  %v1654 = vpop.f32.mrb[0].mxu0
  %v1655 = vadd.f32 0.0, %v1654
  %v1656 = vpop.f32.mrb[0].mxu0
  %v1657 = vadd.f32 0.0, %v1656
  %v1658 = vpop.f32.mrb[0].mxu0
  %v1659 = vpop.f32.mrb[0].mxu0
  %1660 = vdwg.mxu0
  %v1661 = vadd.f32 %v1383, %v1614
  %v1662 = vadd.f32 %v1384, %v1616
  %v1663 = vadd.f32 %v1385, %v1655
  %v1664 = vadd.f32 %v1386, %v1657
  %v1665 = vxor.u32 %v1661, 2147483648
  %v1666 = vmul.f32 %v1665, 1.442695
  %v1667 = vpow.pop %v1666
  %v1668 = vadd.f32 %v1667, 1.0
  %v1669 = vrcp.pop %v1668
  %v1670 = vmul.f32 1.0, %v1669
  %v1671 = vxor.u32 %v1662, 2147483648
  %v1672 = vmul.f32 %v1671, 1.442695
  %v1673 = vpow.pop %v1672
  %v1674 = vadd.f32 %v1673, 1.0
  %v1675 = vrcp.pop %v1674
  %v1676 = vmul.f32 1.0, %v1675
  %v1677 = vtanh.pop %v1663
  %v1678 = vxor.u32 %v1664, 2147483648
  %v1679 = vmul.f32 %v1678, 1.442695
  %v1680 = vpow.pop %v1679
  %v1681 = vadd.f32 %v1680, 1.0
  %v1682 = vrcp.pop %v1681
  %v1683 = vmul.f32 1.0, %v1682
  %v1684 = vmul.f32 %v1676, %v1376
  %v1685 = vmul.f32 %v1670, %v1677
  %v1686 = vadd.f32 %v1684, %v1685
  %v1687 = vtanh.pop %v1686
  %v1688 = vmul.f32 %v1683, %v1687
  %v1689 = vpack.c.bf16 %v1688, %v1688
  %s1690 = scalar_lea.vmem %s4, 12
  %1691 = vst [vmem:[%s1690] sm:$0xf] %v1689
  %s1692 = scalar_lea.vmem [#allocation2], 128
  %v1693 = vld [vmem:[%s1692] sm:$0xff]
  %v1694 = vld [vmem:[%s1692 + $0x8] sm:$0xff]
  %v1695 = vld [vmem:[%s1692 + $0x10] sm:$0xff]
  %v1696 = vld [vmem:[%s1692 + $0x18] sm:$0xff]
  %v1697 = vld [vmem:[%s2] sm:$0xff]
  %v1698 = vld [vmem:[%s2 + $0x8] sm:$0xff]
  %v1699 = vld [vmem:[%s2 + $0x10] sm:$0xff]
  %v1700 = vld [vmem:[%s2 + $0x18] sm:$0xff]
  %v1701 = vld [vmem:[%s2 + $0x20] sm:$0xff]
  %v1702 = vld [vmem:[%s2 + $0x28] sm:$0xff]
  %v1703 = vld [vmem:[%s2 + $0x30] sm:$0xff]
  %v1704 = vld [vmem:[%s2 + $0x38] sm:$0xff]
  %v1705 = vld [vmem:[%s2 + $0x40] sm:$0xff]
  %v1706 = vld [vmem:[%s2 + $0x48] sm:$0xff]
  %v1707 = vld [vmem:[%s2 + $0x50] sm:$0xff]
  %v1708 = vld [vmem:[%s2 + $0x58] sm:$0xff]
  %v1709 = vld [vmem:[%s2 + $0x60] sm:$0xff]
  %v1710 = vld [vmem:[%s2 + $0x68] sm:$0xff]
  %v1711 = vld [vmem:[%s2 + $0x70] sm:$0xff]
  %v1712 = vld [vmem:[%s2 + $0x78] sm:$0xff]
  %v1713 = vld [vmem:[%s2 + $0x80] sm:$0xff]
  %v1714 = vld [vmem:[%s2 + $0x88] sm:$0xff]
  %v1715 = vld [vmem:[%s2 + $0x90] sm:$0xff]
  %v1716 = vld [vmem:[%s2 + $0x98] sm:$0xff]
  %v1717 = vld [vmem:[%s2 + $0xa0] sm:$0xff]
  %v1718 = vld [vmem:[%s2 + $0xa8] sm:$0xff]
  %v1719 = vld [vmem:[%s2 + $0xb0] sm:$0xff]
  %v1720 = vld [vmem:[%s2 + $0xb8] sm:$0xff]
  %v1721 = vld [vmem:[%s2 + $0xc0] sm:$0xff]
  %v1722 = vld [vmem:[%s2 + $0xc8] sm:$0xff]
  %v1723 = vld [vmem:[%s2 + $0xd0] sm:$0xff]
  %v1724 = vld [vmem:[%s2 + $0xd8] sm:$0xff]
  %v1725 = vld [vmem:[%s2 + $0xe0] sm:$0xff]
  %v1726 = vld [vmem:[%s2 + $0xe8] sm:$0xff]
  %v1727 = vld [vmem:[%s2 + $0xf0] sm:$0xff]
  %v1728 = vld [vmem:[%s2 + $0xf8] sm:$0xff]
  %v1761 = vunpack.c.l.b16 %v1697
  %v1762 = vunpack.c.h.b16 %v1697
  %v1763 = vunpack.c.l.b16 %v1698
  %v1764 = vunpack.c.h.b16 %v1698
  %v1765 = vunpack.c.l.b16 %v1699
  %v1766 = vunpack.c.h.b16 %v1699
  %v1767 = vunpack.c.l.b16 %v1700
  %v1768 = vunpack.c.h.b16 %v1700
  %v1769 = vunpack.c.l.b16 %v1701
  %v1770 = vunpack.c.h.b16 %v1701
  %v1771 = vunpack.c.l.b16 %v1702
  %v1772 = vunpack.c.h.b16 %v1702
  %v1773 = vunpack.c.l.b16 %v1703
  %v1774 = vunpack.c.h.b16 %v1703
  %v1775 = vunpack.c.l.b16 %v1704
  %v1776 = vunpack.c.h.b16 %v1704
  %v1777 = vunpack.c.l.b16 %v1705
  %v1778 = vunpack.c.h.b16 %v1705
  %v1779 = vunpack.c.l.b16 %v1706
  %v1780 = vunpack.c.h.b16 %v1706
  %v1781 = vunpack.c.l.b16 %v1707
  %v1782 = vunpack.c.h.b16 %v1707
  %v1783 = vunpack.c.l.b16 %v1708
  %v1784 = vunpack.c.h.b16 %v1708
  %v1785 = vunpack.c.l.b16 %v1709
  %v1786 = vunpack.c.h.b16 %v1709
  %v1787 = vunpack.c.l.b16 %v1710
  %v1788 = vunpack.c.h.b16 %v1710
  %v1789 = vunpack.c.l.b16 %v1711
  %v1790 = vunpack.c.h.b16 %v1711
  %v1791 = vunpack.c.l.b16 %v1712
  %v1792 = vunpack.c.h.b16 %v1712
  %v1793 = vunpack.c.l.b16 %v1713
  %v1794 = vunpack.c.h.b16 %v1713
  %v1795 = vunpack.c.l.b16 %v1714
  %v1796 = vunpack.c.h.b16 %v1714
  %v1797 = vunpack.c.l.b16 %v1715
  %v1798 = vunpack.c.h.b16 %v1715
  %v1799 = vunpack.c.l.b16 %v1716
  %v1800 = vunpack.c.h.b16 %v1716
  %v1801 = vunpack.c.l.b16 %v1717
  %v1802 = vunpack.c.h.b16 %v1717
  %v1803 = vunpack.c.l.b16 %v1718
  %v1804 = vunpack.c.h.b16 %v1718
  %v1805 = vunpack.c.l.b16 %v1719
  %v1806 = vunpack.c.h.b16 %v1719
  %v1807 = vunpack.c.l.b16 %v1720
  %v1808 = vunpack.c.h.b16 %v1720
  %v1809 = vunpack.c.l.b16 %v1721
  %v1810 = vunpack.c.h.b16 %v1721
  %v1811 = vunpack.c.l.b16 %v1722
  %v1812 = vunpack.c.h.b16 %v1722
  %v1813 = vunpack.c.l.b16 %v1723
  %v1814 = vunpack.c.h.b16 %v1723
  %v1815 = vunpack.c.l.b16 %v1724
  %v1816 = vunpack.c.h.b16 %v1724
  %v1817 = vunpack.c.l.b16 %v1725
  %v1818 = vunpack.c.h.b16 %v1725
  %v1819 = vunpack.c.l.b16 %v1726
  %v1820 = vunpack.c.h.b16 %v1726
  %v1821 = vunpack.c.l.b16 %v1727
  %v1822 = vunpack.c.h.b16 %v1727
  %v1823 = vunpack.c.l.b16 %v1728
  %v1824 = vunpack.c.h.b16 %v1728
  %v1825 = vpack.c.b16 %v1765, %v1761
  %v1826 = vpack.c.b16 %v1766, %v1762
  %v1827 = vpack.c.b16 %v1767, %v1763
  %v1828 = vpack.c.b16 %v1768, %v1764
  %v1829 = vpack.c.b16 %v1773, %v1769
  %v1830 = vpack.c.b16 %v1774, %v1770
  %v1831 = vpack.c.b16 %v1775, %v1771
  %v1832 = vpack.c.b16 %v1776, %v1772
  %v1833 = vpack.c.b16 %v1781, %v1777
  %v1834 = vpack.c.b16 %v1782, %v1778
  %v1835 = vpack.c.b16 %v1783, %v1779
  %v1836 = vpack.c.b16 %v1784, %v1780
  %v1837 = vpack.c.b16 %v1789, %v1785
  %v1838 = vpack.c.b16 %v1790, %v1786
  %v1839 = vpack.c.b16 %v1791, %v1787
  %v1840 = vpack.c.b16 %v1792, %v1788
  %v1841 = vpack.c.b16 %v1797, %v1793
  %v1842 = vpack.c.b16 %v1798, %v1794
  %v1843 = vpack.c.b16 %v1799, %v1795
  %v1844 = vpack.c.b16 %v1800, %v1796
  %v1845 = vpack.c.b16 %v1805, %v1801
  %v1846 = vpack.c.b16 %v1806, %v1802
  %v1847 = vpack.c.b16 %v1807, %v1803
  %v1848 = vpack.c.b16 %v1808, %v1804
  %v1849 = vpack.c.b16 %v1813, %v1809
  %v1850 = vpack.c.b16 %v1814, %v1810
  %v1851 = vpack.c.b16 %v1815, %v1811
  %v1852 = vpack.c.b16 %v1816, %v1812
  %v1853 = vpack.c.b16 %v1821, %v1817
  %v1854 = vpack.c.b16 %v1822, %v1818
  %v1855 = vpack.c.b16 %v1823, %v1819
  %v1856 = vpack.c.b16 %v1824, %v1820
  %1889 = vmatprep.subr.bf16.mxu0 %v1826
  %1890 = vmatpush1.bf16.msra.mxu0 %v1825
  %1891 = vmatprep.subr.bf16.mxu0 %v1830
  %1892 = vmatpush1.bf16.msra.mxu0 %v1829
  %1893 = vmatprep.subr.bf16.mxu0 %v1834
  %1894 = vmatpush1.bf16.msra.mxu0 %v1833
  %1895 = vmatprep.subr.bf16.mxu0 %v1838
  %1896 = vmatpush1.bf16.msra.mxu0 %v1837
  %1897 = vmatprep.subr.bf16.mxu0 %v1842
  %1898 = vmatpush1.bf16.msra.mxu0 %v1841
  %1899 = vmatprep.subr.bf16.mxu0 %v1846
  %1900 = vmatpush1.bf16.msra.mxu0 %v1845
  %1901 = vmatprep.subr.bf16.mxu0 %v1850
  %1902 = vmatpush1.bf16.msra.mxu0 %v1849
  %1903 = vmatprep.subr.bf16.mxu0 %v1854
  %1904 = vmatpush1.bf16.msra.mxu0 %v1853
  %1905 = vmatprep.subr.bf16.mxu0 0
  %1906 = vmatpush1.bf16.msra.mxu0 0
  %1907 = vmatprep.subr.bf16.mxu0 0
  %1908 = vmatpush1.bf16.msra.mxu0 0
  %1909 = vmatprep.subr.bf16.mxu0 0
  %1910 = vmatpush1.bf16.msra.mxu0 0
  %1911 = vmatprep.subr.bf16.mxu0 0
  %1912 = vmatpush1.bf16.msra.mxu0 0
  %1913 = vmatprep.subr.bf16.mxu0 0
  %1914 = vmatpush1.bf16.msra.mxu0 0
  %1915 = vmatprep.subr.bf16.mxu0 0
  %1916 = vmatpush1.bf16.msra.mxu0 0
  %1917 = vmatprep.subr.bf16.mxu0 0
  %1918 = vmatpush1.bf16.msra.mxu0 0
  %1919 = vmatprep.subr.bf16.mxu0 0
  %1920 = vmatpush1.bf16.msra.mxu0 0
  %1921 = vmatprep.mubr.bf16.mxu0 0
  %1922 = vmatmul.mubr.bf16.gmra.mrb[0].mxu0 %v1689
  %v1923 = vpop.f32.mrb[0].mxu0
  %v1924 = vadd.f32 0.0, %v1923
  %v1925 = vpop.f32.mrb[0].mxu0
  %v1926 = vadd.f32 0.0, %v1925
  %v1927 = vpop.f32.mrb[0].mxu0
  %v1928 = vpop.f32.mrb[0].mxu0
  %1929 = vdwg.mxu0
  %1930 = vmatprep.subr.bf16.mxu0 %v1828
  %1931 = vmatpush1.bf16.msra.mxu0 %v1827
  %1932 = vmatprep.subr.bf16.mxu0 %v1832
  %1933 = vmatpush1.bf16.msra.mxu0 %v1831
  %1934 = vmatprep.subr.bf16.mxu0 %v1836
  %1935 = vmatpush1.bf16.msra.mxu0 %v1835
  %1936 = vmatprep.subr.bf16.mxu0 %v1840
  %1937 = vmatpush1.bf16.msra.mxu0 %v1839
  %1938 = vmatprep.subr.bf16.mxu0 %v1844
  %1939 = vmatpush1.bf16.msra.mxu0 %v1843
  %1940 = vmatprep.subr.bf16.mxu0 %v1848
  %1941 = vmatpush1.bf16.msra.mxu0 %v1847
  %1942 = vmatprep.subr.bf16.mxu0 %v1852
  %1943 = vmatpush1.bf16.msra.mxu0 %v1851
  %1944 = vmatprep.subr.bf16.mxu0 %v1856
  %1945 = vmatpush1.bf16.msra.mxu0 %v1855
  %1946 = vmatprep.subr.bf16.mxu0 0
  %1947 = vmatpush1.bf16.msra.mxu0 0
  %1948 = vmatprep.subr.bf16.mxu0 0
  %1949 = vmatpush1.bf16.msra.mxu0 0
  %1950 = vmatprep.subr.bf16.mxu0 0
  %1951 = vmatpush1.bf16.msra.mxu0 0
  %1952 = vmatprep.subr.bf16.mxu0 0
  %1953 = vmatpush1.bf16.msra.mxu0 0
  %1954 = vmatprep.subr.bf16.mxu0 0
  %1955 = vmatpush1.bf16.msra.mxu0 0
  %1956 = vmatprep.subr.bf16.mxu0 0
  %1957 = vmatpush1.bf16.msra.mxu0 0
  %1958 = vmatprep.subr.bf16.mxu0 0
  %1959 = vmatpush1.bf16.msra.mxu0 0
  %1960 = vmatprep.subr.bf16.mxu0 0
  %1961 = vmatpush1.bf16.msra.mxu0 0
  %1962 = vmatprep.mubr.bf16.mxu0 0
  %1963 = vmatmul.mubr.bf16.gmra.mrb[0].mxu0 %v1689
  %v1964 = vpop.f32.mrb[0].mxu0
  %v1965 = vadd.f32 0.0, %v1964
  %v1966 = vpop.f32.mrb[0].mxu0
  %v1967 = vadd.f32 0.0, %v1966
  %v1968 = vpop.f32.mrb[0].mxu0
  %v1969 = vpop.f32.mrb[0].mxu0
  %1970 = vdwg.mxu0
  %v1971 = vadd.f32 %v1693, %v1924
  %v1972 = vadd.f32 %v1694, %v1926
  %v1973 = vadd.f32 %v1695, %v1965
  %v1974 = vadd.f32 %v1696, %v1967
  %v1975 = vxor.u32 %v1971, 2147483648
  %v1976 = vmul.f32 %v1975, 1.442695
  %v1977 = vpow.pop %v1976
  %v1978 = vadd.f32 %v1977, 1.0
  %v1979 = vrcp.pop %v1978
  %v1980 = vmul.f32 1.0, %v1979
  %v1981 = vxor.u32 %v1972, 2147483648
  %v1982 = vmul.f32 %v1981, 1.442695
  %v1983 = vpow.pop %v1982
  %v1984 = vadd.f32 %v1983, 1.0
  %v1985 = vrcp.pop %v1984
  %v1986 = vmul.f32 1.0, %v1985
  %v1987 = vtanh.pop %v1973
  %v1988 = vxor.u32 %v1974, 2147483648
  %v1989 = vmul.f32 %v1988, 1.442695
  %v1990 = vpow.pop %v1989
  %v1991 = vadd.f32 %v1990, 1.0
  %v1992 = vrcp.pop %v1991
  %v1993 = vmul.f32 1.0, %v1992
  %v1994 = vmul.f32 %v1986, %v1686
  %v1995 = vmul.f32 %v1980, %v1987
  %v1996 = vadd.f32 %v1994, %v1995
  %v1997 = vtanh.pop %v1996
  %v1998 = vmul.f32 %v1993, %v1997
  %v1999 = vpack.c.bf16 %v1998, %v1998
  %s2000 = scalar_lea.vmem %s4, 16
  %2001 = vst [vmem:[%s2000] sm:$0xf] %v1999
  %s2002 = scalar_lea.vmem [#allocation2], 160
  %v2003 = vld [vmem:[%s2002] sm:$0xff]
  %v2004 = vld [vmem:[%s2002 + $0x8] sm:$0xff]
  %v2005 = vld [vmem:[%s2002 + $0x10] sm:$0xff]
  %v2006 = vld [vmem:[%s2002 + $0x18] sm:$0xff]
  %v2007 = vld [vmem:[%s2] sm:$0xff]
  %v2008 = vld [vmem:[%s2 + $0x8] sm:$0xff]
  %v2009 = vld [vmem:[%s2 + $0x10] sm:$0xff]
  %v2010 = vld [vmem:[%s2 + $0x18] sm:$0xff]
  %v2011 = vld [vmem:[%s2 + $0x20] sm:$0xff]
  %v2012 = vld [vmem:[%s2 + $0x28] sm:$0xff]
  %v2013 = vld [vmem:[%s2 + $0x30] sm:$0xff]
  %v2014 = vld [vmem:[%s2 + $0x38] sm:$0xff]
  %v2015 = vld [vmem:[%s2 + $0x40] sm:$0xff]
  %v2016 = vld [vmem:[%s2 + $0x48] sm:$0xff]
  %v2017 = vld [vmem:[%s2 + $0x50] sm:$0xff]
  %v2018 = vld [vmem:[%s2 + $0x58] sm:$0xff]
  %v2019 = vld [vmem:[%s2 + $0x60] sm:$0xff]
  %v2020 = vld [vmem:[%s2 + $0x68] sm:$0xff]
  %v2021 = vld [vmem:[%s2 + $0x70] sm:$0xff]
  %v2022 = vld [vmem:[%s2 + $0x78] sm:$0xff]
  %v2023 = vld [vmem:[%s2 + $0x80] sm:$0xff]
  %v2024 = vld [vmem:[%s2 + $0x88] sm:$0xff]
  %v2025 = vld [vmem:[%s2 + $0x90] sm:$0xff]
  %v2026 = vld [vmem:[%s2 + $0x98] sm:$0xff]
  %v2027 = vld [vmem:[%s2 + $0xa0] sm:$0xff]
  %v2028 = vld [vmem:[%s2 + $0xa8] sm:$0xff]
  %v2029 = vld [vmem:[%s2 + $0xb0] sm:$0xff]
  %v2030 = vld [vmem:[%s2 + $0xb8] sm:$0xff]
  %v2031 = vld [vmem:[%s2 + $0xc0] sm:$0xff]
  %v2032 = vld [vmem:[%s2 + $0xc8] sm:$0xff]
  %v2033 = vld [vmem:[%s2 + $0xd0] sm:$0xff]
  %v2034 = vld [vmem:[%s2 + $0xd8] sm:$0xff]
  %v2035 = vld [vmem:[%s2 + $0xe0] sm:$0xff]
  %v2036 = vld [vmem:[%s2 + $0xe8] sm:$0xff]
  %v2037 = vld [vmem:[%s2 + $0xf0] sm:$0xff]
  %v2038 = vld [vmem:[%s2 + $0xf8] sm:$0xff]
  %v2071 = vunpack.c.l.b16 %v2007
  %v2072 = vunpack.c.h.b16 %v2007
  %v2073 = vunpack.c.l.b16 %v2008
  %v2074 = vunpack.c.h.b16 %v2008
  %v2075 = vunpack.c.l.b16 %v2009
  %v2076 = vunpack.c.h.b16 %v2009
  %v2077 = vunpack.c.l.b16 %v2010
  %v2078 = vunpack.c.h.b16 %v2010
  %v2079 = vunpack.c.l.b16 %v2011
  %v2080 = vunpack.c.h.b16 %v2011
  %v2081 = vunpack.c.l.b16 %v2012
  %v2082 = vunpack.c.h.b16 %v2012
  %v2083 = vunpack.c.l.b16 %v2013
  %v2084 = vunpack.c.h.b16 %v2013
  %v2085 = vunpack.c.l.b16 %v2014
  %v2086 = vunpack.c.h.b16 %v2014
  %v2087 = vunpack.c.l.b16 %v2015
  %v2088 = vunpack.c.h.b16 %v2015
  %v2089 = vunpack.c.l.b16 %v2016
  %v2090 = vunpack.c.h.b16 %v2016
  %v2091 = vunpack.c.l.b16 %v2017
  %v2092 = vunpack.c.h.b16 %v2017
  %v2093 = vunpack.c.l.b16 %v2018
  %v2094 = vunpack.c.h.b16 %v2018
  %v2095 = vunpack.c.l.b16 %v2019
  %v2096 = vunpack.c.h.b16 %v2019
  %v2097 = vunpack.c.l.b16 %v2020
  %v2098 = vunpack.c.h.b16 %v2020
  %v2099 = vunpack.c.l.b16 %v2021
  %v2100 = vunpack.c.h.b16 %v2021
  %v2101 = vunpack.c.l.b16 %v2022
  %v2102 = vunpack.c.h.b16 %v2022
  %v2103 = vunpack.c.l.b16 %v2023
  %v2104 = vunpack.c.h.b16 %v2023
  %v2105 = vunpack.c.l.b16 %v2024
  %v2106 = vunpack.c.h.b16 %v2024
  %v2107 = vunpack.c.l.b16 %v2025
  %v2108 = vunpack.c.h.b16 %v2025
  %v2109 = vunpack.c.l.b16 %v2026
  %v2110 = vunpack.c.h.b16 %v2026
  %v2111 = vunpack.c.l.b16 %v2027
  %v2112 = vunpack.c.h.b16 %v2027
  %v2113 = vunpack.c.l.b16 %v2028
  %v2114 = vunpack.c.h.b16 %v2028
  %v2115 = vunpack.c.l.b16 %v2029
  %v2116 = vunpack.c.h.b16 %v2029
  %v2117 = vunpack.c.l.b16 %v2030
  %v2118 = vunpack.c.h.b16 %v2030
  %v2119 = vunpack.c.l.b16 %v2031
  %v2120 = vunpack.c.h.b16 %v2031
  %v2121 = vunpack.c.l.b16 %v2032
  %v2122 = vunpack.c.h.b16 %v2032
  %v2123 = vunpack.c.l.b16 %v2033
  %v2124 = vunpack.c.h.b16 %v2033
  %v2125 = vunpack.c.l.b16 %v2034
  %v2126 = vunpack.c.h.b16 %v2034
  %v2127 = vunpack.c.l.b16 %v2035
  %v2128 = vunpack.c.h.b16 %v2035
  %v2129 = vunpack.c.l.b16 %v2036
  %v2130 = vunpack.c.h.b16 %v2036
  %v2131 = vunpack.c.l.b16 %v2037
  %v2132 = vunpack.c.h.b16 %v2037
  %v2133 = vunpack.c.l.b16 %v2038
  %v2134 = vunpack.c.h.b16 %v2038
  %v2135 = vpack.c.b16 %v2075, %v2071
  %v2136 = vpack.c.b16 %v2076, %v2072
  %v2137 = vpack.c.b16 %v2077, %v2073
  %v2138 = vpack.c.b16 %v2078, %v2074
  %v2139 = vpack.c.b16 %v2083, %v2079
  %v2140 = vpack.c.b16 %v2084, %v2080
  %v2141 = vpack.c.b16 %v2085, %v2081
  %v2142 = vpack.c.b16 %v2086, %v2082
  %v2143 = vpack.c.b16 %v2091, %v2087
  %v2144 = vpack.c.b16 %v2092, %v2088
  %v2145 = vpack.c.b16 %v2093, %v2089
  %v2146 = vpack.c.b16 %v2094, %v2090
  %v2147 = vpack.c.b16 %v2099, %v2095
  %v2148 = vpack.c.b16 %v2100, %v2096
  %v2149 = vpack.c.b16 %v2101, %v2097
  %v2150 = vpack.c.b16 %v2102, %v2098
  %v2151 = vpack.c.b16 %v2107, %v2103
  %v2152 = vpack.c.b16 %v2108, %v2104
  %v2153 = vpack.c.b16 %v2109, %v2105
  %v2154 = vpack.c.b16 %v2110, %v2106
  %v2155 = vpack.c.b16 %v2115, %v2111
  %v2156 = vpack.c.b16 %v2116, %v2112
  %v2157 = vpack.c.b16 %v2117, %v2113
  %v2158 = vpack.c.b16 %v2118, %v2114
  %v2159 = vpack.c.b16 %v2123, %v2119
  %v2160 = vpack.c.b16 %v2124, %v2120
  %v2161 = vpack.c.b16 %v2125, %v2121
  %v2162 = vpack.c.b16 %v2126, %v2122
  %v2163 = vpack.c.b16 %v2131, %v2127
  %v2164 = vpack.c.b16 %v2132, %v2128
  %v2165 = vpack.c.b16 %v2133, %v2129
  %v2166 = vpack.c.b16 %v2134, %v2130
  %2199 = vmatprep.subr.bf16.mxu0 %v2136
  %2200 = vmatpush1.bf16.msra.mxu0 %v2135
  %2201 = vmatprep.subr.bf16.mxu0 %v2140
  %2202 = vmatpush1.bf16.msra.mxu0 %v2139
  %2203 = vmatprep.subr.bf16.mxu0 %v2144
  %2204 = vmatpush1.bf16.msra.mxu0 %v2143
  %2205 = vmatprep.subr.bf16.mxu0 %v2148
  %2206 = vmatpush1.bf16.msra.mxu0 %v2147
  %2207 = vmatprep.subr.bf16.mxu0 %v2152
  %2208 = vmatpush1.bf16.msra.mxu0 %v2151
  %2209 = vmatprep.subr.bf16.mxu0 %v2156
  %2210 = vmatpush1.bf16.msra.mxu0 %v2155
  %2211 = vmatprep.subr.bf16.mxu0 %v2160
  %2212 = vmatpush1.bf16.msra.mxu0 %v2159
  %2213 = vmatprep.subr.bf16.mxu0 %v2164
  %2214 = vmatpush1.bf16.msra.mxu0 %v2163
  %2215 = vmatprep.subr.bf16.mxu0 0
  %2216 = vmatpush1.bf16.msra.mxu0 0
  %2217 = vmatprep.subr.bf16.mxu0 0
  %2218 = vmatpush1.bf16.msra.mxu0 0
  %2219 = vmatprep.subr.bf16.mxu0 0
  %2220 = vmatpush1.bf16.msra.mxu0 0
  %2221 = vmatprep.subr.bf16.mxu0 0
  %2222 = vmatpush1.bf16.msra.mxu0 0
  %2223 = vmatprep.subr.bf16.mxu0 0
  %2224 = vmatpush1.bf16.msra.mxu0 0
  %2225 = vmatprep.subr.bf16.mxu0 0
  %2226 = vmatpush1.bf16.msra.mxu0 0
  %2227 = vmatprep.subr.bf16.mxu0 0
  %2228 = vmatpush1.bf16.msra.mxu0 0
  %2229 = vmatprep.subr.bf16.mxu0 0
  %2230 = vmatpush1.bf16.msra.mxu0 0
  %2231 = vmatprep.mubr.bf16.mxu0 0
  %2232 = vmatmul.mubr.bf16.gmra.mrb[0].mxu0 %v1999
  %v2233 = vpop.f32.mrb[0].mxu0
  %v2234 = vadd.f32 0.0, %v2233
  %v2235 = vpop.f32.mrb[0].mxu0
  %v2236 = vadd.f32 0.0, %v2235
  %v2237 = vpop.f32.mrb[0].mxu0
  %v2238 = vpop.f32.mrb[0].mxu0
  %2239 = vdwg.mxu0
  %2240 = vmatprep.subr.bf16.mxu0 %v2138
  %2241 = vmatpush1.bf16.msra.mxu0 %v2137
  %2242 = vmatprep.subr.bf16.mxu0 %v2142
  %2243 = vmatpush1.bf16.msra.mxu0 %v2141
  %2244 = vmatprep.subr.bf16.mxu0 %v2146
  %2245 = vmatpush1.bf16.msra.mxu0 %v2145
  %2246 = vmatprep.subr.bf16.mxu0 %v2150
  %2247 = vmatpush1.bf16.msra.mxu0 %v2149
  %2248 = vmatprep.subr.bf16.mxu0 %v2154
  %2249 = vmatpush1.bf16.msra.mxu0 %v2153
  %2250 = vmatprep.subr.bf16.mxu0 %v2158
  %2251 = vmatpush1.bf16.msra.mxu0 %v2157
  %2252 = vmatprep.subr.bf16.mxu0 %v2162
  %2253 = vmatpush1.bf16.msra.mxu0 %v2161
  %2254 = vmatprep.subr.bf16.mxu0 %v2166
  %2255 = vmatpush1.bf16.msra.mxu0 %v2165
  %2256 = vmatprep.subr.bf16.mxu0 0
  %2257 = vmatpush1.bf16.msra.mxu0 0
  %2258 = vmatprep.subr.bf16.mxu0 0
  %2259 = vmatpush1.bf16.msra.mxu0 0
  %2260 = vmatprep.subr.bf16.mxu0 0
  %2261 = vmatpush1.bf16.msra.mxu0 0
  %2262 = vmatprep.subr.bf16.mxu0 0
  %2263 = vmatpush1.bf16.msra.mxu0 0
  %2264 = vmatprep.subr.bf16.mxu0 0
  %2265 = vmatpush1.bf16.msra.mxu0 0
  %2266 = vmatprep.subr.bf16.mxu0 0
  %2267 = vmatpush1.bf16.msra.mxu0 0
  %2268 = vmatprep.subr.bf16.mxu0 0
  %2269 = vmatpush1.bf16.msra.mxu0 0
  %2270 = vmatprep.subr.bf16.mxu0 0
  %2271 = vmatpush1.bf16.msra.mxu0 0
  %2272 = vmatprep.mubr.bf16.mxu0 0
  %2273 = vmatmul.mubr.bf16.gmra.mrb[0].mxu0 %v1999
  %v2274 = vpop.f32.mrb[0].mxu0
  %v2275 = vadd.f32 0.0, %v2274
  %v2276 = vpop.f32.mrb[0].mxu0
  %v2277 = vadd.f32 0.0, %v2276
  %v2278 = vpop.f32.mrb[0].mxu0
  %v2279 = vpop.f32.mrb[0].mxu0
  %2280 = vdwg.mxu0
  %v2281 = vadd.f32 %v2003, %v2234
  %v2282 = vadd.f32 %v2004, %v2236
  %v2283 = vadd.f32 %v2005, %v2275
  %v2284 = vadd.f32 %v2006, %v2277
  %v2285 = vxor.u32 %v2281, 2147483648
  %v2286 = vmul.f32 %v2285, 1.442695
  %v2287 = vpow.pop %v2286
  %v2288 = vadd.f32 %v2287, 1.0
  %v2289 = vrcp.pop %v2288
  %v2290 = vmul.f32 1.0, %v2289
  %v2291 = vxor.u32 %v2282, 2147483648
  %v2292 = vmul.f32 %v2291, 1.442695
  %v2293 = vpow.pop %v2292
  %v2294 = vadd.f32 %v2293, 1.0
  %v2295 = vrcp.pop %v2294
  %v2296 = vmul.f32 1.0, %v2295
  %v2297 = vtanh.pop %v2283
  %v2298 = vxor.u32 %v2284, 2147483648
  %v2299 = vmul.f32 %v2298, 1.442695
  %v2300 = vpow.pop %v2299
  %v2301 = vadd.f32 %v2300, 1.0
  %v2302 = vrcp.pop %v2301
  %v2303 = vmul.f32 1.0, %v2302
  %v2304 = vmul.f32 %v2296, %v1996
  %v2305 = vmul.f32 %v2290, %v2297
  %v2306 = vadd.f32 %v2304, %v2305
  %v2307 = vtanh.pop %v2306
  %v2308 = vmul.f32 %v2303, %v2307
  %v2309 = vpack.c.bf16 %v2308, %v2308
  %s2310 = scalar_lea.vmem %s4, 20
  %2311 = vst [vmem:[%s2310] sm:$0xf] %v2309
  %s2312 = scalar_lea.vmem [#allocation2], 192
  %v2313 = vld [vmem:[%s2312] sm:$0xff]
  %v2314 = vld [vmem:[%s2312 + $0x8] sm:$0xff]
  %v2315 = vld [vmem:[%s2312 + $0x10] sm:$0xff]
  %v2316 = vld [vmem:[%s2312 + $0x18] sm:$0xff]
  %v2317 = vld [vmem:[%s2] sm:$0xff]
  %v2318 = vld [vmem:[%s2 + $0x8] sm:$0xff]
  %v2319 = vld [vmem:[%s2 + $0x10] sm:$0xff]
  %v2320 = vld [vmem:[%s2 + $0x18] sm:$0xff]
  %v2321 = vld [vmem:[%s2 + $0x20] sm:$0xff]
  %v2322 = vld [vmem:[%s2 + $0x28] sm:$0xff]
  %v2323 = vld [vmem:[%s2 + $0x30] sm:$0xff]
  %v2324 = vld [vmem:[%s2 + $0x38] sm:$0xff]
  %v2325 = vld [vmem:[%s2 + $0x40] sm:$0xff]
  %v2326 = vld [vmem:[%s2 + $0x48] sm:$0xff]
  %v2327 = vld [vmem:[%s2 + $0x50] sm:$0xff]
  %v2328 = vld [vmem:[%s2 + $0x58] sm:$0xff]
  %v2329 = vld [vmem:[%s2 + $0x60] sm:$0xff]
  %v2330 = vld [vmem:[%s2 + $0x68] sm:$0xff]
  %v2331 = vld [vmem:[%s2 + $0x70] sm:$0xff]
  %v2332 = vld [vmem:[%s2 + $0x78] sm:$0xff]
  %v2333 = vld [vmem:[%s2 + $0x80] sm:$0xff]
  %v2334 = vld [vmem:[%s2 + $0x88] sm:$0xff]
  %v2335 = vld [vmem:[%s2 + $0x90] sm:$0xff]
  %v2336 = vld [vmem:[%s2 + $0x98] sm:$0xff]
  %v2337 = vld [vmem:[%s2 + $0xa0] sm:$0xff]
  %v2338 = vld [vmem:[%s2 + $0xa8] sm:$0xff]
  %v2339 = vld [vmem:[%s2 + $0xb0] sm:$0xff]
  %v2340 = vld [vmem:[%s2 + $0xb8] sm:$0xff]
  %v2341 = vld [vmem:[%s2 + $0xc0] sm:$0xff]
  %v2342 = vld [vmem:[%s2 + $0xc8] sm:$0xff]
  %v2343 = vld [vmem:[%s2 + $0xd0] sm:$0xff]
  %v2344 = vld [vmem:[%s2 + $0xd8] sm:$0xff]
  %v2345 = vld [vmem:[%s2 + $0xe0] sm:$0xff]
  %v2346 = vld [vmem:[%s2 + $0xe8] sm:$0xff]
  %v2347 = vld [vmem:[%s2 + $0xf0] sm:$0xff]
  %v2348 = vld [vmem:[%s2 + $0xf8] sm:$0xff]
  %v2381 = vunpack.c.l.b16 %v2317
  %v2382 = vunpack.c.h.b16 %v2317
  %v2383 = vunpack.c.l.b16 %v2318
  %v2384 = vunpack.c.h.b16 %v2318
  %v2385 = vunpack.c.l.b16 %v2319
  %v2386 = vunpack.c.h.b16 %v2319
  %v2387 = vunpack.c.l.b16 %v2320
  %v2388 = vunpack.c.h.b16 %v2320
  %v2389 = vunpack.c.l.b16 %v2321
  %v2390 = vunpack.c.h.b16 %v2321
  %v2391 = vunpack.c.l.b16 %v2322
  %v2392 = vunpack.c.h.b16 %v2322
  %v2393 = vunpack.c.l.b16 %v2323
  %v2394 = vunpack.c.h.b16 %v2323
  %v2395 = vunpack.c.l.b16 %v2324
  %v2396 = vunpack.c.h.b16 %v2324
  %v2397 = vunpack.c.l.b16 %v2325
  %v2398 = vunpack.c.h.b16 %v2325
  %v2399 = vunpack.c.l.b16 %v2326
  %v2400 = vunpack.c.h.b16 %v2326
  %v2401 = vunpack.c.l.b16 %v2327
  %v2402 = vunpack.c.h.b16 %v2327
  %v2403 = vunpack.c.l.b16 %v2328
  %v2404 = vunpack.c.h.b16 %v2328
  %v2405 = vunpack.c.l.b16 %v2329
  %v2406 = vunpack.c.h.b16 %v2329
  %v2407 = vunpack.c.l.b16 %v2330
  %v2408 = vunpack.c.h.b16 %v2330
  %v2409 = vunpack.c.l.b16 %v2331
  %v2410 = vunpack.c.h.b16 %v2331
  %v2411 = vunpack.c.l.b16 %v2332
  %v2412 = vunpack.c.h.b16 %v2332
  %v2413 = vunpack.c.l.b16 %v2333
  %v2414 = vunpack.c.h.b16 %v2333
  %v2415 = vunpack.c.l.b16 %v2334
  %v2416 = vunpack.c.h.b16 %v2334
  %v2417 = vunpack.c.l.b16 %v2335
  %v2418 = vunpack.c.h.b16 %v2335
  %v2419 = vunpack.c.l.b16 %v2336
  %v2420 = vunpack.c.h.b16 %v2336
  %v2421 = vunpack.c.l.b16 %v2337
  %v2422 = vunpack.c.h.b16 %v2337
  %v2423 = vunpack.c.l.b16 %v2338
  %v2424 = vunpack.c.h.b16 %v2338
  %v2425 = vunpack.c.l.b16 %v2339
  %v2426 = vunpack.c.h.b16 %v2339
  %v2427 = vunpack.c.l.b16 %v2340
  %v2428 = vunpack.c.h.b16 %v2340
  %v2429 = vunpack.c.l.b16 %v2341
  %v2430 = vunpack.c.h.b16 %v2341
  %v2431 = vunpack.c.l.b16 %v2342
  %v2432 = vunpack.c.h.b16 %v2342
  %v2433 = vunpack.c.l.b16 %v2343
  %v2434 = vunpack.c.h.b16 %v2343
  %v2435 = vunpack.c.l.b16 %v2344
  %v2436 = vunpack.c.h.b16 %v2344
  %v2437 = vunpack.c.l.b16 %v2345
  %v2438 = vunpack.c.h.b16 %v2345
  %v2439 = vunpack.c.l.b16 %v2346
  %v2440 = vunpack.c.h.b16 %v2346
  %v2441 = vunpack.c.l.b16 %v2347
  %v2442 = vunpack.c.h.b16 %v2347
  %v2443 = vunpack.c.l.b16 %v2348
  %v2444 = vunpack.c.h.b16 %v2348
  %v2445 = vpack.c.b16 %v2385, %v2381
  %v2446 = vpack.c.b16 %v2386, %v2382
  %v2447 = vpack.c.b16 %v2387, %v2383
  %v2448 = vpack.c.b16 %v2388, %v2384
  %v2449 = vpack.c.b16 %v2393, %v2389
  %v2450 = vpack.c.b16 %v2394, %v2390
  %v2451 = vpack.c.b16 %v2395, %v2391
  %v2452 = vpack.c.b16 %v2396, %v2392
  %v2453 = vpack.c.b16 %v2401, %v2397
  %v2454 = vpack.c.b16 %v2402, %v2398
  %v2455 = vpack.c.b16 %v2403, %v2399
  %v2456 = vpack.c.b16 %v2404, %v2400
  %v2457 = vpack.c.b16 %v2409, %v2405
  %v2458 = vpack.c.b16 %v2410, %v2406
  %v2459 = vpack.c.b16 %v2411, %v2407
  %v2460 = vpack.c.b16 %v2412, %v2408
  %v2461 = vpack.c.b16 %v2417, %v2413
  %v2462 = vpack.c.b16 %v2418, %v2414
  %v2463 = vpack.c.b16 %v2419, %v2415
  %v2464 = vpack.c.b16 %v2420, %v2416
  %v2465 = vpack.c.b16 %v2425, %v2421
  %v2466 = vpack.c.b16 %v2426, %v2422
  %v2467 = vpack.c.b16 %v2427, %v2423
  %v2468 = vpack.c.b16 %v2428, %v2424
  %v2469 = vpack.c.b16 %v2433, %v2429
  %v2470 = vpack.c.b16 %v2434, %v2430
  %v2471 = vpack.c.b16 %v2435, %v2431
  %v2472 = vpack.c.b16 %v2436, %v2432
  %v2473 = vpack.c.b16 %v2441, %v2437
  %v2474 = vpack.c.b16 %v2442, %v2438
  %v2475 = vpack.c.b16 %v2443, %v2439
  %v2476 = vpack.c.b16 %v2444, %v2440
  %2509 = vmatprep.subr.bf16.mxu0 %v2446
  %2510 = vmatpush1.bf16.msra.mxu0 %v2445
  %2511 = vmatprep.subr.bf16.mxu0 %v2450
  %2512 = vmatpush1.bf16.msra.mxu0 %v2449
  %2513 = vmatprep.subr.bf16.mxu0 %v2454
  %2514 = vmatpush1.bf16.msra.mxu0 %v2453
  %2515 = vmatprep.subr.bf16.mxu0 %v2458
  %2516 = vmatpush1.bf16.msra.mxu0 %v2457
  %2517 = vmatprep.subr.bf16.mxu0 %v2462
  %2518 = vmatpush1.bf16.msra.mxu0 %v2461
  %2519 = vmatprep.subr.bf16.mxu0 %v2466
  %2520 = vmatpush1.bf16.msra.mxu0 %v2465
  %2521 = vmatprep.subr.bf16.mxu0 %v2470
  %2522 = vmatpush1.bf16.msra.mxu0 %v2469
  %2523 = vmatprep.subr.bf16.mxu0 %v2474
  %2524 = vmatpush1.bf16.msra.mxu0 %v2473
  %2525 = vmatprep.subr.bf16.mxu0 0
  %2526 = vmatpush1.bf16.msra.mxu0 0
  %2527 = vmatprep.subr.bf16.mxu0 0
  %2528 = vmatpush1.bf16.msra.mxu0 0
  %2529 = vmatprep.subr.bf16.mxu0 0
  %2530 = vmatpush1.bf16.msra.mxu0 0
  %2531 = vmatprep.subr.bf16.mxu0 0
  %2532 = vmatpush1.bf16.msra.mxu0 0
  %2533 = vmatprep.subr.bf16.mxu0 0
  %2534 = vmatpush1.bf16.msra.mxu0 0
  %2535 = vmatprep.subr.bf16.mxu0 0
  %2536 = vmatpush1.bf16.msra.mxu0 0
  %2537 = vmatprep.subr.bf16.mxu0 0
  %2538 = vmatpush1.bf16.msra.mxu0 0
  %2539 = vmatprep.subr.bf16.mxu0 0
  %2540 = vmatpush1.bf16.msra.mxu0 0
  %2541 = vmatprep.mubr.bf16.mxu0 0
  %2542 = vmatmul.mubr.bf16.gmra.mrb[0].mxu0 %v2309
  %v2543 = vpop.f32.mrb[0].mxu0
  %v2544 = vadd.f32 0.0, %v2543
  %v2545 = vpop.f32.mrb[0].mxu0
  %v2546 = vadd.f32 0.0, %v2545
  %v2547 = vpop.f32.mrb[0].mxu0
  %v2548 = vpop.f32.mrb[0].mxu0
  %2549 = vdwg.mxu0
  %2550 = vmatprep.subr.bf16.mxu0 %v2448
  %2551 = vmatpush1.bf16.msra.mxu0 %v2447
  %2552 = vmatprep.subr.bf16.mxu0 %v2452
  %2553 = vmatpush1.bf16.msra.mxu0 %v2451
  %2554 = vmatprep.subr.bf16.mxu0 %v2456
  %2555 = vmatpush1.bf16.msra.mxu0 %v2455
  %2556 = vmatprep.subr.bf16.mxu0 %v2460
  %2557 = vmatpush1.bf16.msra.mxu0 %v2459
  %2558 = vmatprep.subr.bf16.mxu0 %v2464
  %2559 = vmatpush1.bf16.msra.mxu0 %v2463
  %2560 = vmatprep.subr.bf16.mxu0 %v2468
  %2561 = vmatpush1.bf16.msra.mxu0 %v2467
  %2562 = vmatprep.subr.bf16.mxu0 %v2472
  %2563 = vmatpush1.bf16.msra.mxu0 %v2471
  %2564 = vmatprep.subr.bf16.mxu0 %v2476
  %2565 = vmatpush1.bf16.msra.mxu0 %v2475
  %2566 = vmatprep.subr.bf16.mxu0 0
  %2567 = vmatpush1.bf16.msra.mxu0 0
  %2568 = vmatprep.subr.bf16.mxu0 0
  %2569 = vmatpush1.bf16.msra.mxu0 0
  %2570 = vmatprep.subr.bf16.mxu0 0
  %2571 = vmatpush1.bf16.msra.mxu0 0
  %2572 = vmatprep.subr.bf16.mxu0 0
  %2573 = vmatpush1.bf16.msra.mxu0 0
  %2574 = vmatprep.subr.bf16.mxu0 0
  %2575 = vmatpush1.bf16.msra.mxu0 0
  %2576 = vmatprep.subr.bf16.mxu0 0
  %2577 = vmatpush1.bf16.msra.mxu0 0
  %2578 = vmatprep.subr.bf16.mxu0 0
  %2579 = vmatpush1.bf16.msra.mxu0 0
  %2580 = vmatprep.subr.bf16.mxu0 0
  %2581 = vmatpush1.bf16.msra.mxu0 0
  %2582 = vmatprep.mubr.bf16.mxu0 0
  %2583 = vmatmul.mubr.bf16.gmra.mrb[0].mxu0 %v2309
  %v2584 = vpop.f32.mrb[0].mxu0
  %v2585 = vadd.f32 0.0, %v2584
  %v2586 = vpop.f32.mrb[0].mxu0
  %v2587 = vadd.f32 0.0, %v2586
  %v2588 = vpop.f32.mrb[0].mxu0
  %v2589 = vpop.f32.mrb[0].mxu0
  %2590 = vdwg.mxu0
  %v2591 = vadd.f32 %v2313, %v2544
  %v2592 = vadd.f32 %v2314, %v2546
  %v2593 = vadd.f32 %v2315, %v2585
  %v2594 = vadd.f32 %v2316, %v2587
  %v2595 = vxor.u32 %v2591, 2147483648
  %v2596 = vmul.f32 %v2595, 1.442695
  %v2597 = vpow.pop %v2596
  %v2598 = vadd.f32 %v2597, 1.0
  %v2599 = vrcp.pop %v2598
  %v2600 = vmul.f32 1.0, %v2599
  %v2601 = vxor.u32 %v2592, 2147483648
  %v2602 = vmul.f32 %v2601, 1.442695
  %v2603 = vpow.pop %v2602
  %v2604 = vadd.f32 %v2603, 1.0
  %v2605 = vrcp.pop %v2604
  %v2606 = vmul.f32 1.0, %v2605
  %v2607 = vtanh.pop %v2593
  %v2608 = vxor.u32 %v2594, 2147483648
  %v2609 = vmul.f32 %v2608, 1.442695
  %v2610 = vpow.pop %v2609
  %v2611 = vadd.f32 %v2610, 1.0
  %v2612 = vrcp.pop %v2611
  %v2613 = vmul.f32 1.0, %v2612
  %v2614 = vmul.f32 %v2606, %v2306
  %v2615 = vmul.f32 %v2600, %v2607
  %v2616 = vadd.f32 %v2614, %v2615
  %v2617 = vtanh.pop %v2616
  %v2618 = vmul.f32 %v2613, %v2617
  %v2619 = vpack.c.bf16 %v2618, %v2618
  %s2620 = scalar_lea.vmem %s4, 24
  %2621 = vst [vmem:[%s2620] sm:$0xf] %v2619
  %s2622 = scalar_lea.vmem [#allocation2], 224
  %v2623 = vld [vmem:[%s2622] sm:$0xff]
  %v2624 = vld [vmem:[%s2622 + $0x8] sm:$0xff]
  %v2625 = vld [vmem:[%s2622 + $0x10] sm:$0xff]
  %v2626 = vld [vmem:[%s2622 + $0x18] sm:$0xff]
  %v2627 = vld [vmem:[%s2] sm:$0xff]
  %v2628 = vld [vmem:[%s2 + $0x8] sm:$0xff]
  %v2629 = vld [vmem:[%s2 + $0x10] sm:$0xff]
  %v2630 = vld [vmem:[%s2 + $0x18] sm:$0xff]
  %v2631 = vld [vmem:[%s2 + $0x20] sm:$0xff]
  %v2632 = vld [vmem:[%s2 + $0x28] sm:$0xff]
  %v2633 = vld [vmem:[%s2 + $0x30] sm:$0xff]
  %v2634 = vld [vmem:[%s2 + $0x38] sm:$0xff]
  %v2635 = vld [vmem:[%s2 + $0x40] sm:$0xff]
  %v2636 = vld [vmem:[%s2 + $0x48] sm:$0xff]
  %v2637 = vld [vmem:[%s2 + $0x50] sm:$0xff]
  %v2638 = vld [vmem:[%s2 + $0x58] sm:$0xff]
  %v2639 = vld [vmem:[%s2 + $0x60] sm:$0xff]
  %v2640 = vld [vmem:[%s2 + $0x68] sm:$0xff]
  %v2641 = vld [vmem:[%s2 + $0x70] sm:$0xff]
  %v2642 = vld [vmem:[%s2 + $0x78] sm:$0xff]
  %v2643 = vld [vmem:[%s2 + $0x80] sm:$0xff]
  %v2644 = vld [vmem:[%s2 + $0x88] sm:$0xff]
  %v2645 = vld [vmem:[%s2 + $0x90] sm:$0xff]
  %v2646 = vld [vmem:[%s2 + $0x98] sm:$0xff]
  %v2647 = vld [vmem:[%s2 + $0xa0] sm:$0xff]
  %v2648 = vld [vmem:[%s2 + $0xa8] sm:$0xff]
  %v2649 = vld [vmem:[%s2 + $0xb0] sm:$0xff]
  %v2650 = vld [vmem:[%s2 + $0xb8] sm:$0xff]
  %v2651 = vld [vmem:[%s2 + $0xc0] sm:$0xff]
  %v2652 = vld [vmem:[%s2 + $0xc8] sm:$0xff]
  %v2653 = vld [vmem:[%s2 + $0xd0] sm:$0xff]
  %v2654 = vld [vmem:[%s2 + $0xd8] sm:$0xff]
  %v2655 = vld [vmem:[%s2 + $0xe0] sm:$0xff]
  %v2656 = vld [vmem:[%s2 + $0xe8] sm:$0xff]
  %v2657 = vld [vmem:[%s2 + $0xf0] sm:$0xff]
  %v2658 = vld [vmem:[%s2 + $0xf8] sm:$0xff]
  %v2691 = vunpack.c.l.b16 %v2627
  %v2692 = vunpack.c.h.b16 %v2627
  %v2693 = vunpack.c.l.b16 %v2628
  %v2694 = vunpack.c.h.b16 %v2628
  %v2695 = vunpack.c.l.b16 %v2629
  %v2696 = vunpack.c.h.b16 %v2629
  %v2697 = vunpack.c.l.b16 %v2630
  %v2698 = vunpack.c.h.b16 %v2630
  %v2699 = vunpack.c.l.b16 %v2631
  %v2700 = vunpack.c.h.b16 %v2631
  %v2701 = vunpack.c.l.b16 %v2632
  %v2702 = vunpack.c.h.b16 %v2632
  %v2703 = vunpack.c.l.b16 %v2633
  %v2704 = vunpack.c.h.b16 %v2633
  %v2705 = vunpack.c.l.b16 %v2634
  %v2706 = vunpack.c.h.b16 %v2634
  %v2707 = vunpack.c.l.b16 %v2635
  %v2708 = vunpack.c.h.b16 %v2635
  %v2709 = vunpack.c.l.b16 %v2636
  %v2710 = vunpack.c.h.b16 %v2636
  %v2711 = vunpack.c.l.b16 %v2637
  %v2712 = vunpack.c.h.b16 %v2637
  %v2713 = vunpack.c.l.b16 %v2638
  %v2714 = vunpack.c.h.b16 %v2638
  %v2715 = vunpack.c.l.b16 %v2639
  %v2716 = vunpack.c.h.b16 %v2639
  %v2717 = vunpack.c.l.b16 %v2640
  %v2718 = vunpack.c.h.b16 %v2640
  %v2719 = vunpack.c.l.b16 %v2641
  %v2720 = vunpack.c.h.b16 %v2641
  %v2721 = vunpack.c.l.b16 %v2642
  %v2722 = vunpack.c.h.b16 %v2642
  %v2723 = vunpack.c.l.b16 %v2643
  %v2724 = vunpack.c.h.b16 %v2643
  %v2725 = vunpack.c.l.b16 %v2644
  %v2726 = vunpack.c.h.b16 %v2644
  %v2727 = vunpack.c.l.b16 %v2645
  %v2728 = vunpack.c.h.b16 %v2645
  %v2729 = vunpack.c.l.b16 %v2646
  %v2730 = vunpack.c.h.b16 %v2646
  %v2731 = vunpack.c.l.b16 %v2647
  %v2732 = vunpack.c.h.b16 %v2647
  %v2733 = vunpack.c.l.b16 %v2648
  %v2734 = vunpack.c.h.b16 %v2648
  %v2735 = vunpack.c.l.b16 %v2649
  %v2736 = vunpack.c.h.b16 %v2649
  %v2737 = vunpack.c.l.b16 %v2650
  %v2738 = vunpack.c.h.b16 %v2650
  %v2739 = vunpack.c.l.b16 %v2651
  %v2740 = vunpack.c.h.b16 %v2651
  %v2741 = vunpack.c.l.b16 %v2652
  %v2742 = vunpack.c.h.b16 %v2652
  %v2743 = vunpack.c.l.b16 %v2653
  %v2744 = vunpack.c.h.b16 %v2653
  %v2745 = vunpack.c.l.b16 %v2654
  %v2746 = vunpack.c.h.b16 %v2654
  %v2747 = vunpack.c.l.b16 %v2655
  %v2748 = vunpack.c.h.b16 %v2655
  %v2749 = vunpack.c.l.b16 %v2656
  %v2750 = vunpack.c.h.b16 %v2656
  %v2751 = vunpack.c.l.b16 %v2657
  %v2752 = vunpack.c.h.b16 %v2657
  %v2753 = vunpack.c.l.b16 %v2658
  %v2754 = vunpack.c.h.b16 %v2658
  %v2755 = vpack.c.b16 %v2695, %v2691
  %v2756 = vpack.c.b16 %v2696, %v2692
  %v2757 = vpack.c.b16 %v2697, %v2693
  %v2758 = vpack.c.b16 %v2698, %v2694
  %v2759 = vpack.c.b16 %v2703, %v2699
  %v2760 = vpack.c.b16 %v2704, %v2700
  %v2761 = vpack.c.b16 %v2705, %v2701
  %v2762 = vpack.c.b16 %v2706, %v2702
  %v2763 = vpack.c.b16 %v2711, %v2707
  %v2764 = vpack.c.b16 %v2712, %v2708
  %v2765 = vpack.c.b16 %v2713, %v2709
  %v2766 = vpack.c.b16 %v2714, %v2710
  %v2767 = vpack.c.b16 %v2719, %v2715
  %v2768 = vpack.c.b16 %v2720, %v2716
  %v2769 = vpack.c.b16 %v2721, %v2717
  %v2770 = vpack.c.b16 %v2722, %v2718
  %v2771 = vpack.c.b16 %v2727, %v2723
  %v2772 = vpack.c.b16 %v2728, %v2724
  %v2773 = vpack.c.b16 %v2729, %v2725
  %v2774 = vpack.c.b16 %v2730, %v2726
  %v2775 = vpack.c.b16 %v2735, %v2731
  %v2776 = vpack.c.b16 %v2736, %v2732
  %v2777 = vpack.c.b16 %v2737, %v2733
  %v2778 = vpack.c.b16 %v2738, %v2734
  %v2779 = vpack.c.b16 %v2743, %v2739
  %v2780 = vpack.c.b16 %v2744, %v2740
  %v2781 = vpack.c.b16 %v2745, %v2741
  %v2782 = vpack.c.b16 %v2746, %v2742
  %v2783 = vpack.c.b16 %v2751, %v2747
  %v2784 = vpack.c.b16 %v2752, %v2748
  %v2785 = vpack.c.b16 %v2753, %v2749
  %v2786 = vpack.c.b16 %v2754, %v2750
  %2819 = vmatprep.subr.bf16.mxu0 %v2756
  %2820 = vmatpush1.bf16.msra.mxu0 %v2755
  %2821 = vmatprep.subr.bf16.mxu0 %v2760
  %2822 = vmatpush1.bf16.msra.mxu0 %v2759
  %2823 = vmatprep.subr.bf16.mxu0 %v2764
  %2824 = vmatpush1.bf16.msra.mxu0 %v2763
  %2825 = vmatprep.subr.bf16.mxu0 %v2768
  %2826 = vmatpush1.bf16.msra.mxu0 %v2767
  %2827 = vmatprep.subr.bf16.mxu0 %v2772
  %2828 = vmatpush1.bf16.msra.mxu0 %v2771
  %2829 = vmatprep.subr.bf16.mxu0 %v2776
  %2830 = vmatpush1.bf16.msra.mxu0 %v2775
  %2831 = vmatprep.subr.bf16.mxu0 %v2780
  %2832 = vmatpush1.bf16.msra.mxu0 %v2779
  %2833 = vmatprep.subr.bf16.mxu0 %v2784
  %2834 = vmatpush1.bf16.msra.mxu0 %v2783
  %2835 = vmatprep.subr.bf16.mxu0 0
  %2836 = vmatpush1.bf16.msra.mxu0 0
  %2837 = vmatprep.subr.bf16.mxu0 0
  %2838 = vmatpush1.bf16.msra.mxu0 0
  %2839 = vmatprep.subr.bf16.mxu0 0
  %2840 = vmatpush1.bf16.msra.mxu0 0
  %2841 = vmatprep.subr.bf16.mxu0 0
  %2842 = vmatpush1.bf16.msra.mxu0 0
  %2843 = vmatprep.subr.bf16.mxu0 0
  %2844 = vmatpush1.bf16.msra.mxu0 0
  %2845 = vmatprep.subr.bf16.mxu0 0
  %2846 = vmatpush1.bf16.msra.mxu0 0
  %2847 = vmatprep.subr.bf16.mxu0 0
  %2848 = vmatpush1.bf16.msra.mxu0 0
  %2849 = vmatprep.subr.bf16.mxu0 0
  %2850 = vmatpush1.bf16.msra.mxu0 0
  %2851 = vmatprep.mubr.bf16.mxu0 0
  %2852 = vmatmul.mubr.bf16.gmra.mrb[0].mxu0 %v2619
  %v2853 = vpop.f32.mrb[0].mxu0
  %v2854 = vadd.f32 0.0, %v2853
  %v2855 = vpop.f32.mrb[0].mxu0
  %v2856 = vadd.f32 0.0, %v2855
  %v2857 = vpop.f32.mrb[0].mxu0
  %v2858 = vpop.f32.mrb[0].mxu0
  %2859 = vdwg.mxu0
  %2860 = vmatprep.subr.bf16.mxu0 %v2758
  %2861 = vmatpush1.bf16.msra.mxu0 %v2757
  %2862 = vmatprep.subr.bf16.mxu0 %v2762
  %2863 = vmatpush1.bf16.msra.mxu0 %v2761
  %2864 = vmatprep.subr.bf16.mxu0 %v2766
  %2865 = vmatpush1.bf16.msra.mxu0 %v2765
  %2866 = vmatprep.subr.bf16.mxu0 %v2770
  %2867 = vmatpush1.bf16.msra.mxu0 %v2769
  %2868 = vmatprep.subr.bf16.mxu0 %v2774
  %2869 = vmatpush1.bf16.msra.mxu0 %v2773
  %2870 = vmatprep.subr.bf16.mxu0 %v2778
  %2871 = vmatpush1.bf16.msra.mxu0 %v2777
  %2872 = vmatprep.subr.bf16.mxu0 %v2782
  %2873 = vmatpush1.bf16.msra.mxu0 %v2781
  %2874 = vmatprep.subr.bf16.mxu0 %v2786
  %2875 = vmatpush1.bf16.msra.mxu0 %v2785
  %2876 = vmatprep.subr.bf16.mxu0 0
  %2877 = vmatpush1.bf16.msra.mxu0 0
  %2878 = vmatprep.subr.bf16.mxu0 0
  %2879 = vmatpush1.bf16.msra.mxu0 0
  %2880 = vmatprep.subr.bf16.mxu0 0
  %2881 = vmatpush1.bf16.msra.mxu0 0
  %2882 = vmatprep.subr.bf16.mxu0 0
  %2883 = vmatpush1.bf16.msra.mxu0 0
  %2884 = vmatprep.subr.bf16.mxu0 0
  %2885 = vmatpush1.bf16.msra.mxu0 0
  %2886 = vmatprep.subr.bf16.mxu0 0
  %2887 = vmatpush1.bf16.msra.mxu0 0
  %2888 = vmatprep.subr.bf16.mxu0 0
  %2889 = vmatpush1.bf16.msra.mxu0 0
  %2890 = vmatprep.subr.bf16.mxu0 0
  %2891 = vmatpush1.bf16.msra.mxu0 0
  %2892 = vmatprep.mubr.bf16.mxu0 0
  %2893 = vmatmul.mubr.bf16.gmra.mrb[0].mxu0 %v2619
  %v2894 = vpop.f32.mrb[0].mxu0
  %v2895 = vadd.f32 0.0, %v2894
  %v2896 = vpop.f32.mrb[0].mxu0
  %v2897 = vadd.f32 0.0, %v2896
  %v2898 = vpop.f32.mrb[0].mxu0
  %v2899 = vpop.f32.mrb[0].mxu0
  %2900 = vdwg.mxu0
  %v2901 = vadd.f32 %v2623, %v2854
  %v2902 = vadd.f32 %v2624, %v2856
  %v2903 = vadd.f32 %v2625, %v2895
  %v2904 = vadd.f32 %v2626, %v2897
  %v2905 = vxor.u32 %v2901, 2147483648
  %v2906 = vmul.f32 %v2905, 1.442695
  %v2907 = vpow.pop %v2906
  %v2908 = vadd.f32 %v2907, 1.0
  %v2909 = vrcp.pop %v2908
  %v2910 = vmul.f32 1.0, %v2909
  %v2911 = vxor.u32 %v2902, 2147483648
  %v2912 = vmul.f32 %v2911, 1.442695
  %v2913 = vpow.pop %v2912
  %v2914 = vadd.f32 %v2913, 1.0
  %v2915 = vrcp.pop %v2914
  %v2916 = vmul.f32 1.0, %v2915
  %v2917 = vtanh.pop %v2903
  %v2918 = vxor.u32 %v2904, 2147483648
  %v2919 = vmul.f32 %v2918, 1.442695
  %v2920 = vpow.pop %v2919
  %v2921 = vadd.f32 %v2920, 1.0
  %v2922 = vrcp.pop %v2921
  %v2923 = vmul.f32 1.0, %v2922
  %v2924 = vmul.f32 %v2916, %v2616
  %v2925 = vmul.f32 %v2910, %v2917
  %v2926 = vadd.f32 %v2924, %v2925
  %v2927 = vtanh.pop %v2926
  %v2928 = vmul.f32 %v2923, %v2927
  %v2929 = vpack.c.bf16 %v2928, %v2928
  %s2930 = scalar_lea.vmem %s4, 28
  %2931 = vst [vmem:[%s2930] sm:$0xf] %v2929
  %2932 = vst [vmem:[%s5] sm:$0xff] %v2928
  %2933 = vst [vmem:[%s6] sm:$0xff] %v2926
  // Predicated region
  $region22: #{lstm_forward.2} parent=0 // pred_check
    _
  $region23: #{lstm_forward.2} parent=0 // pred_check_branch
    %2935 = sbr.rel (0) target = $region25
  $region24: #{lstm_forward.2} parent=0 // pred_region
    _
  $region25: #{lstm_forward.2} parent=0 // pred_fallthru
    _
  // Predicated region
  $region26: #{lstm_forward.2} parent=0 // pred_check
    _
  $region27: #{lstm_forward.2} parent=0 // pred_check_branch
    %2937 = sbr.rel (0) target = $region29
  $region28: #{lstm_forward.2} parent=0 // pred_region
    _
  $region29: #{lstm_forward.2} parent=0 // pred_fallthru
    _
  // Predicated region
  $region30: #{lstm_forward.2} parent=0 // pred_check
    _
  $region31: #{lstm_forward.2} parent=0 // pred_check_branch
    %2939 = sbr.rel (0) target = $region33
  $region32: #{lstm_forward.2} parent=0 // pred_region
    _
  $region33: #{lstm_forward.2} parent=0 // pred_fallthru
    _
  // Predicated region
  $region34: #{lstm_forward.2} parent=0 // pred_check
    _
  $region35: #{lstm_forward.2} parent=0 // pred_check_branch
    %2941 = sbr.rel (0) target = $region37
  $region36: #{lstm_forward.2} parent=0 // pred_region
    _
  $region37: #{lstm_forward.2} parent=0 // pred_fallthru
    _
  // Predicated region
  $region38: #{lstm_forward.2} parent=0 // pred_check
    _
  $region39: #{lstm_forward.2} parent=0 // pred_check_branch
    %2943 = sbr.rel (0) target = $region41
  $region40: #{lstm_forward.2} parent=0 // pred_region
    _
  $region41: #{lstm_forward.2} parent=0 // pred_fallthru
    _
  // Predicated region
  $region42: #{lstm_forward.2} parent=0 // pred_check
    _
  $region43: #{lstm_forward.2} parent=0 // pred_check_branch
    %2945 = sbr.rel (0) target = $region45
  $region44: #{lstm_forward.2} parent=0 // pred_region
    _
  $region45: #{lstm_forward.2} parent=0 // pred_fallthru
    _

</llo_original>
